<compile_context>
chip_gen: v7x
topology: tpu7x:2x2x1
jax: 0.10.0
libtpu: 0.0.40
codegen_flags: <defaults>
</compile_context>

<pallas_src>
import functools

import jax
import jax.numpy as jnp
from jax import lax
from jax.experimental import pallas as pl
from jax.experimental.pallas import tpu as pltpu

DINO_SHIFT = 0.3  # args.dino_shift — deterministic synthetic value


def _corr_loss_kernel(f_ref, p_ref, out_ref, *, dino_shift, batch_block):
    """f_ref: (Bn, C, S) feats^T;  p_ref: (Bn, K, S) log-probs^T;
    out_ref: (8, 128) per-block partials [pos_sum, neg_sum, cnt_pos, cnt_neg]."""

    def one_batch_element(i, carry):
        pos_s, tot_s, cnt_p, cnt_n = carry
        f_t = f_ref[i].astype(jnp.float32)          # (C, S)
        p_t = p_ref[i].astype(jnp.float32)          # (K, S), log-probs

        # ---- f_corr = normalize(f, dim=-1) @ normalize(f, dim=-1)^T - shift ----
        ss = jnp.sum(f_t * f_t, axis=0, keepdims=True)             # (1, S)
        inv = 1.0 / jnp.maximum(jnp.sqrt(ss), 1e-12)               # reciprocal-multiply
        fn_t = f_t * inv                                           # (C, S), f32
        # Keep f32 MXU operands: f_corr drives sign masks & nonzero counts.
        f_corr = lax.dot_general(
            fn_t, fn_t, (((0,), (0,)), ((), ())),
            preferred_element_type=jnp.float32) - dino_shift       # (S, S), symmetric

        # ---- p_corr^T = JS(p, p)^T ;  m == p exactly, kl_bm == kl_am ----
        ep_t = jnp.exp(p_t)                                        # (K, S)
        self_term = jnp.sum(ep_t * p_t, axis=0, keepdims=True)     # (1, S), lane-dense
        # cross^T[l, s] = sum_k p[l,k] * e^{p[s,k]}  (bf16 operands, f32 accum)
        cross_t = lax.dot_general(
            p_t.astype(jnp.bfloat16), ep_t.astype(jnp.bfloat16),
            (((0,), (0,)), ((), ())),
            preferred_element_type=jnp.float32)                    # (S, S)
        p_corr_t = self_term - cross_t                             # (S, S) == p_corr^T

        # ---- fused clamp/mask/reduce tail (f_corr symmetric => transpose-safe) ----
        fc = f_corr * p_corr_t
        pos_mask = f_corr > 0.0
        blk_pos = jnp.sum(jnp.where(pos_mask, fc, 0.0))
        blk_tot = jnp.sum(fc)                                      # fc == 0 where f_corr == 0
        blk_cp = jnp.sum(pos_mask.astype(jnp.float32))
        blk_cn = jnp.sum((f_corr < 0.0).astype(jnp.float32))
        return (pos_s + blk_pos, tot_s + blk_tot, cnt_p + blk_cp, cnt_n + blk_cn)

    zero = jnp.float32(0.0)
    pos_s, tot_s, cnt_p, cnt_n = lax.fori_loop(
        0, batch_block, one_batch_element, (zero, zero, zero, zero), unroll=True)
    neg_s = tot_s - pos_s

    # Lane-dense (8, 128) partials tile: row r broadcasts value r.
    row = lax.broadcasted_iota(jnp.int32, (8, 128), 0)
    out_ref[...] = jnp.where(row == 0, pos_s,
                   jnp.where(row == 1, neg_s,
                   jnp.where(row == 2, cnt_p,
                   jnp.where(row == 3, cnt_n, 0.0))))


def correlation_loss(feats, p_class, dino_shift=DINO_SHIFT, batch_block=None):
    """feats: [N,H,W,C], p_class: [N,H,W,K] (log-probs). Returns (pos_loss, neg_loss)."""
    N, H, W, C = feats.shape
    K = p_class.shape[-1]
    S = H * W

    # Lane-dense channel-first layouts: spatial axis S on the 128-lane axis.
    feats_t = jnp.transpose(feats.reshape(N, S, C), (0, 2, 1))      # [N, C, S]
    p_t = jnp.transpose(p_class.reshape(N, S, K), (0, 2, 1))        # [N, K, S]

    if batch_block is None:
        # Largest (capped) divisor of N keeping the per-step input payload modest.
        budget_bytes = 2 * 1024 * 1024
        per_n = S * (C + K) * 4
        batch_block = 1
        for d in range(1, min(N, 4) + 1):
            if N % d == 0 and d * per_n <= budget_bytes:
                batch_block = d
    assert N % batch_block == 0
    nb = N // batch_block

    kernel = functools.partial(_corr_loss_kernel,
                               dino_shift=float(dino_shift),
                               batch_block=batch_block)
    out = pl.pallas_call(
        kernel,
        out_shape=jax.ShapeDtypeStruct((nb, 8, 128), jnp.float32),
        grid_spec=pltpu.PrefetchScalarGridSpec(
            num_scalar_prefetch=0,
            grid=(nb,),
            in_specs=[
                pl.BlockSpec((batch_block, C, S), lambda b: (b, 0, 0)),
                pl.BlockSpec((batch_block, K, S), lambda b: (b, 0, 0)),
            ],
            out_specs=pl.BlockSpec((None, 8, 128), lambda b: (b, 0, 0)),
        ),
        compiler_params=pltpu.CompilerParams(
            dimension_semantics=("parallel",),     # per-block partials -> both TCs on v7x
            vmem_limit_bytes=64 * 1024 * 1024,     # above default scoped limit, <= v7x physical
        ),
    )(feats_t, p_t)

    totals = jnp.sum(out[:, :4, 0], axis=0)        # [pos_sum, neg_sum, cnt_pos, cnt_neg]
    # NOTE: division yields NaN if a count is zero — matches the PyTorch module.
    return totals[0] / totals[2], totals[1] / totals[3]


def correlation_loss_ref(feats, p_class, dino_shift=DINO_SHIFT):
    """Pure-JAX reference (mirrors the PyTorch forward exactly)."""
    N = feats.shape[0]
    f = feats.reshape(N, -1, feats.shape[-1]).astype(jnp.float32)
    p = p_class.reshape(N, -1, p_class.shape[-1]).astype(jnp.float32)

    fn = f / jnp.maximum(jnp.linalg.norm(f, axis=-1, keepdims=True), 1e-12)
    f_corr = jnp.einsum('nsc,nlc->nsl', fn, fn,
                        precision=lax.Precision.HIGHEST) - dino_shift
    f_pos = jnp.maximum(f_corr, 0.0)
    f_neg = jnp.minimum(f_corr, 0.0)

    m = jnp.log((jnp.exp(p) + jnp.exp(p)) / 2.0)              # [N, S, K]
    a = p[:, :, None, :]                                      # [N, S, 1, K]
    kl_am = (jnp.exp(a) * (a - m[:, None, :, :])).sum(-1)     # [N, S, S]
    p_corr = (kl_am + kl_am) / 2.0                            # kl_bm == kl_am (a is b)

    pos = (f_pos * p_corr).sum() / jnp.count_nonzero(f_pos)
    neg = (f_neg * p_corr).sum() / jnp.count_nonzero(f_neg)
    return pos, neg


if __name__ == "__main__":
    key = jax.random.PRNGKey(0)
    k1, k2 = jax.random.split(key)
    N, H, W, C, K = 2, 16, 16, 32, 8

    feats = jax.random.normal(k1, (N, H, W, C), jnp.float32)
    logits = jax.random.normal(k2, (N, H, W, K), jnp.float32)
    p_class = jax.nn.log_softmax(logits, axis=-1)   # log-probabilities, as the module expects

    pos, neg = correlation_loss(feats, p_class)
    jax.block_until_ready((pos, neg))

    pos_ref, neg_ref = correlation_loss_ref(feats, p_class)
    assert jnp.allclose(pos, pos_ref, rtol=2e-3, atol=1e-4), (pos, pos_ref)
    assert jnp.allclose(neg, neg_ref, rtol=2e-3, atol=1e-4), (neg, neg_ref)

    print("KERNEL_OK")
</pallas_src>

<mosaic_0001>
module attributes {stable_mosaic.version = 11 : i64} {
  func.func @_corr_loss_kernel(%arg0: i32, %arg1: memref<2x32x256xf32, #tpu.memory_space<vmem>>, %arg2: memref<2x8x256xf32, #tpu.memory_space<vmem>>, %arg3: memref<1x8x128xf32, #tpu.memory_space<vmem>>) attributes {dimension_semantics = [#tpu.dimension_semantics<parallel>], iteration_bounds = array<i64: 1>, scalar_prefetch = 0 : i64, scratch_operands = 0 : i64, tpu.core_type = #tpu.core_type<tc>, window_params = [{transform_indices = @transform_0, window_bounds = array<i64: 2, 32, 256>}, {transform_indices = @transform_1, window_bounds = array<i64: 2, 8, 256>}, {transform_indices = @transform_2, window_bounds = array<i64: 1, 8, 128>}]} {
    %cst = arith.constant 0.000000e+00 : f32
    %cst_0 = arith.constant 0.000000e+00 : f32
    %cst_1 = arith.constant 0.000000e+00 : f32
    %cst_2 = arith.constant 0.000000e+00 : f32
    %c0_i32 = arith.constant 0 : i32
    %0 = arith.index_cast %c0_i32 : i32 to index
    %c0 = arith.constant 0 : index
    %c0_3 = arith.constant 0 : index
    %1 = vector.load %arg1[%0, %c0, %c0_3] : memref<2x32x256xf32, #tpu.memory_space<vmem>>, vector<1x32x256xf32>
    %2 = vector.shape_cast %1 : vector<1x32x256xf32> to vector<32x256xf32>
    %3 = arith.index_cast %c0_i32 : i32 to index
    %c0_4 = arith.constant 0 : index
    %c0_5 = arith.constant 0 : index
    %4 = vector.load %arg2[%3, %c0_4, %c0_5] : memref<2x8x256xf32, #tpu.memory_space<vmem>>, vector<1x8x256xf32>
    %5 = vector.shape_cast %4 : vector<1x8x256xf32> to vector<8x256xf32>
    %6 = arith.mulf %2, %2 : vector<32x256xf32>
    %cst_6 = arith.constant dense<0.000000e+00> : vector<256xf32>
    %7 = vector.multi_reduction <add>, %6, %cst_6 [0] : vector<32x256xf32> to vector<256xf32>
    %8 = vector.shape_cast %7 : vector<256xf32> to vector<1x256xf32>
    %9 = math.sqrt %8 : vector<1x256xf32>
    %cst_7 = arith.constant 9.99999996E-13 : f32
    %10 = vector.broadcast %cst_7 : f32 to vector<1x256xf32>
    %11 = arith.maximumf %9, %10 : vector<1x256xf32>
    %cst_8 = arith.constant 1.000000e+00 : f32
    %12 = vector.broadcast %cst_8 : f32 to vector<1x256xf32>
    %13 = arith.divf %12, %11 : vector<1x256xf32>
    %14 = vector.broadcast %13 : vector<1x256xf32> to vector<32x256xf32>
    %15 = arith.mulf %2, %14 : vector<32x256xf32>
    %cst_9 = arith.constant dense<0.000000e+00> : vector<256x256xf32>
    %16 = tpu.matmul %15, %15, %cst_9 {dimension_numbers = #tpu.dot_dimension_numbers<[0], [0], [1], [1], [0, 1, 1, 1], [], []>} : vector<32x256xf32>, vector<32x256xf32>, vector<256x256xf32> -> vector<256x256xf32>
    %cst_10 = arith.constant 3.000000e-01 : f32
    %17 = vector.broadcast %cst_10 : f32 to vector<256x256xf32>
    %18 = arith.subf %16, %17 : vector<256x256xf32>
    %19 = math.exp %5 : vector<8x256xf32>
    %20 = arith.mulf %19, %5 : vector<8x256xf32>
    %cst_11 = arith.constant dense<0.000000e+00> : vector<256xf32>
    %21 = vector.multi_reduction <add>, %20, %cst_11 [0] : vector<8x256xf32> to vector<256xf32>
    %22 = vector.shape_cast %21 : vector<256xf32> to vector<1x256xf32>
    %23 = arith.truncf %5 : vector<8x256xf32> to vector<8x256xbf16>
    %24 = arith.truncf %19 : vector<8x256xf32> to vector<8x256xbf16>
    %cst_12 = arith.constant dense<0.000000e+00> : vector<256x256xf32>
    %25 = tpu.matmul %23, %24, %cst_12 {dimension_numbers = #tpu.dot_dimension_numbers<[0], [0], [1], [1], [0, 1, 1, 1], [], []>} : vector<8x256xbf16>, vector<8x256xbf16>, vector<256x256xf32> -> vector<256x256xf32>
    %26 = vector.broadcast %22 : vector<1x256xf32> to vector<256x256xf32>
    %27 = arith.subf %26, %25 : vector<256x256xf32>
    %28 = arith.mulf %18, %27 : vector<256x256xf32>
    %cst_13 = arith.constant 0.000000e+00 : f32
    %29 = vector.broadcast %cst_13 : f32 to vector<256x256xf32>
    %30 = arith.cmpf ogt, %18, %29 : vector<256x256xf32>
    %cst_14 = arith.constant 0.000000e+00 : f32
    %31 = vector.broadcast %cst_14 : f32 to vector<256x256xf32>
    %32 = arith.select %30, %28, %31 : vector<256x256xi1>, vector<256x256xf32>
    %33 = vector.shape_cast %32 : vector<256x256xf32> to vector<1x256x256xf32>
    %cst_15 = arith.constant dense<0.000000e+00> : vector<1xf32>
    %34 = vector.multi_reduction <add>, %33, %cst_15 [1, 2] : vector<1x256x256xf32> to vector<1xf32>
    %35 = vector.shape_cast %34 : vector<1xf32> to vector<1x1x1xf32>
    %36 = vector.extract %35[0, 0, 0] : f32 from vector<1x1x1xf32>
    %37 = vector.shape_cast %28 : vector<256x256xf32> to vector<1x256x256xf32>
    %cst_16 = arith.constant dense<0.000000e+00> : vector<1xf32>
    %38 = vector.multi_reduction <add>, %37, %cst_16 [1, 2] : vector<1x256x256xf32> to vector<1xf32>
    %39 = vector.shape_cast %38 : vector<1xf32> to vector<1x1x1xf32>
    %40 = vector.extract %39[0, 0, 0] : f32 from vector<1x1x1xf32>
    %41 = arith.extui %30 : vector<256x256xi1> to vector<256x256xi32>
    %42 = arith.sitofp %41 : vector<256x256xi32> to vector<256x256xf32>
    %43 = vector.shape_cast %42 : vector<256x256xf32> to vector<1x256x256xf32>
    %cst_17 = arith.constant dense<0.000000e+00> : vector<1xf32>
    %44 = vector.multi_reduction <add>, %43, %cst_17 [1, 2] : vector<1x256x256xf32> to vector<1xf32>
    %45 = vector.shape_cast %44 : vector<1xf32> to vector<1x1x1xf32>
    %46 = vector.extract %45[0, 0, 0] : f32 from vector<1x1x1xf32>
    %cst_18 = arith.constant 0.000000e+00 : f32
    %47 = vector.broadcast %cst_18 : f32 to vector<256x256xf32>
    %48 = arith.cmpf olt, %18, %47 : vector<256x256xf32>
    %49 = arith.extui %48 : vector<256x256xi1> to vector<256x256xi32>
    %50 = arith.sitofp %49 : vector<256x256xi32> to vector<256x256xf32>
    %51 = vector.shape_cast %50 : vector<256x256xf32> to vector<1x256x256xf32>
    %cst_19 = arith.constant dense<0.000000e+00> : vector<1xf32>
    %52 = vector.multi_reduction <add>, %51, %cst_19 [1, 2] : vector<1x256x256xf32> to vector<1xf32>
    %53 = vector.shape_cast %52 : vector<1xf32> to vector<1x1x1xf32>
    %54 = vector.extract %53[0, 0, 0] : f32 from vector<1x1x1xf32>
    %55 = arith.addf %cst, %36 : f32
    %56 = arith.addf %cst_0, %40 : f32
    %57 = arith.addf %cst_1, %46 : f32
    %58 = arith.addf %cst_2, %54 : f32
    %c1_i32 = arith.constant 1 : i32
    %59 = arith.index_cast %c1_i32 : i32 to index
    %c0_20 = arith.constant 0 : index
    %c0_21 = arith.constant 0 : index
    %60 = vector.load %arg1[%59, %c0_20, %c0_21] : memref<2x32x256xf32, #tpu.memory_space<vmem>>, vector<1x32x256xf32>
    %61 = vector.shape_cast %60 : vector<1x32x256xf32> to vector<32x256xf32>
    %62 = arith.index_cast %c1_i32 : i32 to index
    %c0_22 = arith.constant 0 : index
    %c0_23 = arith.constant 0 : index
    %63 = vector.load %arg2[%62, %c0_22, %c0_23] : memref<2x8x256xf32, #tpu.memory_space<vmem>>, vector<1x8x256xf32>
    %64 = vector.shape_cast %63 : vector<1x8x256xf32> to vector<8x256xf32>
    %65 = arith.mulf %61, %61 : vector<32x256xf32>
    %cst_24 = arith.constant dense<0.000000e+00> : vector<256xf32>
    %66 = vector.multi_reduction <add>, %65, %cst_24 [0] : vector<32x256xf32> to vector<256xf32>
    %67 = vector.shape_cast %66 : vector<256xf32> to vector<1x256xf32>
    %68 = math.sqrt %67 : vector<1x256xf32>
    %cst_25 = arith.constant 9.99999996E-13 : f32
    %69 = vector.broadcast %cst_25 : f32 to vector<1x256xf32>
    %70 = arith.maximumf %68, %69 : vector<1x256xf32>
    %cst_26 = arith.constant 1.000000e+00 : f32
    %71 = vector.broadcast %cst_26 : f32 to vector<1x256xf32>
    %72 = arith.divf %71, %70 : vector<1x256xf32>
    %73 = vector.broadcast %72 : vector<1x256xf32> to vector<32x256xf32>
    %74 = arith.mulf %61, %73 : vector<32x256xf32>
    %cst_27 = arith.constant dense<0.000000e+00> : vector<256x256xf32>
    %75 = tpu.matmul %74, %74, %cst_27 {dimension_numbers = #tpu.dot_dimension_numbers<[0], [0], [1], [1], [0, 1, 1, 1], [], []>} : vector<32x256xf32>, vector<32x256xf32>, vector<256x256xf32> -> vector<256x256xf32>
    %cst_28 = arith.constant 3.000000e-01 : f32
    %76 = vector.broadcast %cst_28 : f32 to vector<256x256xf32>
    %77 = arith.subf %75, %76 : vector<256x256xf32>
    %78 = math.exp %64 : vector<8x256xf32>
    %79 = arith.mulf %78, %64 : vector<8x256xf32>
    %cst_29 = arith.constant dense<0.000000e+00> : vector<256xf32>
    %80 = vector.multi_reduction <add>, %79, %cst_29 [0] : vector<8x256xf32> to vector<256xf32>
    %81 = vector.shape_cast %80 : vector<256xf32> to vector<1x256xf32>
    %82 = arith.truncf %64 : vector<8x256xf32> to vector<8x256xbf16>
    %83 = arith.truncf %78 : vector<8x256xf32> to vector<8x256xbf16>
    %cst_30 = arith.constant dense<0.000000e+00> : vector<256x256xf32>
    %84 = tpu.matmul %82, %83, %cst_30 {dimension_numbers = #tpu.dot_dimension_numbers<[0], [0], [1], [1], [0, 1, 1, 1], [], []>} : vector<8x256xbf16>, vector<8x256xbf16>, vector<256x256xf32> -> vector<256x256xf32>
    %85 = vector.broadcast %81 : vector<1x256xf32> to vector<256x256xf32>
    %86 = arith.subf %85, %84 : vector<256x256xf32>
    %87 = arith.mulf %77, %86 : vector<256x256xf32>
    %cst_31 = arith.constant 0.000000e+00 : f32
    %88 = vector.broadcast %cst_31 : f32 to vector<256x256xf32>
    %89 = arith.cmpf ogt, %77, %88 : vector<256x256xf32>
    %cst_32 = arith.constant 0.000000e+00 : f32
    %90 = vector.broadcast %cst_32 : f32 to vector<256x256xf32>
    %91 = arith.select %89, %87, %90 : vector<256x256xi1>, vector<256x256xf32>
    %92 = vector.shape_cast %91 : vector<256x256xf32> to vector<1x256x256xf32>
    %cst_33 = arith.constant dense<0.000000e+00> : vector<1xf32>
    %93 = vector.multi_reduction <add>, %92, %cst_33 [1, 2] : vector<1x256x256xf32> to vector<1xf32>
    %94 = vector.shape_cast %93 : vector<1xf32> to vector<1x1x1xf32>
    %95 = vector.extract %94[0, 0, 0] : f32 from vector<1x1x1xf32>
    %96 = vector.shape_cast %87 : vector<256x256xf32> to vector<1x256x256xf32>
    %cst_34 = arith.constant dense<0.000000e+00> : vector<1xf32>
    %97 = vector.multi_reduction <add>, %96, %cst_34 [1, 2] : vector<1x256x256xf32> to vector<1xf32>
    %98 = vector.shape_cast %97 : vector<1xf32> to vector<1x1x1xf32>
    %99 = vector.extract %98[0, 0, 0] : f32 from vector<1x1x1xf32>
    %100 = arith.extui %89 : vector<256x256xi1> to vector<256x256xi32>
    %101 = arith.sitofp %100 : vector<256x256xi32> to vector<256x256xf32>
    %102 = vector.shape_cast %101 : vector<256x256xf32> to vector<1x256x256xf32>
    %cst_35 = arith.constant dense<0.000000e+00> : vector<1xf32>
    %103 = vector.multi_reduction <add>, %102, %cst_35 [1, 2] : vector<1x256x256xf32> to vector<1xf32>
    %104 = vector.shape_cast %103 : vector<1xf32> to vector<1x1x1xf32>
    %105 = vector.extract %104[0, 0, 0] : f32 from vector<1x1x1xf32>
    %cst_36 = arith.constant 0.000000e+00 : f32
    %106 = vector.broadcast %cst_36 : f32 to vector<256x256xf32>
    %107 = arith.cmpf olt, %77, %106 : vector<256x256xf32>
    %108 = arith.extui %107 : vector<256x256xi1> to vector<256x256xi32>
    %109 = arith.sitofp %108 : vector<256x256xi32> to vector<256x256xf32>
    %110 = vector.shape_cast %109 : vector<256x256xf32> to vector<1x256x256xf32>
    %cst_37 = arith.constant dense<0.000000e+00> : vector<1xf32>
    %111 = vector.multi_reduction <add>, %110, %cst_37 [1, 2] : vector<1x256x256xf32> to vector<1xf32>
    %112 = vector.shape_cast %111 : vector<1xf32> to vector<1x1x1xf32>
    %113 = vector.extract %112[0, 0, 0] : f32 from vector<1x1x1xf32>
    %114 = arith.addf %55, %95 : f32
    %115 = arith.addf %56, %99 : f32
    %116 = arith.addf %57, %105 : f32
    %117 = arith.addf %58, %113 : f32
    %c2_i32 = arith.constant 2 : i32
    %118 = arith.subf %115, %114 : f32
    %119 = tpu.iota {dimensions = array<i32: 0>} : vector<8x128xi32>
    %c0_i32_38 = arith.constant 0 : i32
    %120 = vector.broadcast %c0_i32_38 : i32 to vector<8x128xi32>
    %121 = arith.cmpi eq, %119, %120 : vector<8x128xi32>
    %c1_i32_39 = arith.constant 1 : i32
    %122 = vector.broadcast %c1_i32_39 : i32 to vector<8x128xi32>
    %123 = arith.cmpi eq, %119, %122 : vector<8x128xi32>
    %c2_i32_40 = arith.constant 2 : i32
    %124 = vector.broadcast %c2_i32_40 : i32 to vector<8x128xi32>
    %125 = arith.cmpi eq, %119, %124 : vector<8x128xi32>
    %c3_i32 = arith.constant 3 : i32
    %126 = vector.broadcast %c3_i32 : i32 to vector<8x128xi32>
    %127 = arith.cmpi eq, %119, %126 : vector<8x128xi32>
    %cst_41 = arith.constant 0.000000e+00 : f32
    %128 = vector.broadcast %117 : f32 to vector<8x128xf32>
    %129 = vector.broadcast %cst_41 : f32 to vector<8x128xf32>
    %130 = arith.select %127, %128, %129 : vector<8x128xi1>, vector<8x128xf32>
    %131 = vector.broadcast %116 : f32 to vector<8x128xf32>
    %132 = arith.select %125, %131, %130 : vector<8x128xi1>, vector<8x128xf32>
    %133 = vector.broadcast %118 : f32 to vector<8x128xf32>
    %134 = arith.select %123, %133, %132 : vector<8x128xi1>, vector<8x128xf32>
    %135 = vector.broadcast %114 : f32 to vector<8x128xf32>
    %136 = arith.select %121, %135, %134 : vector<8x128xi1>, vector<8x128xf32>
    %c0_42 = arith.constant 0 : index
    %c0_43 = arith.constant 0 : index
    %c0_44 = arith.constant 0 : index
    %137 = vector.load %arg3[%c0_42, %c0_43, %c0_44] : memref<1x8x128xf32, #tpu.memory_space<vmem>>, vector<1x8x128xf32>
    %138 = vector.shape_cast %137 : vector<1x8x128xf32> to vector<8x128xf32>
    %139 = vector.shape_cast %136 : vector<8x128xf32> to vector<1x8x128xf32>
    tpu.vector_store %arg3[%c0_42, %c0_43, %c0_44], %139 {strides = array<i32>} : memref<1x8x128xf32, #tpu.memory_space<vmem>>, vector<1x8x128xf32>,
    return
  }
  func.func @transform_0(%arg0: i32) -> (i32, i32, i32) {
    %c0_i32 = arith.constant 0 : i32
    %c0_i32_0 = arith.constant 0 : i32
    %c0_i32_1 = arith.constant 0 : i32
    return %arg0, %c0_i32, %c0_i32_0 : i32, i32, i32
  }
  func.func @transform_1(%arg0: i32) -> (i32, i32, i32) {
    %c0_i32 = arith.constant 0 : i32
    %c0_i32_0 = arith.constant 0 : i32
    %c0_i32_1 = arith.constant 0 : i32
    return %arg0, %c0_i32, %c0_i32_0 : i32, i32, i32
  }
  func.func @transform_2(%arg0: i32) -> (i32, i32, i32) {
    %c0_i32 = arith.constant 0 : i32
    %c0_i32_0 = arith.constant 0 : i32
    %c0_i32_1 = arith.constant 0 : i32
    return %arg0, %c0_i32, %c0_i32_0 : i32, i32, i32
  }
}

</mosaic_0001>

<llo_original>
// kernel: tpu_custom_call.1
$region0: #{tpu_custom_call.1}
  #allocation0 [shape = 'u32[]', space=smem, size = 0x4, offset = 0x4, fixed_abs, tag = 'smem constant byte address 0x4 - core index']
  #allocation1 [shape = 'u32[144,128]{1,0:T(1,128)}', space=vmem, size = 0x12000, scoped, tag = 'internal scratch']
  %s0 = inlined_call_operand.hbm [shape: f32[2,32,256], index: 0, kind: input, shape index: {}]
  %s1 = inlined_call_operand.hbm [shape: f32[2,8,256], index: 1, kind: input, shape index: {}]
  %s2 = inlined_call_operand.hbm [shape: f32[1,8,128], index: 2, kind: output, shape index: {}]
  %s3 = sld [smem:[#allocation0]]
  $region26: #{tpu_custom_call.1} parent=0
    _
  %s5 = ssub.s32 1, %s3
  %s6 = scalar_select 0, %s5, %s3
  $region1: #{tpu_custom_call.1} parent=0
    #allocation2 [shape = 'u8[65536]{0}', space=vmem, size = 0x10000, scoped, tag = 'input window, operand 0, single buffered']
    #allocation3 [shape = 's32[1]{0}', space=sflag, size = 0x4, scoped, tag = 'scoped memory for tpu_custom_call.1']
    #allocation4 [shape = 's32[1]{0}', space=sflag, size = 0x4, scoped, tag = 'scoped memory for tpu_custom_call.1']
    #allocation5 [shape = 'u8[16384]{0}', space=vmem, size = 0x4000, scoped, tag = 'input window, operand 1, single buffered']
    #allocation6 [shape = 's32[1]{0}', space=sflag, size = 0x4, scoped, tag = 'scoped memory for tpu_custom_call.1']
    #allocation7 [shape = 'u8[4096]{0}', space=vmem, size = 0x1000, scoped, tag = 'output window, operand 0, single buffered']
    %7 = vsyncpa [#allocation3], 0
    %8 = vsyncpa [#allocation6], 0
    %9 = vsyncpa [#allocation4], 0
    // Predicated region
    $region2: #{tpu_custom_call.1} parent=1 // pred_check
      _
    $region3: #{tpu_custom_call.1} parent=1 // pred_check_branch
      %11 = sbr.rel (0) target = $region5
    $region4: #{tpu_custom_call.1} parent=1 // pred_region
      %s13 = ssub.s32 2048, 2048
      %14 = vsyncadd [#allocation3], %s13
      %s15 = sshll.u32 [#allocation2], 4
      %s16 = int_to_ptr.vmem [resolvable:$true] %s15
      %21 = dma.hbm_to_vmem [thread:$0]  %s0, 2048, %s16, [#allocation3], 256, 256, 16
    $region5: #{tpu_custom_call.1} parent=1 // pred_fallthru
      _
    // Predicated region
    $region6: #{tpu_custom_call.1} parent=1 // pred_check
      _
    $region7: #{tpu_custom_call.1} parent=1 // pred_check_branch
      %23 = sbr.rel (0) target = $region9
    $region8: #{tpu_custom_call.1} parent=1 // pred_region
      %s25 = ssub.s32 512, 512
      %26 = vsyncadd [#allocation6], %s25
      %s27 = sshll.u32 [#allocation5], 4
      %s28 = int_to_ptr.vmem [resolvable:$true] %s27
      %33 = dma.hbm_to_vmem [thread:$0]  %s1, 512, %s28, [#allocation6], 256, 256, 16
    $region9: #{tpu_custom_call.1} parent=1 // pred_fallthru
      _
    // Predicated region
    $region10: #{tpu_custom_call.1} parent=1 // pred_check
      _
    $region11: #{tpu_custom_call.1} parent=1 // pred_check_branch
      %35 = sbr.rel (0) target = $region13
    $region12: #{tpu_custom_call.1} parent=1 // pred_region
      %36 = dma.done [#allocation3], 2048
    $region13: #{tpu_custom_call.1} parent=1 // pred_fallthru
      _
    // Predicated region
    $region14: #{tpu_custom_call.1} parent=1 // pred_check
      _
    $region15: #{tpu_custom_call.1} parent=1 // pred_check_branch
      %38 = sbr.rel (0) target = $region17
    $region16: #{tpu_custom_call.1} parent=1 // pred_region
      %39 = dma.done [#allocation6], 512
    $region17: #{tpu_custom_call.1} parent=1 // pred_fallthru
      _
    %v41 = vld [vmem:[#allocation2] sm:$0xff]
    %v42 = vld [vmem:[#allocation2 + $0x8] sm:$0xff]
    %v43 = vld [vmem:[#allocation2 + $0x10] sm:$0xff]
    %v44 = vld [vmem:[#allocation2 + $0x18] sm:$0xff]
    %v45 = vld [vmem:[#allocation2 + $0x20] sm:$0xff]
    %v46 = vld [vmem:[#allocation2 + $0x28] sm:$0xff]
    %v47 = vld [vmem:[#allocation2 + $0x30] sm:$0xff]
    %v48 = vld [vmem:[#allocation2 + $0x38] sm:$0xff]
    %v49 = vld [vmem:[#allocation5] sm:$0xff]
    %v50 = vld [vmem:[#allocation5 + $0x8] sm:$0xff]
    %v51 = vmul.f32 %v41, %v41
    %v52 = vmul.f32 %v42, %v42
    %v53 = vmul.f32 %v43, %v43
    %v54 = vmul.f32 %v44, %v44
    %v55 = vmul.f32 %v45, %v45
    %v56 = vmul.f32 %v46, %v46
    %v57 = vmul.f32 %v47, %v47
    %v58 = vmul.f32 %v48, %v48
    %v59 = vadd.f32 %v51, %v53
    %v60 = vadd.f32 %v59, %v55
    %v61 = vadd.f32 %v60, %v57
    %v62 = vrot.slane %v61, 4
    %v63 = vadd.f32 %v61, %v62
    %v64 = vrot.slane %v63, 2
    %v65 = vadd.f32 %v63, %v64
    %v66 = vrot.slane %v65, 1
    %v67 = vadd.f32 %v65, %v66
    %v68 = vadd.f32 %v52, %v54
    %v69 = vadd.f32 %v68, %v56
    %v70 = vadd.f32 %v69, %v58
    %v71 = vrot.slane %v70, 4
    %v72 = vadd.f32 %v70, %v71
    %v73 = vrot.slane %v72, 2
    %v74 = vadd.f32 %v72, %v73
    %v75 = vrot.slane %v74, 1
    %v76 = vadd.f32 %v74, %v75
    %v77 = vrsqrt.pop %v67
    %v78 = vmul.f32 %v67, %v77
    %vm79 = vcmp.eq.f32.partialorder %v67, inf
    %v80 = vsel %vm79, %v67, %v78
    %vm81 = vcmp.eq.f32.partialorder %v67, 0.0
    %v82 = vand.u32 %v67, 2147483648
    %v83 = vsel %vm81, %v82, %v80
    %v84 = vrsqrt.pop %v76
    %v85 = vmul.f32 %v76, %v84
    %vm86 = vcmp.eq.f32.partialorder %v76, inf
    %v87 = vsel %vm86, %v76, %v85
    %vm88 = vcmp.eq.f32.partialorder %v76, 0.0
    %v89 = vand.u32 %v76, 2147483648
    %v90 = vsel %vm88, %v89, %v87
    %v91 = vmax.f32 %v83, 1e-12
    %v92 = vmax.f32 %v90, 1e-12
    %v93 = vrcp.pop %v91
    %v94 = vmul.f32 1.0, %v93
    %v95 = vrcp.pop %v92
    %v96 = vmul.f32 1.0, %v95
    %v97 = vmul.f32 %v41, %v94
    %v98 = vmul.f32 %v42, %v96
    %v99 = vmul.f32 %v43, %v94
    %v100 = vmul.f32 %v44, %v96
    %v101 = vmul.f32 %v45, %v94
    %v102 = vmul.f32 %v46, %v96
    %v103 = vmul.f32 %v47, %v94
    %v104 = vmul.f32 %v48, %v96
    %105 = vxpose.xlu0.b32.start [1/16] %v97, 128
    %106 = vxpose.xlu0.b32.cont [2/16] %v99, 128
    %107 = vxpose.xlu0.b32.cont [3/16] %v101, 128
    %108 = vxpose.xlu0.b32.cont [4/16] %v103, 128
    %109 = vxpose.xlu0.b32.cont [5/16] 0.0, 128
    %110 = vxpose.xlu0.b32.cont [6/16] 0.0, 128
    %111 = vxpose.xlu0.b32.cont [7/16] 0.0, 128
    %112 = vxpose.xlu0.b32.cont [8/16] 0.0, 128
    %113 = vxpose.xlu0.b32.cont [9/16] 0.0, 128
    %114 = vxpose.xlu0.b32.cont [10/16] 0.0, 128
    %115 = vxpose.xlu0.b32.cont [11/16] 0.0, 128
    %116 = vxpose.xlu0.b32.cont [12/16] 0.0, 128
    %117 = vxpose.xlu0.b32.cont [13/16] 0.0, 128
    %118 = vxpose.xlu0.b32.cont [14/16] 0.0, 128
    %119 = vxpose.xlu0.b32.cont [15/16] 0.0, 128
    %120 = vxpose.xlu0.b32.end [16/16] 0.0, 128
    %v121 = vpop.trf.xlu0
    %v122 = vpop.trf.xlu0
    %v123 = vpop.trf.xlu0
    %v124 = vpop.trf.xlu0
    %v125 = vpop.trf.xlu0
    %v126 = vpop.trf.xlu0
    %v127 = vpop.trf.xlu0
    %v128 = vpop.trf.xlu0
    %v129 = vpop.trf.xlu0
    %v130 = vpop.trf.xlu0
    %v131 = vpop.trf.xlu0
    %v132 = vpop.trf.xlu0
    %v133 = vpop.trf.xlu0
    %v134 = vpop.trf.xlu0
    %v135 = vpop.trf.xlu0
    %v136 = vpop.trf.xlu0
    %137 = vxpose.xlu0.b32.start [1/16] %v98, 128
    %138 = vxpose.xlu0.b32.cont [2/16] %v100, 128
    %139 = vxpose.xlu0.b32.cont [3/16] %v102, 128
    %140 = vxpose.xlu0.b32.cont [4/16] %v104, 128
    %141 = vxpose.xlu0.b32.cont [5/16] 0.0, 128
    %142 = vxpose.xlu0.b32.cont [6/16] 0.0, 128
    %143 = vxpose.xlu0.b32.cont [7/16] 0.0, 128
    %144 = vxpose.xlu0.b32.cont [8/16] 0.0, 128
    %145 = vxpose.xlu0.b32.cont [9/16] 0.0, 128
    %146 = vxpose.xlu0.b32.cont [10/16] 0.0, 128
    %147 = vxpose.xlu0.b32.cont [11/16] 0.0, 128
    %148 = vxpose.xlu0.b32.cont [12/16] 0.0, 128
    %149 = vxpose.xlu0.b32.cont [13/16] 0.0, 128
    %150 = vxpose.xlu0.b32.cont [14/16] 0.0, 128
    %151 = vxpose.xlu0.b32.cont [15/16] 0.0, 128
    %152 = vxpose.xlu0.b32.end [16/16] 0.0, 128
    %v153 = vpop.trf.xlu0
    %v154 = vpop.trf.xlu0
    %v155 = vpop.trf.xlu0
    %v156 = vpop.trf.xlu0
    %v157 = vpop.trf.xlu0
    %v158 = vpop.trf.xlu0
    %v159 = vpop.trf.xlu0
    %v160 = vpop.trf.xlu0
    %v161 = vpop.trf.xlu0
    %v162 = vpop.trf.xlu0
    %v163 = vpop.trf.xlu0
    %v164 = vpop.trf.xlu0
    %v165 = vpop.trf.xlu0
    %v166 = vpop.trf.xlu0
    %v167 = vpop.trf.xlu0
    %v168 = vpop.trf.xlu0
    %vm169 = vcmask 261120
    %v171 = vsel %vm169, %v121, 0
    %v174 = vsel %vm169, %v122, 0
    %v177 = vsel %vm169, %v123, 0
    %v180 = vsel %vm169, %v124, 0
    %v183 = vsel %vm169, %v125, 0
    %v186 = vsel %vm169, %v126, 0
    %v189 = vsel %vm169, %v127, 0
    %v192 = vsel %vm169, %v128, 0
    %v195 = vsel %vm169, %v129, 0
    %v198 = vsel %vm169, %v130, 0
    %v201 = vsel %vm169, %v131, 0
    %v204 = vsel %vm169, %v132, 0
    %v207 = vsel %vm169, %v133, 0
    %v210 = vsel %vm169, %v134, 0
    %v213 = vsel %vm169, %v135, 0
    %v216 = vsel %vm169, %v136, 0
    %v219 = vsel %vm169, %v153, 0
    %v222 = vsel %vm169, %v154, 0
    %v225 = vsel %vm169, %v155, 0
    %v228 = vsel %vm169, %v156, 0
    %v231 = vsel %vm169, %v157, 0
    %v234 = vsel %vm169, %v158, 0
    %v237 = vsel %vm169, %v159, 0
    %v240 = vsel %vm169, %v160, 0
    %v243 = vsel %vm169, %v161, 0
    %v246 = vsel %vm169, %v162, 0
    %v249 = vsel %vm169, %v163, 0
    %v252 = vsel %vm169, %v164, 0
    %v255 = vsel %vm169, %v165, 0
    %v258 = vsel %vm169, %v166, 0
    %v261 = vsel %vm169, %v167, 0
    %v264 = vsel %vm169, %v168, 0
    %266 = vmatprep.subr.mxu0 %v98
    %267 = vmatpush1.msra.mxu0 %v97
    %268 = vmatprep.subr.mxu0 %v100
    %269 = vmatpush1.msra.mxu0 %v99
    %270 = vmatprep.subr.mxu0 %v102
    %271 = vmatpush1.msra.mxu0 %v101
    %272 = vmatprep.subr.mxu0 %v104
    %273 = vmatpush1.msra.mxu0 %v103
    %274 = vmatprep.subr.mxu0 0.0
    %275 = vmatpush1.msra.mxu0 0.0
    %276 = vmatprep.subr.mxu0 0.0
    %277 = vmatpush1.msra.mxu0 0.0
    %278 = vmatprep.subr.mxu0 0.0
    %279 = vmatpush1.msra.mxu0 0.0
    %280 = vmatprep.subr.mxu0 0.0
    %281 = vmatpush1.msra.mxu0 0.0
    %282 = vmatprep.subr.mxu0 0.0
    %283 = vmatpush1.msra.mxu0 0.0
    %284 = vmatprep.subr.mxu0 0.0
    %285 = vmatpush1.msra.mxu0 0.0
    %286 = vmatprep.subr.mxu0 0.0
    %287 = vmatpush1.msra.mxu0 0.0
    %288 = vmatprep.subr.mxu0 0.0
    %289 = vmatpush1.msra.mxu0 0.0
    %290 = vmatprep.subr.mxu0 0.0
    %291 = vmatpush1.msra.mxu0 0.0
    %292 = vmatprep.subr.mxu0 0.0
    %293 = vmatpush1.msra.mxu0 0.0
    %294 = vmatprep.subr.mxu0 0.0
    %295 = vmatpush1.msra.mxu0 0.0
    %296 = vmatprep.subr.mxu0 0.0
    %297 = vmatpush1.msra.mxu0 0.0
    %298 = vmatprep.subr.mxu0 0.0
    %299 = vmatpush1.msra.mxu0 0.0
    %300 = vmatprep.subr.mxu0 0.0
    %301 = vmatpush1.msra.mxu0 0.0
    %302 = vmatprep.subr.mxu0 0.0
    %303 = vmatpush1.msra.mxu0 0.0
    %304 = vmatprep.subr.mxu0 0.0
    %305 = vmatpush1.msra.mxu0 0.0
    %306 = vmatprep.subr.mxu0 0.0
    %307 = vmatpush1.msra.mxu0 0.0
    %308 = vmatprep.subr.mxu0 0.0
    %309 = vmatpush1.msra.mxu0 0.0
    %310 = vmatprep.subr.mxu0 0.0
    %311 = vmatpush1.msra.mxu0 0.0
    %312 = vmatprep.subr.mxu0 0.0
    %313 = vmatpush1.msra.mxu0 0.0
    %314 = vmatprep.subr.mxu0 0.0
    %315 = vmatpush1.msra.mxu0 0.0
    %316 = vmatprep.subr.mxu0 0.0
    %317 = vmatpush1.msra.mxu0 0.0
    %318 = vmatprep.subr.mxu0 0.0
    %319 = vmatpush1.msra.mxu0 0.0
    %320 = vmatprep.subr.mxu0 0.0
    %321 = vmatpush1.msra.mxu0 0.0
    %322 = vmatprep.subr.mxu0 0.0
    %323 = vmatpush1.msra.mxu0 0.0
    %324 = vmatprep.subr.mxu0 0.0
    %325 = vmatpush1.msra.mxu0 0.0
    %326 = vmatprep.subr.mxu0 0.0
    %327 = vmatpush1.msra.mxu0 0.0
    %328 = vmatprep.subr.mxu0 0.0
    %329 = vmatpush1.msra.mxu0 0.0
    %330 = vmatprep.mubr.f32.mxu0 0.0
    %331 = vmatmul.mubr.f32.gmra.mrb[0].mxu0 %v171
    %v332 = vpop.f32.mrb[0].mxu0
    %v333 = vadd.f32 0.0, %v332
    %v334 = vpop.f32.mrb[0].mxu0
    %v335 = vadd.f32 0.0, %v334
    %336 = vmatprep.mubr.f32.mxu0 0.0
    %337 = vmatmul.mubr.f32.gmra.mrb[0].mxu0 %v174
    %v338 = vpop.f32.mrb[0].mxu0
    %v339 = vadd.f32 0.0, %v338
    %v340 = vpop.f32.mrb[0].mxu0
    %v341 = vadd.f32 0.0, %v340
    %342 = vmatprep.mubr.f32.mxu0 0.0
    %343 = vmatmul.mubr.f32.gmra.mrb[0].mxu0 %v177
    %v344 = vpop.f32.mrb[0].mxu0
    %v345 = vadd.f32 0.0, %v344
    %v346 = vpop.f32.mrb[0].mxu0
    %v347 = vadd.f32 0.0, %v346
    %348 = vmatprep.mubr.f32.mxu0 0.0
    %349 = vmatmul.mubr.f32.gmra.mrb[0].mxu0 %v180
    %v350 = vpop.f32.mrb[0].mxu0
    %v351 = vadd.f32 0.0, %v350
    %v352 = vpop.f32.mrb[0].mxu0
    %v353 = vadd.f32 0.0, %v352
    %354 = vmatprep.mubr.f32.mxu0 0.0
    %355 = vmatmul.mubr.f32.gmra.mrb[0].mxu0 %v183
    %v356 = vpop.f32.mrb[0].mxu0
    %v357 = vadd.f32 0.0, %v356
    %v358 = vpop.f32.mrb[0].mxu0
    %v359 = vadd.f32 0.0, %v358
    %360 = vmatprep.mubr.f32.mxu0 0.0
    %361 = vmatmul.mubr.f32.gmra.mrb[0].mxu0 %v186
    %v362 = vpop.f32.mrb[0].mxu0
    %v363 = vadd.f32 0.0, %v362
    %v364 = vpop.f32.mrb[0].mxu0
    %v365 = vadd.f32 0.0, %v364
    %366 = vmatprep.mubr.f32.mxu0 0.0
    %367 = vmatmul.mubr.f32.gmra.mrb[0].mxu0 %v189
    %v368 = vpop.f32.mrb[0].mxu0
    %v369 = vadd.f32 0.0, %v368
    %v370 = vpop.f32.mrb[0].mxu0
    %v371 = vadd.f32 0.0, %v370
    %372 = vmatprep.mubr.f32.mxu0 0.0
    %373 = vmatmul.mubr.f32.gmra.mrb[0].mxu0 %v192
    %v374 = vpop.f32.mrb[0].mxu0
    %v375 = vadd.f32 0.0, %v374
    %v376 = vpop.f32.mrb[0].mxu0
    %v377 = vadd.f32 0.0, %v376
    %378 = vmatprep.mubr.f32.mxu0 0.0
    %379 = vmatmul.mubr.f32.gmra.mrb[0].mxu0 %v195
    %v380 = vpop.f32.mrb[0].mxu0
    %v381 = vadd.f32 0.0, %v380
    %v382 = vpop.f32.mrb[0].mxu0
    %v383 = vadd.f32 0.0, %v382
    %384 = vmatprep.mubr.f32.mxu0 0.0
    %385 = vmatmul.mubr.f32.gmra.mrb[0].mxu0 %v198
    %v386 = vpop.f32.mrb[0].mxu0
    %v387 = vadd.f32 0.0, %v386
    %v388 = vpop.f32.mrb[0].mxu0
    %v389 = vadd.f32 0.0, %v388
    %390 = vmatprep.mubr.f32.mxu0 0.0
    %391 = vmatmul.mubr.f32.gmra.mrb[0].mxu0 %v201
    %v392 = vpop.f32.mrb[0].mxu0
    %v393 = vadd.f32 0.0, %v392
    %v394 = vpop.f32.mrb[0].mxu0
    %v395 = vadd.f32 0.0, %v394
    %396 = vmatprep.mubr.f32.mxu0 0.0
    %397 = vmatmul.mubr.f32.gmra.mrb[0].mxu0 %v204
    %v398 = vpop.f32.mrb[0].mxu0
    %v399 = vadd.f32 0.0, %v398
    %v400 = vpop.f32.mrb[0].mxu0
    %v401 = vadd.f32 0.0, %v400
    %402 = vmatprep.mubr.f32.mxu0 0.0
    %403 = vmatmul.mubr.f32.gmra.mrb[0].mxu0 %v207
    %v404 = vpop.f32.mrb[0].mxu0
    %v405 = vadd.f32 0.0, %v404
    %v406 = vpop.f32.mrb[0].mxu0
    %v407 = vadd.f32 0.0, %v406
    %408 = vmatprep.mubr.f32.mxu0 0.0
    %409 = vmatmul.mubr.f32.gmra.mrb[0].mxu0 %v210
    %v410 = vpop.f32.mrb[0].mxu0
    %v411 = vadd.f32 0.0, %v410
    %v412 = vpop.f32.mrb[0].mxu0
    %v413 = vadd.f32 0.0, %v412
    %414 = vmatprep.mubr.f32.mxu0 0.0
    %415 = vmatmul.mubr.f32.gmra.mrb[0].mxu0 %v213
    %v416 = vpop.f32.mrb[0].mxu0
    %v417 = vadd.f32 0.0, %v416
    %v418 = vpop.f32.mrb[0].mxu0
    %v419 = vadd.f32 0.0, %v418
    %420 = vmatprep.mubr.f32.mxu0 0.0
    %421 = vmatmul.mubr.f32.gmra.mrb[0].mxu0 %v216
    %v422 = vpop.f32.mrb[0].mxu0
    %v423 = vadd.f32 0.0, %v422
    %v424 = vpop.f32.mrb[0].mxu0
    %v425 = vadd.f32 0.0, %v424
    %426 = vmatprep.mubr.f32.mxu0 0.0
    %427 = vmatmul.mubr.f32.gmra.mrb[0].mxu0 %v219
    %v428 = vpop.f32.mrb[0].mxu0
    %v429 = vadd.f32 0.0, %v428
    %v430 = vpop.f32.mrb[0].mxu0
    %v431 = vadd.f32 0.0, %v430
    %432 = vmatprep.mubr.f32.mxu0 0.0
    %433 = vmatmul.mubr.f32.gmra.mrb[0].mxu0 %v222
    %v434 = vpop.f32.mrb[0].mxu0
    %v435 = vadd.f32 0.0, %v434
    %v436 = vpop.f32.mrb[0].mxu0
    %v437 = vadd.f32 0.0, %v436
    %438 = vmatprep.mubr.f32.mxu0 0.0
    %439 = vmatmul.mubr.f32.gmra.mrb[0].mxu0 %v225
    %v440 = vpop.f32.mrb[0].mxu0
    %v441 = vadd.f32 0.0, %v440
    %v442 = vpop.f32.mrb[0].mxu0
    %v443 = vadd.f32 0.0, %v442
    %444 = vmatprep.mubr.f32.mxu0 0.0
    %445 = vmatmul.mubr.f32.gmra.mrb[0].mxu0 %v228
    %v446 = vpop.f32.mrb[0].mxu0
    %v447 = vadd.f32 0.0, %v446
    %v448 = vpop.f32.mrb[0].mxu0
    %v449 = vadd.f32 0.0, %v448
    %450 = vmatprep.mubr.f32.mxu0 0.0
    %451 = vmatmul.mubr.f32.gmra.mrb[0].mxu0 %v231
    %v452 = vpop.f32.mrb[0].mxu0
    %v453 = vadd.f32 0.0, %v452
    %v454 = vpop.f32.mrb[0].mxu0
    %v455 = vadd.f32 0.0, %v454
    %456 = vmatprep.mubr.f32.mxu0 0.0
    %457 = vmatmul.mubr.f32.gmra.mrb[0].mxu0 %v234
    %v458 = vpop.f32.mrb[0].mxu0
    %v459 = vadd.f32 0.0, %v458
    %v460 = vpop.f32.mrb[0].mxu0
    %v461 = vadd.f32 0.0, %v460
    %462 = vmatprep.mubr.f32.mxu0 0.0
    %463 = vmatmul.mubr.f32.gmra.mrb[0].mxu0 %v237
    %v464 = vpop.f32.mrb[0].mxu0
    %v465 = vadd.f32 0.0, %v464
    %v466 = vpop.f32.mrb[0].mxu0
    %v467 = vadd.f32 0.0, %v466
    %468 = vmatprep.mubr.f32.mxu0 0.0
    %469 = vmatmul.mubr.f32.gmra.mrb[0].mxu0 %v240
    %v470 = vpop.f32.mrb[0].mxu0
    %v471 = vadd.f32 0.0, %v470
    %v472 = vpop.f32.mrb[0].mxu0
    %v473 = vadd.f32 0.0, %v472
    %474 = vmatprep.mubr.f32.mxu0 0.0
    %475 = vmatmul.mubr.f32.gmra.mrb[0].mxu0 %v243
    %v476 = vpop.f32.mrb[0].mxu0
    %v477 = vadd.f32 0.0, %v476
    %v478 = vpop.f32.mrb[0].mxu0
    %v479 = vadd.f32 0.0, %v478
    %480 = vmatprep.mubr.f32.mxu0 0.0
    %481 = vmatmul.mubr.f32.gmra.mrb[0].mxu0 %v246
    %v482 = vpop.f32.mrb[0].mxu0
    %v483 = vadd.f32 0.0, %v482
    %v484 = vpop.f32.mrb[0].mxu0
    %v485 = vadd.f32 0.0, %v484
    %486 = vmatprep.mubr.f32.mxu0 0.0
    %487 = vmatmul.mubr.f32.gmra.mrb[0].mxu0 %v249
    %v488 = vpop.f32.mrb[0].mxu0
    %v489 = vadd.f32 0.0, %v488
    %v490 = vpop.f32.mrb[0].mxu0
    %v491 = vadd.f32 0.0, %v490
    %492 = vmatprep.mubr.f32.mxu0 0.0
    %493 = vmatmul.mubr.f32.gmra.mrb[0].mxu0 %v252
    %v494 = vpop.f32.mrb[0].mxu0
    %v495 = vadd.f32 0.0, %v494
    %v496 = vpop.f32.mrb[0].mxu0
    %v497 = vadd.f32 0.0, %v496
    %498 = vmatprep.mubr.f32.mxu0 0.0
    %499 = vmatmul.mubr.f32.gmra.mrb[0].mxu0 %v255
    %v500 = vpop.f32.mrb[0].mxu0
    %v501 = vadd.f32 0.0, %v500
    %v502 = vpop.f32.mrb[0].mxu0
    %v503 = vadd.f32 0.0, %v502
    %504 = vmatprep.mubr.f32.mxu0 0.0
    %505 = vmatmul.mubr.f32.gmra.mrb[0].mxu0 %v258
    %v506 = vpop.f32.mrb[0].mxu0
    %v507 = vadd.f32 0.0, %v506
    %v508 = vpop.f32.mrb[0].mxu0
    %v509 = vadd.f32 0.0, %v508
    %510 = vmatprep.mubr.f32.mxu0 0.0
    %511 = vmatmul.mubr.f32.gmra.mrb[0].mxu0 %v261
    %v512 = vpop.f32.mrb[0].mxu0
    %v513 = vadd.f32 0.0, %v512
    %v514 = vpop.f32.mrb[0].mxu0
    %v515 = vadd.f32 0.0, %v514
    %516 = vmatprep.mubr.f32.mxu0 0.0
    %517 = vmatmul.mubr.f32.gmra.mrb[0].mxu0 %v264
    %v518 = vpop.f32.mrb[0].mxu0
    %v519 = vadd.f32 0.0, %v518
    %v520 = vpop.f32.mrb[0].mxu0
    %v521 = vadd.f32 0.0, %v520
    %522 = vdwg.mxu0
    %v523 = vsub.f32 %v333, 0.3
    %v524 = vsub.f32 %v335, 0.3
    %v525 = vsub.f32 %v339, 0.3
    %v526 = vsub.f32 %v341, 0.3
    %v527 = vsub.f32 %v345, 0.3
    %v528 = vsub.f32 %v347, 0.3
    %v529 = vsub.f32 %v351, 0.3
    %v530 = vsub.f32 %v353, 0.3
    %v531 = vsub.f32 %v357, 0.3
    %v532 = vsub.f32 %v359, 0.3
    %v533 = vsub.f32 %v363, 0.3
    %v534 = vsub.f32 %v365, 0.3
    %v535 = vsub.f32 %v369, 0.3
    %v536 = vsub.f32 %v371, 0.3
    %v537 = vsub.f32 %v375, 0.3
    %v538 = vsub.f32 %v377, 0.3
    %v539 = vsub.f32 %v381, 0.3
    %v540 = vsub.f32 %v383, 0.3
    %v541 = vsub.f32 %v387, 0.3
    %v542 = vsub.f32 %v389, 0.3
    %v543 = vsub.f32 %v393, 0.3
    %v544 = vsub.f32 %v395, 0.3
    %v545 = vsub.f32 %v399, 0.3
    %v546 = vsub.f32 %v401, 0.3
    %v547 = vsub.f32 %v405, 0.3
    %v548 = vsub.f32 %v407, 0.3
    %v549 = vsub.f32 %v411, 0.3
    %v550 = vsub.f32 %v413, 0.3
    %v551 = vsub.f32 %v417, 0.3
    %v552 = vsub.f32 %v419, 0.3
    %v553 = vsub.f32 %v423, 0.3
    %v554 = vsub.f32 %v425, 0.3
    %v555 = vsub.f32 %v429, 0.3
    %v556 = vsub.f32 %v431, 0.3
    %v557 = vsub.f32 %v435, 0.3
    %v558 = vsub.f32 %v437, 0.3
    %v559 = vsub.f32 %v441, 0.3
    %v560 = vsub.f32 %v443, 0.3
    %v561 = vsub.f32 %v447, 0.3
    %v562 = vsub.f32 %v449, 0.3
    %v563 = vsub.f32 %v453, 0.3
    %v564 = vsub.f32 %v455, 0.3
    %v565 = vsub.f32 %v459, 0.3
    %v566 = vsub.f32 %v461, 0.3
    %v567 = vsub.f32 %v465, 0.3
    %v568 = vsub.f32 %v467, 0.3
    %v569 = vsub.f32 %v471, 0.3
    %v570 = vsub.f32 %v473, 0.3
    %v571 = vsub.f32 %v477, 0.3
    %v572 = vsub.f32 %v479, 0.3
    %v573 = vsub.f32 %v483, 0.3
    %v574 = vsub.f32 %v485, 0.3
    %v575 = vsub.f32 %v489, 0.3
    %v576 = vsub.f32 %v491, 0.3
    %v577 = vsub.f32 %v495, 0.3
    %v578 = vsub.f32 %v497, 0.3
    %v579 = vsub.f32 %v501, 0.3
    %v580 = vsub.f32 %v503, 0.3
    %v581 = vsub.f32 %v507, 0.3
    %v582 = vsub.f32 %v509, 0.3
    %v583 = vsub.f32 %v513, 0.3
    %v584 = vsub.f32 %v515, 0.3
    %v585 = vsub.f32 %v519, 0.3
    %v586 = vsub.f32 %v521, 0.3
    %v587 = vmul.f32 %v49, 1.442695
    %v588 = vpow.pop %v587
    %v589 = vmul.f32 %v50, 1.442695
    %v590 = vpow.pop %v589
    %v591 = vmul.f32 %v588, %v49
    %v592 = vmul.f32 %v590, %v50
    %v593 = vrot.slane %v591, 4
    %v594 = vadd.f32 %v591, %v593
    %v595 = vrot.slane %v594, 2
    %v596 = vadd.f32 %v594, %v595
    %v597 = vrot.slane %v596, 1
    %v598 = vadd.f32 %v596, %v597
    %v599 = vrot.slane %v592, 4
    %v600 = vadd.f32 %v592, %v599
    %v601 = vrot.slane %v600, 2
    %v602 = vadd.f32 %v600, %v601
    %v603 = vrot.slane %v602, 1
    %v604 = vadd.f32 %v602, %v603
    %v605 = vpack.c.bf16 %v49, %v49
    %v606 = vpack.c.bf16 %v50, %v50
    %v607 = vpack.c.bf16 %v588, %v588
    %v608 = vpack.c.bf16 %v590, %v590
    %609 = vxpose.xlu0.c.b16.start [1/8] %v605, 128
    %610 = vxpose.xlu0.c.b16.cont [2/8] 0, 128
    %611 = vxpose.xlu0.c.b16.cont [3/8] 0, 128
    %612 = vxpose.xlu0.c.b16.cont [4/8] 0, 128
    %613 = vxpose.xlu0.c.b16.cont [5/8] 0, 128
    %614 = vxpose.xlu0.c.b16.cont [6/8] 0, 128
    %615 = vxpose.xlu0.c.b16.cont [7/8] 0, 128
    %616 = vxpose.xlu0.c.b16.end [8/8] 0, 128
    %v617 = vpop.trf.xlu0
    %v618 = vpop.trf.xlu0
    %v619 = vpop.trf.xlu0
    %v620 = vpop.trf.xlu0
    %v621 = vpop.trf.xlu0
    %v622 = vpop.trf.xlu0
    %v623 = vpop.trf.xlu0
    %v624 = vpop.trf.xlu0
    %625 = vxpose.xlu0.c.b16.start [1/8] %v606, 128
    %626 = vxpose.xlu0.c.b16.cont [2/8] 0, 128
    %627 = vxpose.xlu0.c.b16.cont [3/8] 0, 128
    %628 = vxpose.xlu0.c.b16.cont [4/8] 0, 128
    %629 = vxpose.xlu0.c.b16.cont [5/8] 0, 128
    %630 = vxpose.xlu0.c.b16.cont [6/8] 0, 128
    %631 = vxpose.xlu0.c.b16.cont [7/8] 0, 128
    %632 = vxpose.xlu0.c.b16.end [8/8] 0, 128
    %v633 = vpop.trf.xlu0
    %v634 = vpop.trf.xlu0
    %v635 = vpop.trf.xlu0
    %v636 = vpop.trf.xlu0
    %v637 = vpop.trf.xlu0
    %v638 = vpop.trf.xlu0
    %v639 = vpop.trf.xlu0
    %v640 = vpop.trf.xlu0
    %vm641 = vcmask 64512
    %v643 = vsel %vm641, %v617, 0
    %v646 = vsel %vm641, %v618, 0
    %v649 = vsel %vm641, %v619, 0
    %v652 = vsel %vm641, %v620, 0
    %v655 = vsel %vm641, %v621, 0
    %v658 = vsel %vm641, %v622, 0
    %v661 = vsel %vm641, %v623, 0
    %v664 = vsel %vm641, %v624, 0
    %v667 = vsel %vm641, %v633, 0
    %v670 = vsel %vm641, %v634, 0
    %v673 = vsel %vm641, %v635, 0
    %v676 = vsel %vm641, %v636, 0
    %v679 = vsel %vm641, %v637, 0
    %v682 = vsel %vm641, %v638, 0
    %v685 = vsel %vm641, %v639, 0
    %v688 = vsel %vm641, %v640, 0
    %vm690 = vcmask 1043456
    %v692 = vsel %vm690, %v607, 0
    %v695 = vsel %vm690, %v608, 0
    %697 = vmatprep.subr.bf16.mxu0 %v695
    %698 = vmatpush1.bf16.msra.mxu0 %v692
    %699 = vmatprep.subr.bf16.mxu0 0
    %700 = vmatpush1.bf16.msra.mxu0 0
    %701 = vmatprep.subr.bf16.mxu0 0
    %702 = vmatpush1.bf16.msra.mxu0 0
    %703 = vmatprep.subr.bf16.mxu0 0
    %704 = vmatpush1.bf16.msra.mxu0 0
    %705 = vmatprep.subr.bf16.mxu0 0
    %706 = vmatpush1.bf16.msra.mxu0 0
    %707 = vmatprep.subr.bf16.mxu0 0
    %708 = vmatpush1.bf16.msra.mxu0 0
    %709 = vmatprep.subr.bf16.mxu0 0
    %710 = vmatpush1.bf16.msra.mxu0 0
    %711 = vmatprep.subr.bf16.mxu0 0
    %712 = vmatpush1.bf16.msra.mxu0 0
    %713 = vmatprep.subr.bf16.mxu0 0
    %714 = vmatpush1.bf16.msra.mxu0 0
    %715 = vmatprep.subr.bf16.mxu0 0
    %716 = vmatpush1.bf16.msra.mxu0 0
    %717 = vmatprep.subr.bf16.mxu0 0
    %718 = vmatpush1.bf16.msra.mxu0 0
    %719 = vmatprep.subr.bf16.mxu0 0
    %720 = vmatpush1.bf16.msra.mxu0 0
    %721 = vmatprep.subr.bf16.mxu0 0
    %722 = vmatpush1.bf16.msra.mxu0 0
    %723 = vmatprep.subr.bf16.mxu0 0
    %724 = vmatpush1.bf16.msra.mxu0 0
    %725 = vmatprep.subr.bf16.mxu0 0
    %726 = vmatpush1.bf16.msra.mxu0 0
    %727 = vmatprep.subr.bf16.mxu0 0
    %728 = vmatpush1.bf16.msra.mxu0 0
    %729 = vmatprep.mubr.bf16.mxu0 0
    %730 = vmatmul.mubr.bf16.gmra.mrb[0].mxu0 %v643
    %v731 = vpop.f32.mrb[0].mxu0
    %v732 = vadd.f32 0.0, %v731
    %v733 = vpop.f32.mrb[0].mxu0
    %v734 = vadd.f32 0.0, %v733
    %v735 = vpop.f32.mrb[0].mxu0
    %v736 = vadd.f32 0.0, %v735
    %v737 = vpop.f32.mrb[0].mxu0
    %v738 = vadd.f32 0.0, %v737
    %739 = vmatprep.mubr.bf16.mxu0 0
    %740 = vmatmul.mubr.bf16.gmra.mrb[0].mxu0 %v646
    %v741 = vpop.f32.mrb[0].mxu0
    %v742 = vadd.f32 0.0, %v741
    %v743 = vpop.f32.mrb[0].mxu0
    %v744 = vadd.f32 0.0, %v743
    %v745 = vpop.f32.mrb[0].mxu0
    %v746 = vadd.f32 0.0, %v745
    %v747 = vpop.f32.mrb[0].mxu0
    %v748 = vadd.f32 0.0, %v747
    %749 = vmatprep.mubr.bf16.mxu0 0
    %750 = vmatmul.mubr.bf16.gmra.mrb[0].mxu0 %v649
    %v751 = vpop.f32.mrb[0].mxu0
    %v752 = vadd.f32 0.0, %v751
    %v753 = vpop.f32.mrb[0].mxu0
    %v754 = vadd.f32 0.0, %v753
    %v755 = vpop.f32.mrb[0].mxu0
    %v756 = vadd.f32 0.0, %v755
    %v757 = vpop.f32.mrb[0].mxu0
    %v758 = vadd.f32 0.0, %v757
    %759 = vmatprep.mubr.bf16.mxu0 0
    %760 = vmatmul.mubr.bf16.gmra.mrb[0].mxu0 %v652
    %v761 = vpop.f32.mrb[0].mxu0
    %v762 = vadd.f32 0.0, %v761
    %v763 = vpop.f32.mrb[0].mxu0
    %v764 = vadd.f32 0.0, %v763
    %v765 = vpop.f32.mrb[0].mxu0
    %v766 = vadd.f32 0.0, %v765
    %v767 = vpop.f32.mrb[0].mxu0
    %v768 = vadd.f32 0.0, %v767
    %769 = vmatprep.mubr.bf16.mxu0 0
    %770 = vmatmul.mubr.bf16.gmra.mrb[0].mxu0 %v655
    %v771 = vpop.f32.mrb[0].mxu0
    %v772 = vadd.f32 0.0, %v771
    %v773 = vpop.f32.mrb[0].mxu0
    %v774 = vadd.f32 0.0, %v773
    %v775 = vpop.f32.mrb[0].mxu0
    %v776 = vadd.f32 0.0, %v775
    %v777 = vpop.f32.mrb[0].mxu0
    %v778 = vadd.f32 0.0, %v777
    %779 = vmatprep.mubr.bf16.mxu0 0
    %780 = vmatmul.mubr.bf16.gmra.mrb[0].mxu0 %v658
    %v781 = vpop.f32.mrb[0].mxu0
    %v782 = vadd.f32 0.0, %v781
    %v783 = vpop.f32.mrb[0].mxu0
    %v784 = vadd.f32 0.0, %v783
    %v785 = vpop.f32.mrb[0].mxu0
    %v786 = vadd.f32 0.0, %v785
    %v787 = vpop.f32.mrb[0].mxu0
    %v788 = vadd.f32 0.0, %v787
    %789 = vmatprep.mubr.bf16.mxu0 0
    %790 = vmatmul.mubr.bf16.gmra.mrb[0].mxu0 %v661
    %v791 = vpop.f32.mrb[0].mxu0
    %v792 = vadd.f32 0.0, %v791
    %v793 = vpop.f32.mrb[0].mxu0
    %v794 = vadd.f32 0.0, %v793
    %v795 = vpop.f32.mrb[0].mxu0
    %v796 = vadd.f32 0.0, %v795
    %v797 = vpop.f32.mrb[0].mxu0
    %v798 = vadd.f32 0.0, %v797
    %799 = vmatprep.mubr.bf16.mxu0 0
    %800 = vmatmul.mubr.bf16.gmra.mrb[0].mxu0 %v664
    %v801 = vpop.f32.mrb[0].mxu0
    %v802 = vadd.f32 0.0, %v801
    %v803 = vpop.f32.mrb[0].mxu0
    %v804 = vadd.f32 0.0, %v803
    %v805 = vpop.f32.mrb[0].mxu0
    %v806 = vadd.f32 0.0, %v805
    %v807 = vpop.f32.mrb[0].mxu0
    %v808 = vadd.f32 0.0, %v807
    %809 = vmatprep.mubr.bf16.mxu0 0
    %810 = vmatmul.mubr.bf16.gmra.mrb[0].mxu0 %v667
    %v811 = vpop.f32.mrb[0].mxu0
    %v812 = vadd.f32 0.0, %v811
    %v813 = vpop.f32.mrb[0].mxu0
    %v814 = vadd.f32 0.0, %v813
    %v815 = vpop.f32.mrb[0].mxu0
    %v816 = vadd.f32 0.0, %v815
    %v817 = vpop.f32.mrb[0].mxu0
    %v818 = vadd.f32 0.0, %v817
    %819 = vmatprep.mubr.bf16.mxu0 0
    %820 = vmatmul.mubr.bf16.gmra.mrb[0].mxu0 %v670
    %v821 = vpop.f32.mrb[0].mxu0
    %v822 = vadd.f32 0.0, %v821
    %v823 = vpop.f32.mrb[0].mxu0
    %v824 = vadd.f32 0.0, %v823
    %v825 = vpop.f32.mrb[0].mxu0
    %v826 = vadd.f32 0.0, %v825
    %v827 = vpop.f32.mrb[0].mxu0
    %v828 = vadd.f32 0.0, %v827
    %829 = vmatprep.mubr.bf16.mxu0 0
    %830 = vmatmul.mubr.bf16.gmra.mrb[0].mxu0 %v673
    %v831 = vpop.f32.mrb[0].mxu0
    %v832 = vadd.f32 0.0, %v831
    %v833 = vpop.f32.mrb[0].mxu0
    %v834 = vadd.f32 0.0, %v833
    %v835 = vpop.f32.mrb[0].mxu0
    %v836 = vadd.f32 0.0, %v835
    %v837 = vpop.f32.mrb[0].mxu0
    %v838 = vadd.f32 0.0, %v837
    %839 = vmatprep.mubr.bf16.mxu0 0
    %840 = vmatmul.mubr.bf16.gmra.mrb[0].mxu0 %v676
    %v841 = vpop.f32.mrb[0].mxu0
    %v842 = vadd.f32 0.0, %v841
    %v843 = vpop.f32.mrb[0].mxu0
    %v844 = vadd.f32 0.0, %v843
    %v845 = vpop.f32.mrb[0].mxu0
    %v846 = vadd.f32 0.0, %v845
    %v847 = vpop.f32.mrb[0].mxu0
    %v848 = vadd.f32 0.0, %v847
    %849 = vmatprep.mubr.bf16.mxu0 0
    %850 = vmatmul.mubr.bf16.gmra.mrb[0].mxu0 %v679
    %v851 = vpop.f32.mrb[0].mxu0
    %v852 = vadd.f32 0.0, %v851
    %v853 = vpop.f32.mrb[0].mxu0
    %v854 = vadd.f32 0.0, %v853
    %v855 = vpop.f32.mrb[0].mxu0
    %v856 = vadd.f32 0.0, %v855
    %v857 = vpop.f32.mrb[0].mxu0
    %v858 = vadd.f32 0.0, %v857
    %859 = vmatprep.mubr.bf16.mxu0 0
    %860 = vmatmul.mubr.bf16.gmra.mrb[0].mxu0 %v682
    %v861 = vpop.f32.mrb[0].mxu0
    %v862 = vadd.f32 0.0, %v861
    %v863 = vpop.f32.mrb[0].mxu0
    %v864 = vadd.f32 0.0, %v863
    %v865 = vpop.f32.mrb[0].mxu0
    %v866 = vadd.f32 0.0, %v865
    %v867 = vpop.f32.mrb[0].mxu0
    %v868 = vadd.f32 0.0, %v867
    %869 = vmatprep.mubr.bf16.mxu0 0
    %870 = vmatmul.mubr.bf16.gmra.mrb[0].mxu0 %v685
    %v871 = vpop.f32.mrb[0].mxu0
    %v872 = vadd.f32 0.0, %v871
    %v873 = vpop.f32.mrb[0].mxu0
    %v874 = vadd.f32 0.0, %v873
    %v875 = vpop.f32.mrb[0].mxu0
    %v876 = vadd.f32 0.0, %v875
    %v877 = vpop.f32.mrb[0].mxu0
    %v878 = vadd.f32 0.0, %v877
    %879 = vmatprep.mubr.bf16.mxu0 0
    %880 = vmatmul.mubr.bf16.gmra.mrb[0].mxu0 %v688
    %v881 = vpop.f32.mrb[0].mxu0
    %v882 = vadd.f32 0.0, %v881
    %v883 = vpop.f32.mrb[0].mxu0
    %v884 = vadd.f32 0.0, %v883
    %v885 = vpop.f32.mrb[0].mxu0
    %v886 = vadd.f32 0.0, %v885
    %v887 = vpop.f32.mrb[0].mxu0
    %v888 = vadd.f32 0.0, %v887
    %889 = vdwg.mxu0
    %v890 = vsub.f32 %v598, %v732
    %v891 = vsub.f32 %v604, %v734
    %v892 = vsub.f32 %v598, %v736
    %v893 = vsub.f32 %v604, %v738
    %v894 = vsub.f32 %v598, %v742
    %v895 = vsub.f32 %v604, %v744
    %v896 = vsub.f32 %v598, %v746
    %v897 = vsub.f32 %v604, %v748
    %v898 = vsub.f32 %v598, %v752
    %v899 = vsub.f32 %v604, %v754
    %v900 = vsub.f32 %v598, %v756
    %v901 = vsub.f32 %v604, %v758
    %v902 = vsub.f32 %v598, %v762
    %v903 = vsub.f32 %v604, %v764
    %v904 = vsub.f32 %v598, %v766
    %v905 = vsub.f32 %v604, %v768
    %v906 = vsub.f32 %v598, %v772
    %v907 = vsub.f32 %v604, %v774
    %v908 = vsub.f32 %v598, %v776
    %v909 = vsub.f32 %v604, %v778
    %v910 = vsub.f32 %v598, %v782
    %v911 = vsub.f32 %v604, %v784
    %v912 = vsub.f32 %v598, %v786
    %v913 = vsub.f32 %v604, %v788
    %v914 = vsub.f32 %v598, %v792
    %v915 = vsub.f32 %v604, %v794
    %v916 = vsub.f32 %v598, %v796
    %v917 = vsub.f32 %v604, %v798
    %v918 = vsub.f32 %v598, %v802
    %v919 = vsub.f32 %v604, %v804
    %v920 = vsub.f32 %v598, %v806
    %v921 = vsub.f32 %v604, %v808
    %v922 = vsub.f32 %v598, %v812
    %v923 = vsub.f32 %v604, %v814
    %v924 = vsub.f32 %v598, %v816
    %v925 = vsub.f32 %v604, %v818
    %v926 = vsub.f32 %v598, %v822
    %v927 = vsub.f32 %v604, %v824
    %v928 = vsub.f32 %v598, %v826
    %v929 = vsub.f32 %v604, %v828
    %v930 = vsub.f32 %v598, %v832
    %v931 = vsub.f32 %v604, %v834
    %v932 = vsub.f32 %v598, %v836
    %v933 = vsub.f32 %v604, %v838
    %v934 = vsub.f32 %v598, %v842
    %v935 = vsub.f32 %v604, %v844
    %v936 = vsub.f32 %v598, %v846
    %v937 = vsub.f32 %v604, %v848
    %v938 = vsub.f32 %v598, %v852
    %v939 = vsub.f32 %v604, %v854
    %v940 = vsub.f32 %v598, %v856
    %v941 = vsub.f32 %v604, %v858
    %v942 = vsub.f32 %v598, %v862
    %v943 = vsub.f32 %v604, %v864
    %v944 = vsub.f32 %v598, %v866
    %v945 = vsub.f32 %v604, %v868
    %v946 = vsub.f32 %v598, %v872
    %v947 = vsub.f32 %v604, %v874
    %v948 = vsub.f32 %v598, %v876
    %v949 = vsub.f32 %v604, %v878
    %v950 = vsub.f32 %v598, %v882
    %v951 = vsub.f32 %v604, %v884
    %v952 = vsub.f32 %v598, %v886
    %v953 = vsub.f32 %v604, %v888
    %v954 = vmul.f32 %v523, %v890
    %v955 = vmul.f32 %v524, %v891
    %v956 = vmul.f32 %v525, %v892
    %v957 = vmul.f32 %v526, %v893
    %v958 = vmul.f32 %v527, %v894
    %v959 = vmul.f32 %v528, %v895
    %v960 = vmul.f32 %v529, %v896
    %v961 = vmul.f32 %v530, %v897
    %v962 = vmul.f32 %v531, %v898
    %v963 = vmul.f32 %v532, %v899
    %v964 = vmul.f32 %v533, %v900
    %v965 = vmul.f32 %v534, %v901
    %v966 = vmul.f32 %v535, %v902
    %v967 = vmul.f32 %v536, %v903
    %v968 = vmul.f32 %v537, %v904
    %v969 = vmul.f32 %v538, %v905
    %v970 = vmul.f32 %v539, %v906
    %v971 = vmul.f32 %v540, %v907
    %v972 = vmul.f32 %v541, %v908
    %v973 = vmul.f32 %v542, %v909
    %v974 = vmul.f32 %v543, %v910
    %v975 = vmul.f32 %v544, %v911
    %v976 = vmul.f32 %v545, %v912
    %v977 = vmul.f32 %v546, %v913
    %v978 = vmul.f32 %v547, %v914
    %v979 = vmul.f32 %v548, %v915
    %v980 = vmul.f32 %v549, %v916
    %v981 = vmul.f32 %v550, %v917
    %v982 = vmul.f32 %v551, %v918
    %v983 = vmul.f32 %v552, %v919
    %v984 = vmul.f32 %v553, %v920
    %v985 = vmul.f32 %v554, %v921
    %v986 = vmul.f32 %v555, %v922
    %v987 = vmul.f32 %v556, %v923
    %v988 = vmul.f32 %v557, %v924
    %v989 = vmul.f32 %v558, %v925
    %v990 = vmul.f32 %v559, %v926
    %v991 = vmul.f32 %v560, %v927
    %v992 = vmul.f32 %v561, %v928
    %v993 = vmul.f32 %v562, %v929
    %v994 = vmul.f32 %v563, %v930
    %v995 = vmul.f32 %v564, %v931
    %v996 = vmul.f32 %v565, %v932
    %v997 = vmul.f32 %v566, %v933
    %v998 = vmul.f32 %v567, %v934
    %v999 = vmul.f32 %v568, %v935
    %v1000 = vmul.f32 %v569, %v936
    %v1001 = vmul.f32 %v570, %v937
    %v1002 = vmul.f32 %v571, %v938
    %v1003 = vmul.f32 %v572, %v939
    %v1004 = vmul.f32 %v573, %v940
    %v1005 = vmul.f32 %v574, %v941
    %v1006 = vmul.f32 %v575, %v942
    %v1007 = vmul.f32 %v576, %v943
    %v1008 = vmul.f32 %v577, %v944
    %v1009 = vmul.f32 %v578, %v945
    %v1010 = vmul.f32 %v579, %v946
    %v1011 = vmul.f32 %v580, %v947
    %v1012 = vmul.f32 %v581, %v948
    %v1013 = vmul.f32 %v582, %v949
    %v1014 = vmul.f32 %v583, %v950
    %v1015 = vmul.f32 %v584, %v951
    %v1016 = vmul.f32 %v585, %v952
    %v1017 = vmul.f32 %v586, %v953
    %vm1018 = vcmp.gt.f32.partialorder %v523, 0.0
    %vm1019 = vcmp.gt.f32.partialorder %v524, 0.0
    %vm1020 = vcmp.gt.f32.partialorder %v525, 0.0
    %vm1021 = vcmp.gt.f32.partialorder %v526, 0.0
    %vm1022 = vcmp.gt.f32.partialorder %v527, 0.0
    %vm1023 = vcmp.gt.f32.partialorder %v528, 0.0
    %vm1024 = vcmp.gt.f32.partialorder %v529, 0.0
    %vm1025 = vcmp.gt.f32.partialorder %v530, 0.0
    %vm1026 = vcmp.gt.f32.partialorder %v531, 0.0
    %vm1027 = vcmp.gt.f32.partialorder %v532, 0.0
    %vm1028 = vcmp.gt.f32.partialorder %v533, 0.0
    %vm1029 = vcmp.gt.f32.partialorder %v534, 0.0
    %vm1030 = vcmp.gt.f32.partialorder %v535, 0.0
    %vm1031 = vcmp.gt.f32.partialorder %v536, 0.0
    %vm1032 = vcmp.gt.f32.partialorder %v537, 0.0
    %vm1033 = vcmp.gt.f32.partialorder %v538, 0.0
    %vm1034 = vcmp.gt.f32.partialorder %v539, 0.0
    %vm1035 = vcmp.gt.f32.partialorder %v540, 0.0
    %vm1036 = vcmp.gt.f32.partialorder %v541, 0.0
    %vm1037 = vcmp.gt.f32.partialorder %v542, 0.0
    %vm1038 = vcmp.gt.f32.partialorder %v543, 0.0
    %vm1039 = vcmp.gt.f32.partialorder %v544, 0.0
    %vm1040 = vcmp.gt.f32.partialorder %v545, 0.0
    %vm1041 = vcmp.gt.f32.partialorder %v546, 0.0
    %vm1042 = vcmp.gt.f32.partialorder %v547, 0.0
    %vm1043 = vcmp.gt.f32.partialorder %v548, 0.0
    %vm1044 = vcmp.gt.f32.partialorder %v549, 0.0
    %vm1045 = vcmp.gt.f32.partialorder %v550, 0.0
    %vm1046 = vcmp.gt.f32.partialorder %v551, 0.0
    %vm1047 = vcmp.gt.f32.partialorder %v552, 0.0
    %vm1048 = vcmp.gt.f32.partialorder %v553, 0.0
    %vm1049 = vcmp.gt.f32.partialorder %v554, 0.0
    %vm1050 = vcmp.gt.f32.partialorder %v555, 0.0
    %vm1051 = vcmp.gt.f32.partialorder %v556, 0.0
    %vm1052 = vcmp.gt.f32.partialorder %v557, 0.0
    %vm1053 = vcmp.gt.f32.partialorder %v558, 0.0
    %vm1054 = vcmp.gt.f32.partialorder %v559, 0.0
    %vm1055 = vcmp.gt.f32.partialorder %v560, 0.0
    %vm1056 = vcmp.gt.f32.partialorder %v561, 0.0
    %vm1057 = vcmp.gt.f32.partialorder %v562, 0.0
    %vm1058 = vcmp.gt.f32.partialorder %v563, 0.0
    %vm1059 = vcmp.gt.f32.partialorder %v564, 0.0
    %vm1060 = vcmp.gt.f32.partialorder %v565, 0.0
    %vm1061 = vcmp.gt.f32.partialorder %v566, 0.0
    %vm1062 = vcmp.gt.f32.partialorder %v567, 0.0
    %vm1063 = vcmp.gt.f32.partialorder %v568, 0.0
    %vm1064 = vcmp.gt.f32.partialorder %v569, 0.0
    %vm1065 = vcmp.gt.f32.partialorder %v570, 0.0
    %vm1066 = vcmp.gt.f32.partialorder %v571, 0.0
    %vm1067 = vcmp.gt.f32.partialorder %v572, 0.0
    %vm1068 = vcmp.gt.f32.partialorder %v573, 0.0
    %vm1069 = vcmp.gt.f32.partialorder %v574, 0.0
    %vm1070 = vcmp.gt.f32.partialorder %v575, 0.0
    %vm1071 = vcmp.gt.f32.partialorder %v576, 0.0
    %vm1072 = vcmp.gt.f32.partialorder %v577, 0.0
    %vm1073 = vcmp.gt.f32.partialorder %v578, 0.0
    %vm1074 = vcmp.gt.f32.partialorder %v579, 0.0
    %vm1075 = vcmp.gt.f32.partialorder %v580, 0.0
    %vm1076 = vcmp.gt.f32.partialorder %v581, 0.0
    %vm1077 = vcmp.gt.f32.partialorder %v582, 0.0
    %vm1078 = vcmp.gt.f32.partialorder %v583, 0.0
    %vm1079 = vcmp.gt.f32.partialorder %v584, 0.0
    %vm1080 = vcmp.gt.f32.partialorder %v585, 0.0
    %vm1081 = vcmp.gt.f32.partialorder %v586, 0.0
    %v1082 = vsel %vm1018, %v954, 0.0
    %v1083 = vsel %vm1019, %v955, 0.0
    %v1084 = vsel %vm1020, %v956, 0.0
    %v1085 = vsel %vm1021, %v957, 0.0
    %v1086 = vsel %vm1022, %v958, 0.0
    %v1087 = vsel %vm1023, %v959, 0.0
    %v1088 = vsel %vm1024, %v960, 0.0
    %v1089 = vsel %vm1025, %v961, 0.0
    %v1090 = vsel %vm1026, %v962, 0.0
    %v1091 = vsel %vm1027, %v963, 0.0
    %v1092 = vsel %vm1028, %v964, 0.0
    %v1093 = vsel %vm1029, %v965, 0.0
    %v1094 = vsel %vm1030, %v966, 0.0
    %v1095 = vsel %vm1031, %v967, 0.0
    %v1096 = vsel %vm1032, %v968, 0.0
    %v1097 = vsel %vm1033, %v969, 0.0
    %v1098 = vsel %vm1034, %v970, 0.0
    %v1099 = vsel %vm1035, %v971, 0.0
    %v1100 = vsel %vm1036, %v972, 0.0
    %v1101 = vsel %vm1037, %v973, 0.0
    %v1102 = vsel %vm1038, %v974, 0.0
    %v1103 = vsel %vm1039, %v975, 0.0
    %v1104 = vsel %vm1040, %v976, 0.0
    %v1105 = vsel %vm1041, %v977, 0.0
    %v1106 = vsel %vm1042, %v978, 0.0
    %v1107 = vsel %vm1043, %v979, 0.0
    %v1108 = vsel %vm1044, %v980, 0.0
    %v1109 = vsel %vm1045, %v981, 0.0
    %v1110 = vsel %vm1046, %v982, 0.0
    %v1111 = vsel %vm1047, %v983, 0.0
    %v1112 = vsel %vm1048, %v984, 0.0
    %v1113 = vsel %vm1049, %v985, 0.0
    %v1114 = vsel %vm1050, %v986, 0.0
    %v1115 = vsel %vm1051, %v987, 0.0
    %v1116 = vsel %vm1052, %v988, 0.0
    %v1117 = vsel %vm1053, %v989, 0.0
    %v1118 = vsel %vm1054, %v990, 0.0
    %v1119 = vsel %vm1055, %v991, 0.0
    %v1120 = vsel %vm1056, %v992, 0.0
    %v1121 = vsel %vm1057, %v993, 0.0
    %v1122 = vsel %vm1058, %v994, 0.0
    %v1123 = vsel %vm1059, %v995, 0.0
    %v1124 = vsel %vm1060, %v996, 0.0
    %v1125 = vsel %vm1061, %v997, 0.0
    %v1126 = vsel %vm1062, %v998, 0.0
    %v1127 = vsel %vm1063, %v999, 0.0
    %v1128 = vsel %vm1064, %v1000, 0.0
    %v1129 = vsel %vm1065, %v1001, 0.0
    %v1130 = vsel %vm1066, %v1002, 0.0
    %v1131 = vsel %vm1067, %v1003, 0.0
    %v1132 = vsel %vm1068, %v1004, 0.0
    %v1133 = vsel %vm1069, %v1005, 0.0
    %v1134 = vsel %vm1070, %v1006, 0.0
    %v1135 = vsel %vm1071, %v1007, 0.0
    %v1136 = vsel %vm1072, %v1008, 0.0
    %v1137 = vsel %vm1073, %v1009, 0.0
    %v1138 = vsel %vm1074, %v1010, 0.0
    %v1139 = vsel %vm1075, %v1011, 0.0
    %v1140 = vsel %vm1076, %v1012, 0.0
    %v1141 = vsel %vm1077, %v1013, 0.0
    %v1142 = vsel %vm1078, %v1014, 0.0
    %v1143 = vsel %vm1079, %v1015, 0.0
    %v1144 = vsel %vm1080, %v1016, 0.0
    %v1145 = vsel %vm1081, %v1017, 0.0
    %v1146 = vadd.f32 %v1082, %v1083
    %v1147 = vadd.f32 %v1146, %v1084
    %v1148 = vadd.f32 %v1147, %v1085
    %v1149 = vadd.f32 %v1148, %v1086
    %v1150 = vadd.f32 %v1149, %v1087
    %v1151 = vadd.f32 %v1150, %v1088
    %v1152 = vadd.f32 %v1151, %v1089
    %v1153 = vadd.f32 %v1152, %v1090
    %v1154 = vadd.f32 %v1153, %v1091
    %v1155 = vadd.f32 %v1154, %v1092
    %v1156 = vadd.f32 %v1155, %v1093
    %v1157 = vadd.f32 %v1156, %v1094
    %v1158 = vadd.f32 %v1157, %v1095
    %v1159 = vadd.f32 %v1158, %v1096
    %v1160 = vadd.f32 %v1159, %v1097
    %v1161 = vadd.f32 %v1160, %v1098
    %v1162 = vadd.f32 %v1161, %v1099
    %v1163 = vadd.f32 %v1162, %v1100
    %v1164 = vadd.f32 %v1163, %v1101
    %v1165 = vadd.f32 %v1164, %v1102
    %v1166 = vadd.f32 %v1165, %v1103
    %v1167 = vadd.f32 %v1166, %v1104
    %v1168 = vadd.f32 %v1167, %v1105
    %v1169 = vadd.f32 %v1168, %v1106
    %v1170 = vadd.f32 %v1169, %v1107
    %v1171 = vadd.f32 %v1170, %v1108
    %v1172 = vadd.f32 %v1171, %v1109
    %v1173 = vadd.f32 %v1172, %v1110
    %v1174 = vadd.f32 %v1173, %v1111
    %v1175 = vadd.f32 %v1174, %v1112
    %v1176 = vadd.f32 %v1175, %v1113
    %v1177 = vadd.f32 %v1176, %v1114
    %v1178 = vadd.f32 %v1177, %v1115
    %v1179 = vadd.f32 %v1178, %v1116
    %v1180 = vadd.f32 %v1179, %v1117
    %v1181 = vadd.f32 %v1180, %v1118
    %v1182 = vadd.f32 %v1181, %v1119
    %v1183 = vadd.f32 %v1182, %v1120
    %v1184 = vadd.f32 %v1183, %v1121
    %v1185 = vadd.f32 %v1184, %v1122
    %v1186 = vadd.f32 %v1185, %v1123
    %v1187 = vadd.f32 %v1186, %v1124
    %v1188 = vadd.f32 %v1187, %v1125
    %v1189 = vadd.f32 %v1188, %v1126
    %v1190 = vadd.f32 %v1189, %v1127
    %v1191 = vadd.f32 %v1190, %v1128
    %v1192 = vadd.f32 %v1191, %v1129
    %v1193 = vadd.f32 %v1192, %v1130
    %v1194 = vadd.f32 %v1193, %v1131
    %v1195 = vadd.f32 %v1194, %v1132
    %v1196 = vadd.f32 %v1195, %v1133
    %v1197 = vadd.f32 %v1196, %v1134
    %v1198 = vadd.f32 %v1197, %v1135
    %v1199 = vadd.f32 %v1198, %v1136
    %v1200 = vadd.f32 %v1199, %v1137
    %v1201 = vadd.f32 %v1200, %v1138
    %v1202 = vadd.f32 %v1201, %v1139
    %v1203 = vadd.f32 %v1202, %v1140
    %v1204 = vadd.f32 %v1203, %v1141
    %v1205 = vadd.f32 %v1204, %v1142
    %v1206 = vadd.f32 %v1205, %v1143
    %v1207 = vadd.f32 %v1206, %v1144
    %v1208 = vadd.f32 %v1207, %v1145
    %1209 = vadd.xlane.f32.xlu0 %v1208
    %v1210 = vpop.xlane.xlu0 %1209
    %v1211 = vrot.slane %v1210, 4
    %v1212 = vadd.f32 %v1210, %v1211
    %v1213 = vrot.slane %v1212, 2
    %v1214 = vadd.f32 %v1212, %v1213
    %v1215 = vrot.slane %v1214, 1
    %v1216 = vadd.f32 %v1214, %v1215
    %s1217 = vtos %v1216
    %v1218 = vadd.f32 %v954, %v955
    %v1219 = vadd.f32 %v1218, %v956
    %v1220 = vadd.f32 %v1219, %v957
    %v1221 = vadd.f32 %v1220, %v958
    %v1222 = vadd.f32 %v1221, %v959
    %v1223 = vadd.f32 %v1222, %v960
    %v1224 = vadd.f32 %v1223, %v961
    %v1225 = vadd.f32 %v1224, %v962
    %v1226 = vadd.f32 %v1225, %v963
    %v1227 = vadd.f32 %v1226, %v964
    %v1228 = vadd.f32 %v1227, %v965
    %v1229 = vadd.f32 %v1228, %v966
    %v1230 = vadd.f32 %v1229, %v967
    %v1231 = vadd.f32 %v1230, %v968
    %v1232 = vadd.f32 %v1231, %v969
    %v1233 = vadd.f32 %v1232, %v970
    %v1234 = vadd.f32 %v1233, %v971
    %v1235 = vadd.f32 %v1234, %v972
    %v1236 = vadd.f32 %v1235, %v973
    %v1237 = vadd.f32 %v1236, %v974
    %v1238 = vadd.f32 %v1237, %v975
    %v1239 = vadd.f32 %v1238, %v976
    %v1240 = vadd.f32 %v1239, %v977
    %v1241 = vadd.f32 %v1240, %v978
    %v1242 = vadd.f32 %v1241, %v979
    %v1243 = vadd.f32 %v1242, %v980
    %v1244 = vadd.f32 %v1243, %v981
    %v1245 = vadd.f32 %v1244, %v982
    %v1246 = vadd.f32 %v1245, %v983
    %v1247 = vadd.f32 %v1246, %v984
    %v1248 = vadd.f32 %v1247, %v985
    %v1249 = vadd.f32 %v1248, %v986
    %v1250 = vadd.f32 %v1249, %v987
    %v1251 = vadd.f32 %v1250, %v988
    %v1252 = vadd.f32 %v1251, %v989
    %v1253 = vadd.f32 %v1252, %v990
    %v1254 = vadd.f32 %v1253, %v991
    %v1255 = vadd.f32 %v1254, %v992
    %v1256 = vadd.f32 %v1255, %v993
    %v1257 = vadd.f32 %v1256, %v994
    %v1258 = vadd.f32 %v1257, %v995
    %v1259 = vadd.f32 %v1258, %v996
    %v1260 = vadd.f32 %v1259, %v997
    %v1261 = vadd.f32 %v1260, %v998
    %v1262 = vadd.f32 %v1261, %v999
    %v1263 = vadd.f32 %v1262, %v1000
    %v1264 = vadd.f32 %v1263, %v1001
    %v1265 = vadd.f32 %v1264, %v1002
    %v1266 = vadd.f32 %v1265, %v1003
    %v1267 = vadd.f32 %v1266, %v1004
    %v1268 = vadd.f32 %v1267, %v1005
    %v1269 = vadd.f32 %v1268, %v1006
    %v1270 = vadd.f32 %v1269, %v1007
    %v1271 = vadd.f32 %v1270, %v1008
    %v1272 = vadd.f32 %v1271, %v1009
    %v1273 = vadd.f32 %v1272, %v1010
    %v1274 = vadd.f32 %v1273, %v1011
    %v1275 = vadd.f32 %v1274, %v1012
    %v1276 = vadd.f32 %v1275, %v1013
    %v1277 = vadd.f32 %v1276, %v1014
    %v1278 = vadd.f32 %v1277, %v1015
    %v1279 = vadd.f32 %v1278, %v1016
    %v1280 = vadd.f32 %v1279, %v1017
    %1281 = vadd.xlane.f32.xlu0 %v1280
    %v1282 = vpop.xlane.xlu0 %1281
    %v1283 = vrot.slane %v1282, 4
    %v1284 = vadd.f32 %v1282, %v1283
    %v1285 = vrot.slane %v1284, 2
    %v1286 = vadd.f32 %v1284, %v1285
    %v1287 = vrot.slane %v1286, 1
    %v1288 = vadd.f32 %v1286, %v1287
    %s1289 = vtos %v1288
    %v1290 = vsel %vm1018, 1, 0
    %v1291 = vsel %vm1019, 1, 0
    %v1292 = vsel %vm1020, 1, 0
    %v1293 = vsel %vm1021, 1, 0
    %v1294 = vsel %vm1022, 1, 0
    %v1295 = vsel %vm1023, 1, 0
    %v1296 = vsel %vm1024, 1, 0
    %v1297 = vsel %vm1025, 1, 0
    %v1298 = vsel %vm1026, 1, 0
    %v1299 = vsel %vm1027, 1, 0
    %v1300 = vsel %vm1028, 1, 0
    %v1301 = vsel %vm1029, 1, 0
    %v1302 = vsel %vm1030, 1, 0
    %v1303 = vsel %vm1031, 1, 0
    %v1304 = vsel %vm1032, 1, 0
    %v1305 = vsel %vm1033, 1, 0
    %v1306 = vsel %vm1034, 1, 0
    %v1307 = vsel %vm1035, 1, 0
    %v1308 = vsel %vm1036, 1, 0
    %v1309 = vsel %vm1037, 1, 0
    %v1310 = vsel %vm1038, 1, 0
    %v1311 = vsel %vm1039, 1, 0
    %v1312 = vsel %vm1040, 1, 0
    %v1313 = vsel %vm1041, 1, 0
    %v1314 = vsel %vm1042, 1, 0
    %v1315 = vsel %vm1043, 1, 0
    %v1316 = vsel %vm1044, 1, 0
    %v1317 = vsel %vm1045, 1, 0
    %v1318 = vsel %vm1046, 1, 0
    %v1319 = vsel %vm1047, 1, 0
    %v1320 = vsel %vm1048, 1, 0
    %v1321 = vsel %vm1049, 1, 0
    %v1322 = vsel %vm1050, 1, 0
    %v1323 = vsel %vm1051, 1, 0
    %v1324 = vsel %vm1052, 1, 0
    %v1325 = vsel %vm1053, 1, 0
    %v1326 = vsel %vm1054, 1, 0
    %v1327 = vsel %vm1055, 1, 0
    %v1328 = vsel %vm1056, 1, 0
    %v1329 = vsel %vm1057, 1, 0
    %v1330 = vsel %vm1058, 1, 0
    %v1331 = vsel %vm1059, 1, 0
    %v1332 = vsel %vm1060, 1, 0
    %v1333 = vsel %vm1061, 1, 0
    %v1334 = vsel %vm1062, 1, 0
    %v1335 = vsel %vm1063, 1, 0
    %v1336 = vsel %vm1064, 1, 0
    %v1337 = vsel %vm1065, 1, 0
    %v1338 = vsel %vm1066, 1, 0
    %v1339 = vsel %vm1067, 1, 0
    %v1340 = vsel %vm1068, 1, 0
    %v1341 = vsel %vm1069, 1, 0
    %v1342 = vsel %vm1070, 1, 0
    %v1343 = vsel %vm1071, 1, 0
    %v1344 = vsel %vm1072, 1, 0
    %v1345 = vsel %vm1073, 1, 0
    %v1346 = vsel %vm1074, 1, 0
    %v1347 = vsel %vm1075, 1, 0
    %v1348 = vsel %vm1076, 1, 0
    %v1349 = vsel %vm1077, 1, 0
    %v1350 = vsel %vm1078, 1, 0
    %v1351 = vsel %vm1079, 1, 0
    %v1352 = vsel %vm1080, 1, 0
    %v1353 = vsel %vm1081, 1, 0
    %v1354 = vcvt.s32.f32 %v1290
    %v1355 = vcvt.s32.f32 %v1291
    %v1356 = vcvt.s32.f32 %v1292
    %v1357 = vcvt.s32.f32 %v1293
    %v1358 = vcvt.s32.f32 %v1294
    %v1359 = vcvt.s32.f32 %v1295
    %v1360 = vcvt.s32.f32 %v1296
    %v1361 = vcvt.s32.f32 %v1297
    %v1362 = vcvt.s32.f32 %v1298
    %v1363 = vcvt.s32.f32 %v1299
    %v1364 = vcvt.s32.f32 %v1300
    %v1365 = vcvt.s32.f32 %v1301
    %v1366 = vcvt.s32.f32 %v1302
    %v1367 = vcvt.s32.f32 %v1303
    %v1368 = vcvt.s32.f32 %v1304
    %v1369 = vcvt.s32.f32 %v1305
    %v1370 = vcvt.s32.f32 %v1306
    %v1371 = vcvt.s32.f32 %v1307
    %v1372 = vcvt.s32.f32 %v1308
    %v1373 = vcvt.s32.f32 %v1309
    %v1374 = vcvt.s32.f32 %v1310
    %v1375 = vcvt.s32.f32 %v1311
    %v1376 = vcvt.s32.f32 %v1312
    %v1377 = vcvt.s32.f32 %v1313
    %v1378 = vcvt.s32.f32 %v1314
    %v1379 = vcvt.s32.f32 %v1315
    %v1380 = vcvt.s32.f32 %v1316
    %v1381 = vcvt.s32.f32 %v1317
    %v1382 = vcvt.s32.f32 %v1318
    %v1383 = vcvt.s32.f32 %v1319
    %v1384 = vcvt.s32.f32 %v1320
    %v1385 = vcvt.s32.f32 %v1321
    %v1386 = vcvt.s32.f32 %v1322
    %v1387 = vcvt.s32.f32 %v1323
    %v1388 = vcvt.s32.f32 %v1324
    %v1389 = vcvt.s32.f32 %v1325
    %v1390 = vcvt.s32.f32 %v1326
    %v1391 = vcvt.s32.f32 %v1327
    %v1392 = vcvt.s32.f32 %v1328
    %v1393 = vcvt.s32.f32 %v1329
    %v1394 = vcvt.s32.f32 %v1330
    %v1395 = vcvt.s32.f32 %v1331
    %v1396 = vcvt.s32.f32 %v1332
    %v1397 = vcvt.s32.f32 %v1333
    %v1398 = vcvt.s32.f32 %v1334
    %v1399 = vcvt.s32.f32 %v1335
    %v1400 = vcvt.s32.f32 %v1336
    %v1401 = vcvt.s32.f32 %v1337
    %v1402 = vcvt.s32.f32 %v1338
    %v1403 = vcvt.s32.f32 %v1339
    %v1404 = vcvt.s32.f32 %v1340
    %v1405 = vcvt.s32.f32 %v1341
    %v1406 = vcvt.s32.f32 %v1342
    %v1407 = vcvt.s32.f32 %v1343
    %v1408 = vcvt.s32.f32 %v1344
    %v1409 = vcvt.s32.f32 %v1345
    %v1410 = vcvt.s32.f32 %v1346
    %v1411 = vcvt.s32.f32 %v1347
    %v1412 = vcvt.s32.f32 %v1348
    %v1413 = vcvt.s32.f32 %v1349
    %v1414 = vcvt.s32.f32 %v1350
    %v1415 = vcvt.s32.f32 %v1351
    %v1416 = vcvt.s32.f32 %v1352
    %v1417 = vcvt.s32.f32 %v1353
    %v1418 = vadd.f32 %v1354, %v1355
    %v1419 = vadd.f32 %v1418, %v1356
    %v1420 = vadd.f32 %v1419, %v1357
    %v1421 = vadd.f32 %v1420, %v1358
    %v1422 = vadd.f32 %v1421, %v1359
    %v1423 = vadd.f32 %v1422, %v1360
    %v1424 = vadd.f32 %v1423, %v1361
    %v1425 = vadd.f32 %v1424, %v1362
    %v1426 = vadd.f32 %v1425, %v1363
    %v1427 = vadd.f32 %v1426, %v1364
    %v1428 = vadd.f32 %v1427, %v1365
    %v1429 = vadd.f32 %v1428, %v1366
    %v1430 = vadd.f32 %v1429, %v1367
    %v1431 = vadd.f32 %v1430, %v1368
    %v1432 = vadd.f32 %v1431, %v1369
    %v1433 = vadd.f32 %v1432, %v1370
    %v1434 = vadd.f32 %v1433, %v1371
    %v1435 = vadd.f32 %v1434, %v1372
    %v1436 = vadd.f32 %v1435, %v1373
    %v1437 = vadd.f32 %v1436, %v1374
    %v1438 = vadd.f32 %v1437, %v1375
    %v1439 = vadd.f32 %v1438, %v1376
    %v1440 = vadd.f32 %v1439, %v1377
    %v1441 = vadd.f32 %v1440, %v1378
    %v1442 = vadd.f32 %v1441, %v1379
    %v1443 = vadd.f32 %v1442, %v1380
    %v1444 = vadd.f32 %v1443, %v1381
    %v1445 = vadd.f32 %v1444, %v1382
    %v1446 = vadd.f32 %v1445, %v1383
    %v1447 = vadd.f32 %v1446, %v1384
    %v1448 = vadd.f32 %v1447, %v1385
    %v1449 = vadd.f32 %v1448, %v1386
    %v1450 = vadd.f32 %v1449, %v1387
    %v1451 = vadd.f32 %v1450, %v1388
    %v1452 = vadd.f32 %v1451, %v1389
    %v1453 = vadd.f32 %v1452, %v1390
    %v1454 = vadd.f32 %v1453, %v1391
    %v1455 = vadd.f32 %v1454, %v1392
    %v1456 = vadd.f32 %v1455, %v1393
    %v1457 = vadd.f32 %v1456, %v1394
    %v1458 = vadd.f32 %v1457, %v1395
    %v1459 = vadd.f32 %v1458, %v1396
    %v1460 = vadd.f32 %v1459, %v1397
    %v1461 = vadd.f32 %v1460, %v1398
    %v1462 = vadd.f32 %v1461, %v1399
    %v1463 = vadd.f32 %v1462, %v1400
    %v1464 = vadd.f32 %v1463, %v1401
    %v1465 = vadd.f32 %v1464, %v1402
    %v1466 = vadd.f32 %v1465, %v1403
    %v1467 = vadd.f32 %v1466, %v1404
    %v1468 = vadd.f32 %v1467, %v1405
    %v1469 = vadd.f32 %v1468, %v1406
    %v1470 = vadd.f32 %v1469, %v1407
    %v1471 = vadd.f32 %v1470, %v1408
    %v1472 = vadd.f32 %v1471, %v1409
    %v1473 = vadd.f32 %v1472, %v1410
    %v1474 = vadd.f32 %v1473, %v1411
    %v1475 = vadd.f32 %v1474, %v1412
    %v1476 = vadd.f32 %v1475, %v1413
    %v1477 = vadd.f32 %v1476, %v1414
    %v1478 = vadd.f32 %v1477, %v1415
    %v1479 = vadd.f32 %v1478, %v1416
    %v1480 = vadd.f32 %v1479, %v1417
    %1481 = vadd.xlane.f32.xlu0 %v1480
    %v1482 = vpop.xlane.xlu0 %1481
    %v1483 = vrot.slane %v1482, 4
    %v1484 = vadd.f32 %v1482, %v1483
    %v1485 = vrot.slane %v1484, 2
    %v1486 = vadd.f32 %v1484, %v1485
    %v1487 = vrot.slane %v1486, 1
    %v1488 = vadd.f32 %v1486, %v1487
    %s1489 = vtos %v1488
    %vm1490 = vcmp.lt.f32.partialorder %v523, 0.0
    %vm1491 = vcmp.lt.f32.partialorder %v524, 0.0
    %vm1492 = vcmp.lt.f32.partialorder %v525, 0.0
    %vm1493 = vcmp.lt.f32.partialorder %v526, 0.0
    %vm1494 = vcmp.lt.f32.partialorder %v527, 0.0
    %vm1495 = vcmp.lt.f32.partialorder %v528, 0.0
    %vm1496 = vcmp.lt.f32.partialorder %v529, 0.0
    %vm1497 = vcmp.lt.f32.partialorder %v530, 0.0
    %vm1498 = vcmp.lt.f32.partialorder %v531, 0.0
    %vm1499 = vcmp.lt.f32.partialorder %v532, 0.0
    %vm1500 = vcmp.lt.f32.partialorder %v533, 0.0
    %vm1501 = vcmp.lt.f32.partialorder %v534, 0.0
    %vm1502 = vcmp.lt.f32.partialorder %v535, 0.0
    %vm1503 = vcmp.lt.f32.partialorder %v536, 0.0
    %vm1504 = vcmp.lt.f32.partialorder %v537, 0.0
    %vm1505 = vcmp.lt.f32.partialorder %v538, 0.0
    %vm1506 = vcmp.lt.f32.partialorder %v539, 0.0
    %vm1507 = vcmp.lt.f32.partialorder %v540, 0.0
    %vm1508 = vcmp.lt.f32.partialorder %v541, 0.0
    %vm1509 = vcmp.lt.f32.partialorder %v542, 0.0
    %vm1510 = vcmp.lt.f32.partialorder %v543, 0.0
    %vm1511 = vcmp.lt.f32.partialorder %v544, 0.0
    %vm1512 = vcmp.lt.f32.partialorder %v545, 0.0
    %vm1513 = vcmp.lt.f32.partialorder %v546, 0.0
    %vm1514 = vcmp.lt.f32.partialorder %v547, 0.0
    %vm1515 = vcmp.lt.f32.partialorder %v548, 0.0
    %vm1516 = vcmp.lt.f32.partialorder %v549, 0.0
    %vm1517 = vcmp.lt.f32.partialorder %v550, 0.0
    %vm1518 = vcmp.lt.f32.partialorder %v551, 0.0
    %vm1519 = vcmp.lt.f32.partialorder %v552, 0.0
    %vm1520 = vcmp.lt.f32.partialorder %v553, 0.0
    %vm1521 = vcmp.lt.f32.partialorder %v554, 0.0
    %vm1522 = vcmp.lt.f32.partialorder %v555, 0.0
    %vm1523 = vcmp.lt.f32.partialorder %v556, 0.0
    %vm1524 = vcmp.lt.f32.partialorder %v557, 0.0
    %vm1525 = vcmp.lt.f32.partialorder %v558, 0.0
    %vm1526 = vcmp.lt.f32.partialorder %v559, 0.0
    %vm1527 = vcmp.lt.f32.partialorder %v560, 0.0
    %vm1528 = vcmp.lt.f32.partialorder %v561, 0.0
    %vm1529 = vcmp.lt.f32.partialorder %v562, 0.0
    %vm1530 = vcmp.lt.f32.partialorder %v563, 0.0
    %vm1531 = vcmp.lt.f32.partialorder %v564, 0.0
    %vm1532 = vcmp.lt.f32.partialorder %v565, 0.0
    %vm1533 = vcmp.lt.f32.partialorder %v566, 0.0
    %vm1534 = vcmp.lt.f32.partialorder %v567, 0.0
    %vm1535 = vcmp.lt.f32.partialorder %v568, 0.0
    %vm1536 = vcmp.lt.f32.partialorder %v569, 0.0
    %vm1537 = vcmp.lt.f32.partialorder %v570, 0.0
    %vm1538 = vcmp.lt.f32.partialorder %v571, 0.0
    %vm1539 = vcmp.lt.f32.partialorder %v572, 0.0
    %vm1540 = vcmp.lt.f32.partialorder %v573, 0.0
    %vm1541 = vcmp.lt.f32.partialorder %v574, 0.0
    %vm1542 = vcmp.lt.f32.partialorder %v575, 0.0
    %vm1543 = vcmp.lt.f32.partialorder %v576, 0.0
    %vm1544 = vcmp.lt.f32.partialorder %v577, 0.0
    %vm1545 = vcmp.lt.f32.partialorder %v578, 0.0
    %vm1546 = vcmp.lt.f32.partialorder %v579, 0.0
    %vm1547 = vcmp.lt.f32.partialorder %v580, 0.0
    %vm1548 = vcmp.lt.f32.partialorder %v581, 0.0
    %vm1549 = vcmp.lt.f32.partialorder %v582, 0.0
    %vm1550 = vcmp.lt.f32.partialorder %v583, 0.0
    %vm1551 = vcmp.lt.f32.partialorder %v584, 0.0
    %vm1552 = vcmp.lt.f32.partialorder %v585, 0.0
    %vm1553 = vcmp.lt.f32.partialorder %v586, 0.0
    %v1554 = vsel %vm1490, 1, 0
    %v1555 = vsel %vm1491, 1, 0
    %v1556 = vsel %vm1492, 1, 0
    %v1557 = vsel %vm1493, 1, 0
    %v1558 = vsel %vm1494, 1, 0
    %v1559 = vsel %vm1495, 1, 0
    %v1560 = vsel %vm1496, 1, 0
    %v1561 = vsel %vm1497, 1, 0
    %v1562 = vsel %vm1498, 1, 0
    %v1563 = vsel %vm1499, 1, 0
    %v1564 = vsel %vm1500, 1, 0
    %v1565 = vsel %vm1501, 1, 0
    %v1566 = vsel %vm1502, 1, 0
    %v1567 = vsel %vm1503, 1, 0
    %v1568 = vsel %vm1504, 1, 0
    %v1569 = vsel %vm1505, 1, 0
    %v1570 = vsel %vm1506, 1, 0
    %v1571 = vsel %vm1507, 1, 0
    %v1572 = vsel %vm1508, 1, 0
    %v1573 = vsel %vm1509, 1, 0
    %v1574 = vsel %vm1510, 1, 0
    %v1575 = vsel %vm1511, 1, 0
    %v1576 = vsel %vm1512, 1, 0
    %v1577 = vsel %vm1513, 1, 0
    %v1578 = vsel %vm1514, 1, 0
    %v1579 = vsel %vm1515, 1, 0
    %v1580 = vsel %vm1516, 1, 0
    %v1581 = vsel %vm1517, 1, 0
    %v1582 = vsel %vm1518, 1, 0
    %v1583 = vsel %vm1519, 1, 0
    %v1584 = vsel %vm1520, 1, 0
    %v1585 = vsel %vm1521, 1, 0
    %v1586 = vsel %vm1522, 1, 0
    %v1587 = vsel %vm1523, 1, 0
    %v1588 = vsel %vm1524, 1, 0
    %v1589 = vsel %vm1525, 1, 0
    %v1590 = vsel %vm1526, 1, 0
    %v1591 = vsel %vm1527, 1, 0
    %v1592 = vsel %vm1528, 1, 0
    %v1593 = vsel %vm1529, 1, 0
    %v1594 = vsel %vm1530, 1, 0
    %v1595 = vsel %vm1531, 1, 0
    %v1596 = vsel %vm1532, 1, 0
    %v1597 = vsel %vm1533, 1, 0
    %v1598 = vsel %vm1534, 1, 0
    %v1599 = vsel %vm1535, 1, 0
    %v1600 = vsel %vm1536, 1, 0
    %v1601 = vsel %vm1537, 1, 0
    %v1602 = vsel %vm1538, 1, 0
    %v1603 = vsel %vm1539, 1, 0
    %v1604 = vsel %vm1540, 1, 0
    %v1605 = vsel %vm1541, 1, 0
    %v1606 = vsel %vm1542, 1, 0
    %v1607 = vsel %vm1543, 1, 0
    %v1608 = vsel %vm1544, 1, 0
    %v1609 = vsel %vm1545, 1, 0
    %v1610 = vsel %vm1546, 1, 0
    %v1611 = vsel %vm1547, 1, 0
    %v1612 = vsel %vm1548, 1, 0
    %v1613 = vsel %vm1549, 1, 0
    %v1614 = vsel %vm1550, 1, 0
    %v1615 = vsel %vm1551, 1, 0
    %v1616 = vsel %vm1552, 1, 0
    %v1617 = vsel %vm1553, 1, 0
    %v1618 = vcvt.s32.f32 %v1554
    %v1619 = vcvt.s32.f32 %v1555
    %v1620 = vcvt.s32.f32 %v1556
    %v1621 = vcvt.s32.f32 %v1557
    %v1622 = vcvt.s32.f32 %v1558
    %v1623 = vcvt.s32.f32 %v1559
    %v1624 = vcvt.s32.f32 %v1560
    %v1625 = vcvt.s32.f32 %v1561
    %v1626 = vcvt.s32.f32 %v1562
    %v1627 = vcvt.s32.f32 %v1563
    %v1628 = vcvt.s32.f32 %v1564
    %v1629 = vcvt.s32.f32 %v1565
    %v1630 = vcvt.s32.f32 %v1566
    %v1631 = vcvt.s32.f32 %v1567
    %v1632 = vcvt.s32.f32 %v1568
    %v1633 = vcvt.s32.f32 %v1569
    %v1634 = vcvt.s32.f32 %v1570
    %v1635 = vcvt.s32.f32 %v1571
    %v1636 = vcvt.s32.f32 %v1572
    %v1637 = vcvt.s32.f32 %v1573
    %v1638 = vcvt.s32.f32 %v1574
    %v1639 = vcvt.s32.f32 %v1575
    %v1640 = vcvt.s32.f32 %v1576
    %v1641 = vcvt.s32.f32 %v1577
    %v1642 = vcvt.s32.f32 %v1578
    %v1643 = vcvt.s32.f32 %v1579
    %v1644 = vcvt.s32.f32 %v1580
    %v1645 = vcvt.s32.f32 %v1581
    %v1646 = vcvt.s32.f32 %v1582
    %v1647 = vcvt.s32.f32 %v1583
    %v1648 = vcvt.s32.f32 %v1584
    %v1649 = vcvt.s32.f32 %v1585
    %v1650 = vcvt.s32.f32 %v1586
    %v1651 = vcvt.s32.f32 %v1587
    %v1652 = vcvt.s32.f32 %v1588
    %v1653 = vcvt.s32.f32 %v1589
    %v1654 = vcvt.s32.f32 %v1590
    %v1655 = vcvt.s32.f32 %v1591
    %v1656 = vcvt.s32.f32 %v1592
    %v1657 = vcvt.s32.f32 %v1593
    %v1658 = vcvt.s32.f32 %v1594
    %v1659 = vcvt.s32.f32 %v1595
    %v1660 = vcvt.s32.f32 %v1596
    %v1661 = vcvt.s32.f32 %v1597
    %v1662 = vcvt.s32.f32 %v1598
    %v1663 = vcvt.s32.f32 %v1599
    %v1664 = vcvt.s32.f32 %v1600
    %v1665 = vcvt.s32.f32 %v1601
    %v1666 = vcvt.s32.f32 %v1602
    %v1667 = vcvt.s32.f32 %v1603
    %v1668 = vcvt.s32.f32 %v1604
    %v1669 = vcvt.s32.f32 %v1605
    %v1670 = vcvt.s32.f32 %v1606
    %v1671 = vcvt.s32.f32 %v1607
    %v1672 = vcvt.s32.f32 %v1608
    %v1673 = vcvt.s32.f32 %v1609
    %v1674 = vcvt.s32.f32 %v1610
    %v1675 = vcvt.s32.f32 %v1611
    %v1676 = vcvt.s32.f32 %v1612
    %v1677 = vcvt.s32.f32 %v1613
    %v1678 = vcvt.s32.f32 %v1614
    %v1679 = vcvt.s32.f32 %v1615
    %v1680 = vcvt.s32.f32 %v1616
    %v1681 = vcvt.s32.f32 %v1617
    %v1682 = vadd.f32 %v1618, %v1619
    %v1683 = vadd.f32 %v1682, %v1620
    %v1684 = vadd.f32 %v1683, %v1621
    %v1685 = vadd.f32 %v1684, %v1622
    %v1686 = vadd.f32 %v1685, %v1623
    %v1687 = vadd.f32 %v1686, %v1624
    %v1688 = vadd.f32 %v1687, %v1625
    %v1689 = vadd.f32 %v1688, %v1626
    %v1690 = vadd.f32 %v1689, %v1627
    %v1691 = vadd.f32 %v1690, %v1628
    %v1692 = vadd.f32 %v1691, %v1629
    %v1693 = vadd.f32 %v1692, %v1630
    %v1694 = vadd.f32 %v1693, %v1631
    %v1695 = vadd.f32 %v1694, %v1632
    %v1696 = vadd.f32 %v1695, %v1633
    %v1697 = vadd.f32 %v1696, %v1634
    %v1698 = vadd.f32 %v1697, %v1635
    %v1699 = vadd.f32 %v1698, %v1636
    %v1700 = vadd.f32 %v1699, %v1637
    %v1701 = vadd.f32 %v1700, %v1638
    %v1702 = vadd.f32 %v1701, %v1639
    %v1703 = vadd.f32 %v1702, %v1640
    %v1704 = vadd.f32 %v1703, %v1641
    %v1705 = vadd.f32 %v1704, %v1642
    %v1706 = vadd.f32 %v1705, %v1643
    %v1707 = vadd.f32 %v1706, %v1644
    %v1708 = vadd.f32 %v1707, %v1645
    %v1709 = vadd.f32 %v1708, %v1646
    %v1710 = vadd.f32 %v1709, %v1647
    %v1711 = vadd.f32 %v1710, %v1648
    %v1712 = vadd.f32 %v1711, %v1649
    %v1713 = vadd.f32 %v1712, %v1650
    %v1714 = vadd.f32 %v1713, %v1651
    %v1715 = vadd.f32 %v1714, %v1652
    %v1716 = vadd.f32 %v1715, %v1653
    %v1717 = vadd.f32 %v1716, %v1654
    %v1718 = vadd.f32 %v1717, %v1655
    %v1719 = vadd.f32 %v1718, %v1656
    %v1720 = vadd.f32 %v1719, %v1657
    %v1721 = vadd.f32 %v1720, %v1658
    %v1722 = vadd.f32 %v1721, %v1659
    %v1723 = vadd.f32 %v1722, %v1660
    %v1724 = vadd.f32 %v1723, %v1661
    %v1725 = vadd.f32 %v1724, %v1662
    %v1726 = vadd.f32 %v1725, %v1663
    %v1727 = vadd.f32 %v1726, %v1664
    %v1728 = vadd.f32 %v1727, %v1665
    %v1729 = vadd.f32 %v1728, %v1666
    %v1730 = vadd.f32 %v1729, %v1667
    %v1731 = vadd.f32 %v1730, %v1668
    %v1732 = vadd.f32 %v1731, %v1669
    %v1733 = vadd.f32 %v1732, %v1670
    %v1734 = vadd.f32 %v1733, %v1671
    %v1735 = vadd.f32 %v1734, %v1672
    %v1736 = vadd.f32 %v1735, %v1673
    %v1737 = vadd.f32 %v1736, %v1674
    %v1738 = vadd.f32 %v1737, %v1675
    %v1739 = vadd.f32 %v1738, %v1676
    %v1740 = vadd.f32 %v1739, %v1677
    %v1741 = vadd.f32 %v1740, %v1678
    %v1742 = vadd.f32 %v1741, %v1679
    %v1743 = vadd.f32 %v1742, %v1680
    %v1744 = vadd.f32 %v1743, %v1681
    %1745 = vadd.xlane.f32.xlu0 %v1744
    %v1746 = vpop.xlane.xlu0 %1745
    %v1747 = vrot.slane %v1746, 4
    %v1748 = vadd.f32 %v1746, %v1747
    %v1749 = vrot.slane %v1748, 2
    %v1750 = vadd.f32 %v1748, %v1749
    %v1751 = vrot.slane %v1750, 1
    %v1752 = vadd.f32 %v1750, %v1751
    %s1753 = vtos %v1752
    %s1754 = sadd.f32 %s1217, 0.0
    %s1755 = sadd.f32 %s1289, 0.0
    %s1756 = sadd.f32 %s1489, 0.0
    %s1757 = sadd.f32 %s1753, 0.0
    %s1758 = scalar_lea.vmem [#allocation2], 64
    %v1759 = vld [vmem:[%s1758] sm:$0xff]
    %v1760 = vld [vmem:[%s1758 + $0x8] sm:$0xff]
    %v1761 = vld [vmem:[%s1758 + $0x10] sm:$0xff]
    %v1762 = vld [vmem:[%s1758 + $0x18] sm:$0xff]
    %v1763 = vld [vmem:[%s1758 + $0x20] sm:$0xff]
    %v1764 = vld [vmem:[%s1758 + $0x28] sm:$0xff]
    %v1765 = vld [vmem:[%s1758 + $0x30] sm:$0xff]
    %v1766 = vld [vmem:[%s1758 + $0x38] sm:$0xff]
    %s1767 = scalar_lea.vmem [#allocation5], 16
    %v1768 = vld [vmem:[%s1767] sm:$0xff]
    %v1769 = vld [vmem:[%s1767 + $0x8] sm:$0xff]
    %v1770 = vmul.f32 %v1759, %v1759
    %v1771 = vmul.f32 %v1760, %v1760
    %v1772 = vmul.f32 %v1761, %v1761
    %v1773 = vmul.f32 %v1762, %v1762
    %v1774 = vmul.f32 %v1763, %v1763
    %v1775 = vmul.f32 %v1764, %v1764
    %v1776 = vmul.f32 %v1765, %v1765
    %v1777 = vmul.f32 %v1766, %v1766
    %v1778 = vadd.f32 %v1770, %v1772
    %v1779 = vadd.f32 %v1778, %v1774
    %v1780 = vadd.f32 %v1779, %v1776
    %v1781 = vrot.slane %v1780, 4
    %v1782 = vadd.f32 %v1780, %v1781
    %v1783 = vrot.slane %v1782, 2
    %v1784 = vadd.f32 %v1782, %v1783
    %v1785 = vrot.slane %v1784, 1
    %v1786 = vadd.f32 %v1784, %v1785
    %v1787 = vadd.f32 %v1771, %v1773
    %v1788 = vadd.f32 %v1787, %v1775
    %v1789 = vadd.f32 %v1788, %v1777
    %v1790 = vrot.slane %v1789, 4
    %v1791 = vadd.f32 %v1789, %v1790
    %v1792 = vrot.slane %v1791, 2
    %v1793 = vadd.f32 %v1791, %v1792
    %v1794 = vrot.slane %v1793, 1
    %v1795 = vadd.f32 %v1793, %v1794
    %v1796 = vrsqrt.pop %v1786
    %v1797 = vmul.f32 %v1786, %v1796
    %vm1798 = vcmp.eq.f32.partialorder %v1786, inf
    %v1799 = vsel %vm1798, %v1786, %v1797
    %vm1800 = vcmp.eq.f32.partialorder %v1786, 0.0
    %v1801 = vand.u32 %v1786, 2147483648
    %v1802 = vsel %vm1800, %v1801, %v1799
    %v1803 = vrsqrt.pop %v1795
    %v1804 = vmul.f32 %v1795, %v1803
    %vm1805 = vcmp.eq.f32.partialorder %v1795, inf
    %v1806 = vsel %vm1805, %v1795, %v1804
    %vm1807 = vcmp.eq.f32.partialorder %v1795, 0.0
    %v1808 = vand.u32 %v1795, 2147483648
    %v1809 = vsel %vm1807, %v1808, %v1806
    %v1810 = vmax.f32 %v1802, 1e-12
    %v1811 = vmax.f32 %v1809, 1e-12
    %v1812 = vrcp.pop %v1810
    %v1813 = vmul.f32 1.0, %v1812
    %v1814 = vrcp.pop %v1811
    %v1815 = vmul.f32 1.0, %v1814
    %v1816 = vmul.f32 %v1759, %v1813
    %v1817 = vmul.f32 %v1760, %v1815
    %v1818 = vmul.f32 %v1761, %v1813
    %v1819 = vmul.f32 %v1762, %v1815
    %v1820 = vmul.f32 %v1763, %v1813
    %v1821 = vmul.f32 %v1764, %v1815
    %v1822 = vmul.f32 %v1765, %v1813
    %v1823 = vmul.f32 %v1766, %v1815
    %1824 = vxpose.xlu0.b32.start [1/16] %v1816, 128
    %1825 = vxpose.xlu0.b32.cont [2/16] %v1818, 128
    %1826 = vxpose.xlu0.b32.cont [3/16] %v1820, 128
    %1827 = vxpose.xlu0.b32.cont [4/16] %v1822, 128
    %1828 = vxpose.xlu0.b32.cont [5/16] 0.0, 128
    %1829 = vxpose.xlu0.b32.cont [6/16] 0.0, 128
    %1830 = vxpose.xlu0.b32.cont [7/16] 0.0, 128
    %1831 = vxpose.xlu0.b32.cont [8/16] 0.0, 128
    %1832 = vxpose.xlu0.b32.cont [9/16] 0.0, 128
    %1833 = vxpose.xlu0.b32.cont [10/16] 0.0, 128
    %1834 = vxpose.xlu0.b32.cont [11/16] 0.0, 128
    %1835 = vxpose.xlu0.b32.cont [12/16] 0.0, 128
    %1836 = vxpose.xlu0.b32.cont [13/16] 0.0, 128
    %1837 = vxpose.xlu0.b32.cont [14/16] 0.0, 128
    %1838 = vxpose.xlu0.b32.cont [15/16] 0.0, 128
    %1839 = vxpose.xlu0.b32.end [16/16] 0.0, 128
    %v1840 = vpop.trf.xlu0
    %v1841 = vpop.trf.xlu0
    %v1842 = vpop.trf.xlu0
    %v1843 = vpop.trf.xlu0
    %v1844 = vpop.trf.xlu0
    %v1845 = vpop.trf.xlu0
    %v1846 = vpop.trf.xlu0
    %v1847 = vpop.trf.xlu0
    %v1848 = vpop.trf.xlu0
    %v1849 = vpop.trf.xlu0
    %v1850 = vpop.trf.xlu0
    %v1851 = vpop.trf.xlu0
    %v1852 = vpop.trf.xlu0
    %v1853 = vpop.trf.xlu0
    %v1854 = vpop.trf.xlu0
    %v1855 = vpop.trf.xlu0
    %1856 = vxpose.xlu0.b32.start [1/16] %v1817, 128
    %1857 = vxpose.xlu0.b32.cont [2/16] %v1819, 128
    %1858 = vxpose.xlu0.b32.cont [3/16] %v1821, 128
    %1859 = vxpose.xlu0.b32.cont [4/16] %v1823, 128
    %1860 = vxpose.xlu0.b32.cont [5/16] 0.0, 128
    %1861 = vxpose.xlu0.b32.cont [6/16] 0.0, 128
    %1862 = vxpose.xlu0.b32.cont [7/16] 0.0, 128
    %1863 = vxpose.xlu0.b32.cont [8/16] 0.0, 128
    %1864 = vxpose.xlu0.b32.cont [9/16] 0.0, 128
    %1865 = vxpose.xlu0.b32.cont [10/16] 0.0, 128
    %1866 = vxpose.xlu0.b32.cont [11/16] 0.0, 128
    %1867 = vxpose.xlu0.b32.cont [12/16] 0.0, 128
    %1868 = vxpose.xlu0.b32.cont [13/16] 0.0, 128
    %1869 = vxpose.xlu0.b32.cont [14/16] 0.0, 128
    %1870 = vxpose.xlu0.b32.cont [15/16] 0.0, 128
    %1871 = vxpose.xlu0.b32.end [16/16] 0.0, 128
    %v1872 = vpop.trf.xlu0
    %v1873 = vpop.trf.xlu0
    %v1874 = vpop.trf.xlu0
    %v1875 = vpop.trf.xlu0
    %v1876 = vpop.trf.xlu0
    %v1877 = vpop.trf.xlu0
    %v1878 = vpop.trf.xlu0
    %v1879 = vpop.trf.xlu0
    %v1880 = vpop.trf.xlu0
    %v1881 = vpop.trf.xlu0
    %v1882 = vpop.trf.xlu0
    %v1883 = vpop.trf.xlu0
    %v1884 = vpop.trf.xlu0
    %v1885 = vpop.trf.xlu0
    %v1886 = vpop.trf.xlu0
    %v1887 = vpop.trf.xlu0
    %v1889 = vsel %vm169, %v1840, 0
    %v1892 = vsel %vm169, %v1841, 0
    %v1895 = vsel %vm169, %v1842, 0
    %v1898 = vsel %vm169, %v1843, 0
    %v1901 = vsel %vm169, %v1844, 0
    %v1904 = vsel %vm169, %v1845, 0
    %v1907 = vsel %vm169, %v1846, 0
    %v1910 = vsel %vm169, %v1847, 0
    %v1913 = vsel %vm169, %v1848, 0
    %v1916 = vsel %vm169, %v1849, 0
    %v1919 = vsel %vm169, %v1850, 0
    %v1922 = vsel %vm169, %v1851, 0
    %v1925 = vsel %vm169, %v1852, 0
    %v1928 = vsel %vm169, %v1853, 0
    %v1931 = vsel %vm169, %v1854, 0
    %v1934 = vsel %vm169, %v1855, 0
    %v1937 = vsel %vm169, %v1872, 0
    %v1940 = vsel %vm169, %v1873, 0
    %v1943 = vsel %vm169, %v1874, 0
    %v1946 = vsel %vm169, %v1875, 0
    %v1949 = vsel %vm169, %v1876, 0
    %v1952 = vsel %vm169, %v1877, 0
    %v1955 = vsel %vm169, %v1878, 0
    %v1958 = vsel %vm169, %v1879, 0
    %v1961 = vsel %vm169, %v1880, 0
    %v1964 = vsel %vm169, %v1881, 0
    %v1967 = vsel %vm169, %v1882, 0
    %v1970 = vsel %vm169, %v1883, 0
    %v1973 = vsel %vm169, %v1884, 0
    %v1976 = vsel %vm169, %v1885, 0
    %v1979 = vsel %vm169, %v1886, 0
    %v1982 = vsel %vm169, %v1887, 0
    %1984 = vmatprep.subr.mxu0 %v1817
    %1985 = vmatpush1.msra.mxu0 %v1816
    %1986 = vmatprep.subr.mxu0 %v1819
    %1987 = vmatpush1.msra.mxu0 %v1818
    %1988 = vmatprep.subr.mxu0 %v1821
    %1989 = vmatpush1.msra.mxu0 %v1820
    %1990 = vmatprep.subr.mxu0 %v1823
    %1991 = vmatpush1.msra.mxu0 %v1822
    %1992 = vmatprep.subr.mxu0 0.0
    %1993 = vmatpush1.msra.mxu0 0.0
    %1994 = vmatprep.subr.mxu0 0.0
    %1995 = vmatpush1.msra.mxu0 0.0
    %1996 = vmatprep.subr.mxu0 0.0
    %1997 = vmatpush1.msra.mxu0 0.0
    %1998 = vmatprep.subr.mxu0 0.0
    %1999 = vmatpush1.msra.mxu0 0.0
    %2000 = vmatprep.subr.mxu0 0.0
    %2001 = vmatpush1.msra.mxu0 0.0
    %2002 = vmatprep.subr.mxu0 0.0
    %2003 = vmatpush1.msra.mxu0 0.0
    %2004 = vmatprep.subr.mxu0 0.0
    %2005 = vmatpush1.msra.mxu0 0.0
    %2006 = vmatprep.subr.mxu0 0.0
    %2007 = vmatpush1.msra.mxu0 0.0
    %2008 = vmatprep.subr.mxu0 0.0
    %2009 = vmatpush1.msra.mxu0 0.0
    %2010 = vmatprep.subr.mxu0 0.0
    %2011 = vmatpush1.msra.mxu0 0.0
    %2012 = vmatprep.subr.mxu0 0.0
    %2013 = vmatpush1.msra.mxu0 0.0
    %2014 = vmatprep.subr.mxu0 0.0
    %2015 = vmatpush1.msra.mxu0 0.0
    %2016 = vmatprep.subr.mxu0 0.0
    %2017 = vmatpush1.msra.mxu0 0.0
    %2018 = vmatprep.subr.mxu0 0.0
    %2019 = vmatpush1.msra.mxu0 0.0
    %2020 = vmatprep.subr.mxu0 0.0
    %2021 = vmatpush1.msra.mxu0 0.0
    %2022 = vmatprep.subr.mxu0 0.0
    %2023 = vmatpush1.msra.mxu0 0.0
    %2024 = vmatprep.subr.mxu0 0.0
    %2025 = vmatpush1.msra.mxu0 0.0
    %2026 = vmatprep.subr.mxu0 0.0
    %2027 = vmatpush1.msra.mxu0 0.0
    %2028 = vmatprep.subr.mxu0 0.0
    %2029 = vmatpush1.msra.mxu0 0.0
    %2030 = vmatprep.subr.mxu0 0.0
    %2031 = vmatpush1.msra.mxu0 0.0
    %2032 = vmatprep.subr.mxu0 0.0
    %2033 = vmatpush1.msra.mxu0 0.0
    %2034 = vmatprep.subr.mxu0 0.0
    %2035 = vmatpush1.msra.mxu0 0.0
    %2036 = vmatprep.subr.mxu0 0.0
    %2037 = vmatpush1.msra.mxu0 0.0
    %2038 = vmatprep.subr.mxu0 0.0
    %2039 = vmatpush1.msra.mxu0 0.0
    %2040 = vmatprep.subr.mxu0 0.0
    %2041 = vmatpush1.msra.mxu0 0.0
    %2042 = vmatprep.subr.mxu0 0.0
    %2043 = vmatpush1.msra.mxu0 0.0
    %2044 = vmatprep.subr.mxu0 0.0
    %2045 = vmatpush1.msra.mxu0 0.0
    %2046 = vmatprep.subr.mxu0 0.0
    %2047 = vmatpush1.msra.mxu0 0.0
    %2048 = vmatprep.mubr.f32.mxu0 0.0
    %2049 = vmatmul.mubr.f32.gmra.mrb[0].mxu0 %v1889
    %v2050 = vpop.f32.mrb[0].mxu0
    %v2051 = vadd.f32 0.0, %v2050
    %v2052 = vpop.f32.mrb[0].mxu0
    %v2053 = vadd.f32 0.0, %v2052
    %2054 = vmatprep.mubr.f32.mxu0 0.0
    %2055 = vmatmul.mubr.f32.gmra.mrb[0].mxu0 %v1892
    %v2056 = vpop.f32.mrb[0].mxu0
    %v2057 = vadd.f32 0.0, %v2056
    %v2058 = vpop.f32.mrb[0].mxu0
    %v2059 = vadd.f32 0.0, %v2058
    %2060 = vmatprep.mubr.f32.mxu0 0.0
    %2061 = vmatmul.mubr.f32.gmra.mrb[0].mxu0 %v1895
    %v2062 = vpop.f32.mrb[0].mxu0
    %v2063 = vadd.f32 0.0, %v2062
    %v2064 = vpop.f32.mrb[0].mxu0
    %v2065 = vadd.f32 0.0, %v2064
    %2066 = vmatprep.mubr.f32.mxu0 0.0
    %2067 = vmatmul.mubr.f32.gmra.mrb[0].mxu0 %v1898
    %v2068 = vpop.f32.mrb[0].mxu0
    %v2069 = vadd.f32 0.0, %v2068
    %v2070 = vpop.f32.mrb[0].mxu0
    %v2071 = vadd.f32 0.0, %v2070
    %2072 = vmatprep.mubr.f32.mxu0 0.0
    %2073 = vmatmul.mubr.f32.gmra.mrb[0].mxu0 %v1901
    %v2074 = vpop.f32.mrb[0].mxu0
    %v2075 = vadd.f32 0.0, %v2074
    %v2076 = vpop.f32.mrb[0].mxu0
    %v2077 = vadd.f32 0.0, %v2076
    %2078 = vmatprep.mubr.f32.mxu0 0.0
    %2079 = vmatmul.mubr.f32.gmra.mrb[0].mxu0 %v1904
    %v2080 = vpop.f32.mrb[0].mxu0
    %v2081 = vadd.f32 0.0, %v2080
    %v2082 = vpop.f32.mrb[0].mxu0
    %v2083 = vadd.f32 0.0, %v2082
    %2084 = vmatprep.mubr.f32.mxu0 0.0
    %2085 = vmatmul.mubr.f32.gmra.mrb[0].mxu0 %v1907
    %v2086 = vpop.f32.mrb[0].mxu0
    %v2087 = vadd.f32 0.0, %v2086
    %v2088 = vpop.f32.mrb[0].mxu0
    %v2089 = vadd.f32 0.0, %v2088
    %2090 = vmatprep.mubr.f32.mxu0 0.0
    %2091 = vmatmul.mubr.f32.gmra.mrb[0].mxu0 %v1910
    %v2092 = vpop.f32.mrb[0].mxu0
    %v2093 = vadd.f32 0.0, %v2092
    %v2094 = vpop.f32.mrb[0].mxu0
    %v2095 = vadd.f32 0.0, %v2094
    %2096 = vmatprep.mubr.f32.mxu0 0.0
    %2097 = vmatmul.mubr.f32.gmra.mrb[0].mxu0 %v1913
    %v2098 = vpop.f32.mrb[0].mxu0
    %v2099 = vadd.f32 0.0, %v2098
    %v2100 = vpop.f32.mrb[0].mxu0
    %v2101 = vadd.f32 0.0, %v2100
    %2102 = vmatprep.mubr.f32.mxu0 0.0
    %2103 = vmatmul.mubr.f32.gmra.mrb[0].mxu0 %v1916
    %v2104 = vpop.f32.mrb[0].mxu0
    %v2105 = vadd.f32 0.0, %v2104
    %v2106 = vpop.f32.mrb[0].mxu0
    %v2107 = vadd.f32 0.0, %v2106
    %2108 = vmatprep.mubr.f32.mxu0 0.0
    %2109 = vmatmul.mubr.f32.gmra.mrb[0].mxu0 %v1919
    %v2110 = vpop.f32.mrb[0].mxu0
    %v2111 = vadd.f32 0.0, %v2110
    %v2112 = vpop.f32.mrb[0].mxu0
    %v2113 = vadd.f32 0.0, %v2112
    %2114 = vmatprep.mubr.f32.mxu0 0.0
    %2115 = vmatmul.mubr.f32.gmra.mrb[0].mxu0 %v1922
    %v2116 = vpop.f32.mrb[0].mxu0
    %v2117 = vadd.f32 0.0, %v2116
    %v2118 = vpop.f32.mrb[0].mxu0
    %v2119 = vadd.f32 0.0, %v2118
    %2120 = vmatprep.mubr.f32.mxu0 0.0
    %2121 = vmatmul.mubr.f32.gmra.mrb[0].mxu0 %v1925
    %v2122 = vpop.f32.mrb[0].mxu0
    %v2123 = vadd.f32 0.0, %v2122
    %v2124 = vpop.f32.mrb[0].mxu0
    %v2125 = vadd.f32 0.0, %v2124
    %2126 = vmatprep.mubr.f32.mxu0 0.0
    %2127 = vmatmul.mubr.f32.gmra.mrb[0].mxu0 %v1928
    %v2128 = vpop.f32.mrb[0].mxu0
    %v2129 = vadd.f32 0.0, %v2128
    %v2130 = vpop.f32.mrb[0].mxu0
    %v2131 = vadd.f32 0.0, %v2130
    %2132 = vmatprep.mubr.f32.mxu0 0.0
    %2133 = vmatmul.mubr.f32.gmra.mrb[0].mxu0 %v1931
    %v2134 = vpop.f32.mrb[0].mxu0
    %v2135 = vadd.f32 0.0, %v2134
    %v2136 = vpop.f32.mrb[0].mxu0
    %v2137 = vadd.f32 0.0, %v2136
    %2138 = vmatprep.mubr.f32.mxu0 0.0
    %2139 = vmatmul.mubr.f32.gmra.mrb[0].mxu0 %v1934
    %v2140 = vpop.f32.mrb[0].mxu0
    %v2141 = vadd.f32 0.0, %v2140
    %v2142 = vpop.f32.mrb[0].mxu0
    %v2143 = vadd.f32 0.0, %v2142
    %2144 = vmatprep.mubr.f32.mxu0 0.0
    %2145 = vmatmul.mubr.f32.gmra.mrb[0].mxu0 %v1937
    %v2146 = vpop.f32.mrb[0].mxu0
    %v2147 = vadd.f32 0.0, %v2146
    %v2148 = vpop.f32.mrb[0].mxu0
    %v2149 = vadd.f32 0.0, %v2148
    %2150 = vmatprep.mubr.f32.mxu0 0.0
    %2151 = vmatmul.mubr.f32.gmra.mrb[0].mxu0 %v1940
    %v2152 = vpop.f32.mrb[0].mxu0
    %v2153 = vadd.f32 0.0, %v2152
    %v2154 = vpop.f32.mrb[0].mxu0
    %v2155 = vadd.f32 0.0, %v2154
    %2156 = vmatprep.mubr.f32.mxu0 0.0
    %2157 = vmatmul.mubr.f32.gmra.mrb[0].mxu0 %v1943
    %v2158 = vpop.f32.mrb[0].mxu0
    %v2159 = vadd.f32 0.0, %v2158
    %v2160 = vpop.f32.mrb[0].mxu0
    %v2161 = vadd.f32 0.0, %v2160
    %2162 = vmatprep.mubr.f32.mxu0 0.0
    %2163 = vmatmul.mubr.f32.gmra.mrb[0].mxu0 %v1946
    %v2164 = vpop.f32.mrb[0].mxu0
    %v2165 = vadd.f32 0.0, %v2164
    %v2166 = vpop.f32.mrb[0].mxu0
    %v2167 = vadd.f32 0.0, %v2166
    %2168 = vmatprep.mubr.f32.mxu0 0.0
    %2169 = vmatmul.mubr.f32.gmra.mrb[0].mxu0 %v1949
    %v2170 = vpop.f32.mrb[0].mxu0
    %v2171 = vadd.f32 0.0, %v2170
    %v2172 = vpop.f32.mrb[0].mxu0
    %v2173 = vadd.f32 0.0, %v2172
    %2174 = vmatprep.mubr.f32.mxu0 0.0
    %2175 = vmatmul.mubr.f32.gmra.mrb[0].mxu0 %v1952
    %v2176 = vpop.f32.mrb[0].mxu0
    %v2177 = vadd.f32 0.0, %v2176
    %v2178 = vpop.f32.mrb[0].mxu0
    %v2179 = vadd.f32 0.0, %v2178
    %2180 = vmatprep.mubr.f32.mxu0 0.0
    %2181 = vmatmul.mubr.f32.gmra.mrb[0].mxu0 %v1955
    %v2182 = vpop.f32.mrb[0].mxu0
    %v2183 = vadd.f32 0.0, %v2182
    %v2184 = vpop.f32.mrb[0].mxu0
    %v2185 = vadd.f32 0.0, %v2184
    %2186 = vmatprep.mubr.f32.mxu0 0.0
    %2187 = vmatmul.mubr.f32.gmra.mrb[0].mxu0 %v1958
    %v2188 = vpop.f32.mrb[0].mxu0
    %v2189 = vadd.f32 0.0, %v2188
    %v2190 = vpop.f32.mrb[0].mxu0
    %v2191 = vadd.f32 0.0, %v2190
    %2192 = vmatprep.mubr.f32.mxu0 0.0
    %2193 = vmatmul.mubr.f32.gmra.mrb[0].mxu0 %v1961
    %v2194 = vpop.f32.mrb[0].mxu0
    %v2195 = vadd.f32 0.0, %v2194
    %v2196 = vpop.f32.mrb[0].mxu0
    %v2197 = vadd.f32 0.0, %v2196
    %2198 = vmatprep.mubr.f32.mxu0 0.0
    %2199 = vmatmul.mubr.f32.gmra.mrb[0].mxu0 %v1964
    %v2200 = vpop.f32.mrb[0].mxu0
    %v2201 = vadd.f32 0.0, %v2200
    %v2202 = vpop.f32.mrb[0].mxu0
    %v2203 = vadd.f32 0.0, %v2202
    %2204 = vmatprep.mubr.f32.mxu0 0.0
    %2205 = vmatmul.mubr.f32.gmra.mrb[0].mxu0 %v1967
    %v2206 = vpop.f32.mrb[0].mxu0
    %v2207 = vadd.f32 0.0, %v2206
    %v2208 = vpop.f32.mrb[0].mxu0
    %v2209 = vadd.f32 0.0, %v2208
    %2210 = vmatprep.mubr.f32.mxu0 0.0
    %2211 = vmatmul.mubr.f32.gmra.mrb[0].mxu0 %v1970
    %v2212 = vpop.f32.mrb[0].mxu0
    %v2213 = vadd.f32 0.0, %v2212
    %v2214 = vpop.f32.mrb[0].mxu0
    %v2215 = vadd.f32 0.0, %v2214
    %2216 = vmatprep.mubr.f32.mxu0 0.0
    %2217 = vmatmul.mubr.f32.gmra.mrb[0].mxu0 %v1973
    %v2218 = vpop.f32.mrb[0].mxu0
    %v2219 = vadd.f32 0.0, %v2218
    %v2220 = vpop.f32.mrb[0].mxu0
    %v2221 = vadd.f32 0.0, %v2220
    %2222 = vmatprep.mubr.f32.mxu0 0.0
    %2223 = vmatmul.mubr.f32.gmra.mrb[0].mxu0 %v1976
    %v2224 = vpop.f32.mrb[0].mxu0
    %v2225 = vadd.f32 0.0, %v2224
    %v2226 = vpop.f32.mrb[0].mxu0
    %v2227 = vadd.f32 0.0, %v2226
    %2228 = vmatprep.mubr.f32.mxu0 0.0
    %2229 = vmatmul.mubr.f32.gmra.mrb[0].mxu0 %v1979
    %v2230 = vpop.f32.mrb[0].mxu0
    %v2231 = vadd.f32 0.0, %v2230
    %v2232 = vpop.f32.mrb[0].mxu0
    %v2233 = vadd.f32 0.0, %v2232
    %2234 = vmatprep.mubr.f32.mxu0 0.0
    %2235 = vmatmul.mubr.f32.gmra.mrb[0].mxu0 %v1982
    %v2236 = vpop.f32.mrb[0].mxu0
    %v2237 = vadd.f32 0.0, %v2236
    %v2238 = vpop.f32.mrb[0].mxu0
    %v2239 = vadd.f32 0.0, %v2238
    %2240 = vdwg.mxu0
    %v2241 = vsub.f32 %v2051, 0.3
    %v2242 = vsub.f32 %v2053, 0.3
    %v2243 = vsub.f32 %v2057, 0.3
    %v2244 = vsub.f32 %v2059, 0.3
    %v2245 = vsub.f32 %v2063, 0.3
    %v2246 = vsub.f32 %v2065, 0.3
    %v2247 = vsub.f32 %v2069, 0.3
    %v2248 = vsub.f32 %v2071, 0.3
    %v2249 = vsub.f32 %v2075, 0.3
    %v2250 = vsub.f32 %v2077, 0.3
    %v2251 = vsub.f32 %v2081, 0.3
    %v2252 = vsub.f32 %v2083, 0.3
    %v2253 = vsub.f32 %v2087, 0.3
    %v2254 = vsub.f32 %v2089, 0.3
    %v2255 = vsub.f32 %v2093, 0.3
    %v2256 = vsub.f32 %v2095, 0.3
    %v2257 = vsub.f32 %v2099, 0.3
    %v2258 = vsub.f32 %v2101, 0.3
    %v2259 = vsub.f32 %v2105, 0.3
    %v2260 = vsub.f32 %v2107, 0.3
    %v2261 = vsub.f32 %v2111, 0.3
    %v2262 = vsub.f32 %v2113, 0.3
    %v2263 = vsub.f32 %v2117, 0.3
    %v2264 = vsub.f32 %v2119, 0.3
    %v2265 = vsub.f32 %v2123, 0.3
    %v2266 = vsub.f32 %v2125, 0.3
    %v2267 = vsub.f32 %v2129, 0.3
    %v2268 = vsub.f32 %v2131, 0.3
    %v2269 = vsub.f32 %v2135, 0.3
    %v2270 = vsub.f32 %v2137, 0.3
    %v2271 = vsub.f32 %v2141, 0.3
    %v2272 = vsub.f32 %v2143, 0.3
    %v2273 = vsub.f32 %v2147, 0.3
    %v2274 = vsub.f32 %v2149, 0.3
    %v2275 = vsub.f32 %v2153, 0.3
    %v2276 = vsub.f32 %v2155, 0.3
    %v2277 = vsub.f32 %v2159, 0.3
    %v2278 = vsub.f32 %v2161, 0.3
    %v2279 = vsub.f32 %v2165, 0.3
    %v2280 = vsub.f32 %v2167, 0.3
    %v2281 = vsub.f32 %v2171, 0.3
    %v2282 = vsub.f32 %v2173, 0.3
    %v2283 = vsub.f32 %v2177, 0.3
    %v2284 = vsub.f32 %v2179, 0.3
    %v2285 = vsub.f32 %v2183, 0.3
    %v2286 = vsub.f32 %v2185, 0.3
    %v2287 = vsub.f32 %v2189, 0.3
    %v2288 = vsub.f32 %v2191, 0.3
    %v2289 = vsub.f32 %v2195, 0.3
    %v2290 = vsub.f32 %v2197, 0.3
    %v2291 = vsub.f32 %v2201, 0.3
    %v2292 = vsub.f32 %v2203, 0.3
    %v2293 = vsub.f32 %v2207, 0.3
    %v2294 = vsub.f32 %v2209, 0.3
    %v2295 = vsub.f32 %v2213, 0.3
    %v2296 = vsub.f32 %v2215, 0.3
    %v2297 = vsub.f32 %v2219, 0.3
    %v2298 = vsub.f32 %v2221, 0.3
    %v2299 = vsub.f32 %v2225, 0.3
    %v2300 = vsub.f32 %v2227, 0.3
    %v2301 = vsub.f32 %v2231, 0.3
    %v2302 = vsub.f32 %v2233, 0.3
    %v2303 = vsub.f32 %v2237, 0.3
    %v2304 = vsub.f32 %v2239, 0.3
    %v2305 = vmul.f32 %v1768, 1.442695
    %v2306 = vpow.pop %v2305
    %v2307 = vmul.f32 %v1769, 1.442695
    %v2308 = vpow.pop %v2307
    %v2309 = vmul.f32 %v2306, %v1768
    %v2310 = vmul.f32 %v2308, %v1769
    %v2311 = vrot.slane %v2309, 4
    %v2312 = vadd.f32 %v2309, %v2311
    %v2313 = vrot.slane %v2312, 2
    %v2314 = vadd.f32 %v2312, %v2313
    %v2315 = vrot.slane %v2314, 1
    %v2316 = vadd.f32 %v2314, %v2315
    %v2317 = vrot.slane %v2310, 4
    %v2318 = vadd.f32 %v2310, %v2317
    %v2319 = vrot.slane %v2318, 2
    %v2320 = vadd.f32 %v2318, %v2319
    %v2321 = vrot.slane %v2320, 1
    %v2322 = vadd.f32 %v2320, %v2321
    %v2323 = vpack.c.bf16 %v1768, %v1768
    %v2324 = vpack.c.bf16 %v1769, %v1769
    %v2325 = vpack.c.bf16 %v2306, %v2306
    %v2326 = vpack.c.bf16 %v2308, %v2308
    %2327 = vxpose.xlu0.c.b16.start [1/8] %v2323, 128
    %2328 = vxpose.xlu0.c.b16.cont [2/8] 0, 128
    %2329 = vxpose.xlu0.c.b16.cont [3/8] 0, 128
    %2330 = vxpose.xlu0.c.b16.cont [4/8] 0, 128
    %2331 = vxpose.xlu0.c.b16.cont [5/8] 0, 128
    %2332 = vxpose.xlu0.c.b16.cont [6/8] 0, 128
    %2333 = vxpose.xlu0.c.b16.cont [7/8] 0, 128
    %2334 = vxpose.xlu0.c.b16.end [8/8] 0, 128
    %v2335 = vpop.trf.xlu0
    %v2336 = vpop.trf.xlu0
    %v2337 = vpop.trf.xlu0
    %v2338 = vpop.trf.xlu0
    %v2339 = vpop.trf.xlu0
    %v2340 = vpop.trf.xlu0
    %v2341 = vpop.trf.xlu0
    %v2342 = vpop.trf.xlu0
    %2343 = vxpose.xlu0.c.b16.start [1/8] %v2324, 128
    %2344 = vxpose.xlu0.c.b16.cont [2/8] 0, 128
    %2345 = vxpose.xlu0.c.b16.cont [3/8] 0, 128
    %2346 = vxpose.xlu0.c.b16.cont [4/8] 0, 128
    %2347 = vxpose.xlu0.c.b16.cont [5/8] 0, 128
    %2348 = vxpose.xlu0.c.b16.cont [6/8] 0, 128
    %2349 = vxpose.xlu0.c.b16.cont [7/8] 0, 128
    %2350 = vxpose.xlu0.c.b16.end [8/8] 0, 128
    %v2351 = vpop.trf.xlu0
    %v2352 = vpop.trf.xlu0
    %v2353 = vpop.trf.xlu0
    %v2354 = vpop.trf.xlu0
    %v2355 = vpop.trf.xlu0
    %v2356 = vpop.trf.xlu0
    %v2357 = vpop.trf.xlu0
    %v2358 = vpop.trf.xlu0
    %v2360 = vsel %vm641, %v2335, 0
    %v2363 = vsel %vm641, %v2336, 0
    %v2366 = vsel %vm641, %v2337, 0
    %v2369 = vsel %vm641, %v2338, 0
    %v2372 = vsel %vm641, %v2339, 0
    %v2375 = vsel %vm641, %v2340, 0
    %v2378 = vsel %vm641, %v2341, 0
    %v2381 = vsel %vm641, %v2342, 0
    %v2384 = vsel %vm641, %v2351, 0
    %v2387 = vsel %vm641, %v2352, 0
    %v2390 = vsel %vm641, %v2353, 0
    %v2393 = vsel %vm641, %v2354, 0
    %v2396 = vsel %vm641, %v2355, 0
    %v2399 = vsel %vm641, %v2356, 0
    %v2402 = vsel %vm641, %v2357, 0
    %v2405 = vsel %vm641, %v2358, 0
    %v2408 = vsel %vm690, %v2325, 0
    %v2411 = vsel %vm690, %v2326, 0
    %2413 = vmatprep.subr.bf16.mxu0 %v2411
    %2414 = vmatpush1.bf16.msra.mxu0 %v2408
    %2415 = vmatprep.subr.bf16.mxu0 0
    %2416 = vmatpush1.bf16.msra.mxu0 0
    %2417 = vmatprep.subr.bf16.mxu0 0
    %2418 = vmatpush1.bf16.msra.mxu0 0
    %2419 = vmatprep.subr.bf16.mxu0 0
    %2420 = vmatpush1.bf16.msra.mxu0 0
    %2421 = vmatprep.subr.bf16.mxu0 0
    %2422 = vmatpush1.bf16.msra.mxu0 0
    %2423 = vmatprep.subr.bf16.mxu0 0
    %2424 = vmatpush1.bf16.msra.mxu0 0
    %2425 = vmatprep.subr.bf16.mxu0 0
    %2426 = vmatpush1.bf16.msra.mxu0 0
    %2427 = vmatprep.subr.bf16.mxu0 0
    %2428 = vmatpush1.bf16.msra.mxu0 0
    %2429 = vmatprep.subr.bf16.mxu0 0
    %2430 = vmatpush1.bf16.msra.mxu0 0
    %2431 = vmatprep.subr.bf16.mxu0 0
    %2432 = vmatpush1.bf16.msra.mxu0 0
    %2433 = vmatprep.subr.bf16.mxu0 0
    %2434 = vmatpush1.bf16.msra.mxu0 0
    %2435 = vmatprep.subr.bf16.mxu0 0
    %2436 = vmatpush1.bf16.msra.mxu0 0
    %2437 = vmatprep.subr.bf16.mxu0 0
    %2438 = vmatpush1.bf16.msra.mxu0 0
    %2439 = vmatprep.subr.bf16.mxu0 0
    %2440 = vmatpush1.bf16.msra.mxu0 0
    %2441 = vmatprep.subr.bf16.mxu0 0
    %2442 = vmatpush1.bf16.msra.mxu0 0
    %2443 = vmatprep.subr.bf16.mxu0 0
    %2444 = vmatpush1.bf16.msra.mxu0 0
    %2445 = vmatprep.mubr.bf16.mxu0 0
    %2446 = vmatmul.mubr.bf16.gmra.mrb[0].mxu0 %v2360
    %v2447 = vpop.f32.mrb[0].mxu0
    %v2448 = vadd.f32 0.0, %v2447
    %v2449 = vpop.f32.mrb[0].mxu0
    %v2450 = vadd.f32 0.0, %v2449
    %v2451 = vpop.f32.mrb[0].mxu0
    %v2452 = vadd.f32 0.0, %v2451
    %v2453 = vpop.f32.mrb[0].mxu0
    %v2454 = vadd.f32 0.0, %v2453
    %2455 = vmatprep.mubr.bf16.mxu0 0
    %2456 = vmatmul.mubr.bf16.gmra.mrb[0].mxu0 %v2363
    %v2457 = vpop.f32.mrb[0].mxu0
    %v2458 = vadd.f32 0.0, %v2457
    %v2459 = vpop.f32.mrb[0].mxu0
    %v2460 = vadd.f32 0.0, %v2459
    %v2461 = vpop.f32.mrb[0].mxu0
    %v2462 = vadd.f32 0.0, %v2461
    %v2463 = vpop.f32.mrb[0].mxu0
    %v2464 = vadd.f32 0.0, %v2463
    %2465 = vmatprep.mubr.bf16.mxu0 0
    %2466 = vmatmul.mubr.bf16.gmra.mrb[0].mxu0 %v2366
    %v2467 = vpop.f32.mrb[0].mxu0
    %v2468 = vadd.f32 0.0, %v2467
    %v2469 = vpop.f32.mrb[0].mxu0
    %v2470 = vadd.f32 0.0, %v2469
    %v2471 = vpop.f32.mrb[0].mxu0
    %v2472 = vadd.f32 0.0, %v2471
    %v2473 = vpop.f32.mrb[0].mxu0
    %v2474 = vadd.f32 0.0, %v2473
    %2475 = vmatprep.mubr.bf16.mxu0 0
    %2476 = vmatmul.mubr.bf16.gmra.mrb[0].mxu0 %v2369
    %v2477 = vpop.f32.mrb[0].mxu0
    %v2478 = vadd.f32 0.0, %v2477
    %v2479 = vpop.f32.mrb[0].mxu0
    %v2480 = vadd.f32 0.0, %v2479
    %v2481 = vpop.f32.mrb[0].mxu0
    %v2482 = vadd.f32 0.0, %v2481
    %v2483 = vpop.f32.mrb[0].mxu0
    %v2484 = vadd.f32 0.0, %v2483
    %2485 = vmatprep.mubr.bf16.mxu0 0
    %2486 = vmatmul.mubr.bf16.gmra.mrb[0].mxu0 %v2372
    %v2487 = vpop.f32.mrb[0].mxu0
    %v2488 = vadd.f32 0.0, %v2487
    %v2489 = vpop.f32.mrb[0].mxu0
    %v2490 = vadd.f32 0.0, %v2489
    %v2491 = vpop.f32.mrb[0].mxu0
    %v2492 = vadd.f32 0.0, %v2491
    %v2493 = vpop.f32.mrb[0].mxu0
    %v2494 = vadd.f32 0.0, %v2493
    %2495 = vmatprep.mubr.bf16.mxu0 0
    %2496 = vmatmul.mubr.bf16.gmra.mrb[0].mxu0 %v2375
    %v2497 = vpop.f32.mrb[0].mxu0
    %v2498 = vadd.f32 0.0, %v2497
    %v2499 = vpop.f32.mrb[0].mxu0
    %v2500 = vadd.f32 0.0, %v2499
    %v2501 = vpop.f32.mrb[0].mxu0
    %v2502 = vadd.f32 0.0, %v2501
    %v2503 = vpop.f32.mrb[0].mxu0
    %v2504 = vadd.f32 0.0, %v2503
    %2505 = vmatprep.mubr.bf16.mxu0 0
    %2506 = vmatmul.mubr.bf16.gmra.mrb[0].mxu0 %v2378
    %v2507 = vpop.f32.mrb[0].mxu0
    %v2508 = vadd.f32 0.0, %v2507
    %v2509 = vpop.f32.mrb[0].mxu0
    %v2510 = vadd.f32 0.0, %v2509
    %v2511 = vpop.f32.mrb[0].mxu0
    %v2512 = vadd.f32 0.0, %v2511
    %v2513 = vpop.f32.mrb[0].mxu0
    %v2514 = vadd.f32 0.0, %v2513
    %2515 = vmatprep.mubr.bf16.mxu0 0
    %2516 = vmatmul.mubr.bf16.gmra.mrb[0].mxu0 %v2381
    %v2517 = vpop.f32.mrb[0].mxu0
    %v2518 = vadd.f32 0.0, %v2517
    %v2519 = vpop.f32.mrb[0].mxu0
    %v2520 = vadd.f32 0.0, %v2519
    %v2521 = vpop.f32.mrb[0].mxu0
    %v2522 = vadd.f32 0.0, %v2521
    %v2523 = vpop.f32.mrb[0].mxu0
    %v2524 = vadd.f32 0.0, %v2523
    %2525 = vmatprep.mubr.bf16.mxu0 0
    %2526 = vmatmul.mubr.bf16.gmra.mrb[0].mxu0 %v2384
    %v2527 = vpop.f32.mrb[0].mxu0
    %v2528 = vadd.f32 0.0, %v2527
    %v2529 = vpop.f32.mrb[0].mxu0
    %v2530 = vadd.f32 0.0, %v2529
    %v2531 = vpop.f32.mrb[0].mxu0
    %v2532 = vadd.f32 0.0, %v2531
    %v2533 = vpop.f32.mrb[0].mxu0
    %v2534 = vadd.f32 0.0, %v2533
    %2535 = vmatprep.mubr.bf16.mxu0 0
    %2536 = vmatmul.mubr.bf16.gmra.mrb[0].mxu0 %v2387
    %v2537 = vpop.f32.mrb[0].mxu0
    %v2538 = vadd.f32 0.0, %v2537
    %v2539 = vpop.f32.mrb[0].mxu0
    %v2540 = vadd.f32 0.0, %v2539
    %v2541 = vpop.f32.mrb[0].mxu0
    %v2542 = vadd.f32 0.0, %v2541
    %v2543 = vpop.f32.mrb[0].mxu0
    %v2544 = vadd.f32 0.0, %v2543
    %2545 = vmatprep.mubr.bf16.mxu0 0
    %2546 = vmatmul.mubr.bf16.gmra.mrb[0].mxu0 %v2390
    %v2547 = vpop.f32.mrb[0].mxu0
    %v2548 = vadd.f32 0.0, %v2547
    %v2549 = vpop.f32.mrb[0].mxu0
    %v2550 = vadd.f32 0.0, %v2549
    %v2551 = vpop.f32.mrb[0].mxu0
    %v2552 = vadd.f32 0.0, %v2551
    %v2553 = vpop.f32.mrb[0].mxu0
    %v2554 = vadd.f32 0.0, %v2553
    %2555 = vmatprep.mubr.bf16.mxu0 0
    %2556 = vmatmul.mubr.bf16.gmra.mrb[0].mxu0 %v2393
    %v2557 = vpop.f32.mrb[0].mxu0
    %v2558 = vadd.f32 0.0, %v2557
    %v2559 = vpop.f32.mrb[0].mxu0
    %v2560 = vadd.f32 0.0, %v2559
    %v2561 = vpop.f32.mrb[0].mxu0
    %v2562 = vadd.f32 0.0, %v2561
    %v2563 = vpop.f32.mrb[0].mxu0
    %v2564 = vadd.f32 0.0, %v2563
    %2565 = vmatprep.mubr.bf16.mxu0 0
    %2566 = vmatmul.mubr.bf16.gmra.mrb[0].mxu0 %v2396
    %v2567 = vpop.f32.mrb[0].mxu0
    %v2568 = vadd.f32 0.0, %v2567
    %v2569 = vpop.f32.mrb[0].mxu0
    %v2570 = vadd.f32 0.0, %v2569
    %v2571 = vpop.f32.mrb[0].mxu0
    %v2572 = vadd.f32 0.0, %v2571
    %v2573 = vpop.f32.mrb[0].mxu0
    %v2574 = vadd.f32 0.0, %v2573
    %2575 = vmatprep.mubr.bf16.mxu0 0
    %2576 = vmatmul.mubr.bf16.gmra.mrb[0].mxu0 %v2399
    %v2577 = vpop.f32.mrb[0].mxu0
    %v2578 = vadd.f32 0.0, %v2577
    %v2579 = vpop.f32.mrb[0].mxu0
    %v2580 = vadd.f32 0.0, %v2579
    %v2581 = vpop.f32.mrb[0].mxu0
    %v2582 = vadd.f32 0.0, %v2581
    %v2583 = vpop.f32.mrb[0].mxu0
    %v2584 = vadd.f32 0.0, %v2583
    %2585 = vmatprep.mubr.bf16.mxu0 0
    %2586 = vmatmul.mubr.bf16.gmra.mrb[0].mxu0 %v2402
    %v2587 = vpop.f32.mrb[0].mxu0
    %v2588 = vadd.f32 0.0, %v2587
    %v2589 = vpop.f32.mrb[0].mxu0
    %v2590 = vadd.f32 0.0, %v2589
    %v2591 = vpop.f32.mrb[0].mxu0
    %v2592 = vadd.f32 0.0, %v2591
    %v2593 = vpop.f32.mrb[0].mxu0
    %v2594 = vadd.f32 0.0, %v2593
    %2595 = vmatprep.mubr.bf16.mxu0 0
    %2596 = vmatmul.mubr.bf16.gmra.mrb[0].mxu0 %v2405
    %v2597 = vpop.f32.mrb[0].mxu0
    %v2598 = vadd.f32 0.0, %v2597
    %v2599 = vpop.f32.mrb[0].mxu0
    %v2600 = vadd.f32 0.0, %v2599
    %v2601 = vpop.f32.mrb[0].mxu0
    %v2602 = vadd.f32 0.0, %v2601
    %v2603 = vpop.f32.mrb[0].mxu0
    %v2604 = vadd.f32 0.0, %v2603
    %2605 = vdwg.mxu0
    %v2606 = vsub.f32 %v2316, %v2448
    %v2607 = vsub.f32 %v2322, %v2450
    %v2608 = vsub.f32 %v2316, %v2452
    %v2609 = vsub.f32 %v2322, %v2454
    %v2610 = vsub.f32 %v2316, %v2458
    %v2611 = vsub.f32 %v2322, %v2460
    %v2612 = vsub.f32 %v2316, %v2462
    %v2613 = vsub.f32 %v2322, %v2464
    %v2614 = vsub.f32 %v2316, %v2468
    %v2615 = vsub.f32 %v2322, %v2470
    %v2616 = vsub.f32 %v2316, %v2472
    %v2617 = vsub.f32 %v2322, %v2474
    %v2618 = vsub.f32 %v2316, %v2478
    %v2619 = vsub.f32 %v2322, %v2480
    %v2620 = vsub.f32 %v2316, %v2482
    %v2621 = vsub.f32 %v2322, %v2484
    %v2622 = vsub.f32 %v2316, %v2488
    %v2623 = vsub.f32 %v2322, %v2490
    %v2624 = vsub.f32 %v2316, %v2492
    %v2625 = vsub.f32 %v2322, %v2494
    %v2626 = vsub.f32 %v2316, %v2498
    %v2627 = vsub.f32 %v2322, %v2500
    %v2628 = vsub.f32 %v2316, %v2502
    %v2629 = vsub.f32 %v2322, %v2504
    %v2630 = vsub.f32 %v2316, %v2508
    %v2631 = vsub.f32 %v2322, %v2510
    %v2632 = vsub.f32 %v2316, %v2512
    %v2633 = vsub.f32 %v2322, %v2514
    %v2634 = vsub.f32 %v2316, %v2518
    %v2635 = vsub.f32 %v2322, %v2520
    %v2636 = vsub.f32 %v2316, %v2522
    %v2637 = vsub.f32 %v2322, %v2524
    %v2638 = vsub.f32 %v2316, %v2528
    %v2639 = vsub.f32 %v2322, %v2530
    %v2640 = vsub.f32 %v2316, %v2532
    %v2641 = vsub.f32 %v2322, %v2534
    %v2642 = vsub.f32 %v2316, %v2538
    %v2643 = vsub.f32 %v2322, %v2540
    %v2644 = vsub.f32 %v2316, %v2542
    %v2645 = vsub.f32 %v2322, %v2544
    %v2646 = vsub.f32 %v2316, %v2548
    %v2647 = vsub.f32 %v2322, %v2550
    %v2648 = vsub.f32 %v2316, %v2552
    %v2649 = vsub.f32 %v2322, %v2554
    %v2650 = vsub.f32 %v2316, %v2558
    %v2651 = vsub.f32 %v2322, %v2560
    %v2652 = vsub.f32 %v2316, %v2562
    %v2653 = vsub.f32 %v2322, %v2564
    %v2654 = vsub.f32 %v2316, %v2568
    %v2655 = vsub.f32 %v2322, %v2570
    %v2656 = vsub.f32 %v2316, %v2572
    %v2657 = vsub.f32 %v2322, %v2574
    %v2658 = vsub.f32 %v2316, %v2578
    %v2659 = vsub.f32 %v2322, %v2580
    %v2660 = vsub.f32 %v2316, %v2582
    %v2661 = vsub.f32 %v2322, %v2584
    %v2662 = vsub.f32 %v2316, %v2588
    %v2663 = vsub.f32 %v2322, %v2590
    %v2664 = vsub.f32 %v2316, %v2592
    %v2665 = vsub.f32 %v2322, %v2594
    %v2666 = vsub.f32 %v2316, %v2598
    %v2667 = vsub.f32 %v2322, %v2600
    %v2668 = vsub.f32 %v2316, %v2602
    %v2669 = vsub.f32 %v2322, %v2604
    %v2670 = vmul.f32 %v2241, %v2606
    %v2671 = vmul.f32 %v2242, %v2607
    %v2672 = vmul.f32 %v2243, %v2608
    %v2673 = vmul.f32 %v2244, %v2609
    %v2674 = vmul.f32 %v2245, %v2610
    %v2675 = vmul.f32 %v2246, %v2611
    %v2676 = vmul.f32 %v2247, %v2612
    %v2677 = vmul.f32 %v2248, %v2613
    %v2678 = vmul.f32 %v2249, %v2614
    %v2679 = vmul.f32 %v2250, %v2615
    %v2680 = vmul.f32 %v2251, %v2616
    %v2681 = vmul.f32 %v2252, %v2617
    %v2682 = vmul.f32 %v2253, %v2618
    %v2683 = vmul.f32 %v2254, %v2619
    %v2684 = vmul.f32 %v2255, %v2620
    %v2685 = vmul.f32 %v2256, %v2621
    %v2686 = vmul.f32 %v2257, %v2622
    %v2687 = vmul.f32 %v2258, %v2623
    %v2688 = vmul.f32 %v2259, %v2624
    %v2689 = vmul.f32 %v2260, %v2625
    %v2690 = vmul.f32 %v2261, %v2626
    %v2691 = vmul.f32 %v2262, %v2627
    %v2692 = vmul.f32 %v2263, %v2628
    %v2693 = vmul.f32 %v2264, %v2629
    %v2694 = vmul.f32 %v2265, %v2630
    %v2695 = vmul.f32 %v2266, %v2631
    %v2696 = vmul.f32 %v2267, %v2632
    %v2697 = vmul.f32 %v2268, %v2633
    %v2698 = vmul.f32 %v2269, %v2634
    %v2699 = vmul.f32 %v2270, %v2635
    %v2700 = vmul.f32 %v2271, %v2636
    %v2701 = vmul.f32 %v2272, %v2637
    %v2702 = vmul.f32 %v2273, %v2638
    %v2703 = vmul.f32 %v2274, %v2639
    %v2704 = vmul.f32 %v2275, %v2640
    %v2705 = vmul.f32 %v2276, %v2641
    %v2706 = vmul.f32 %v2277, %v2642
    %v2707 = vmul.f32 %v2278, %v2643
    %v2708 = vmul.f32 %v2279, %v2644
    %v2709 = vmul.f32 %v2280, %v2645
    %v2710 = vmul.f32 %v2281, %v2646
    %v2711 = vmul.f32 %v2282, %v2647
    %v2712 = vmul.f32 %v2283, %v2648
    %v2713 = vmul.f32 %v2284, %v2649
    %v2714 = vmul.f32 %v2285, %v2650
    %v2715 = vmul.f32 %v2286, %v2651
    %v2716 = vmul.f32 %v2287, %v2652
    %v2717 = vmul.f32 %v2288, %v2653
    %v2718 = vmul.f32 %v2289, %v2654
    %v2719 = vmul.f32 %v2290, %v2655
    %v2720 = vmul.f32 %v2291, %v2656
    %v2721 = vmul.f32 %v2292, %v2657
    %v2722 = vmul.f32 %v2293, %v2658
    %v2723 = vmul.f32 %v2294, %v2659
    %v2724 = vmul.f32 %v2295, %v2660
    %v2725 = vmul.f32 %v2296, %v2661
    %v2726 = vmul.f32 %v2297, %v2662
    %v2727 = vmul.f32 %v2298, %v2663
    %v2728 = vmul.f32 %v2299, %v2664
    %v2729 = vmul.f32 %v2300, %v2665
    %v2730 = vmul.f32 %v2301, %v2666
    %v2731 = vmul.f32 %v2302, %v2667
    %v2732 = vmul.f32 %v2303, %v2668
    %v2733 = vmul.f32 %v2304, %v2669
    %vm2734 = vcmp.gt.f32.partialorder %v2241, 0.0
    %vm2735 = vcmp.gt.f32.partialorder %v2242, 0.0
    %vm2736 = vcmp.gt.f32.partialorder %v2243, 0.0
    %vm2737 = vcmp.gt.f32.partialorder %v2244, 0.0
    %vm2738 = vcmp.gt.f32.partialorder %v2245, 0.0
    %vm2739 = vcmp.gt.f32.partialorder %v2246, 0.0
    %vm2740 = vcmp.gt.f32.partialorder %v2247, 0.0
    %vm2741 = vcmp.gt.f32.partialorder %v2248, 0.0
    %vm2742 = vcmp.gt.f32.partialorder %v2249, 0.0
    %vm2743 = vcmp.gt.f32.partialorder %v2250, 0.0
    %vm2744 = vcmp.gt.f32.partialorder %v2251, 0.0
    %vm2745 = vcmp.gt.f32.partialorder %v2252, 0.0
    %vm2746 = vcmp.gt.f32.partialorder %v2253, 0.0
    %vm2747 = vcmp.gt.f32.partialorder %v2254, 0.0
    %vm2748 = vcmp.gt.f32.partialorder %v2255, 0.0
    %vm2749 = vcmp.gt.f32.partialorder %v2256, 0.0
    %vm2750 = vcmp.gt.f32.partialorder %v2257, 0.0
    %vm2751 = vcmp.gt.f32.partialorder %v2258, 0.0
    %vm2752 = vcmp.gt.f32.partialorder %v2259, 0.0
    %vm2753 = vcmp.gt.f32.partialorder %v2260, 0.0
    %vm2754 = vcmp.gt.f32.partialorder %v2261, 0.0
    %vm2755 = vcmp.gt.f32.partialorder %v2262, 0.0
    %vm2756 = vcmp.gt.f32.partialorder %v2263, 0.0
    %vm2757 = vcmp.gt.f32.partialorder %v2264, 0.0
    %vm2758 = vcmp.gt.f32.partialorder %v2265, 0.0
    %vm2759 = vcmp.gt.f32.partialorder %v2266, 0.0
    %vm2760 = vcmp.gt.f32.partialorder %v2267, 0.0
    %vm2761 = vcmp.gt.f32.partialorder %v2268, 0.0
    %vm2762 = vcmp.gt.f32.partialorder %v2269, 0.0
    %vm2763 = vcmp.gt.f32.partialorder %v2270, 0.0
    %vm2764 = vcmp.gt.f32.partialorder %v2271, 0.0
    %vm2765 = vcmp.gt.f32.partialorder %v2272, 0.0
    %vm2766 = vcmp.gt.f32.partialorder %v2273, 0.0
    %vm2767 = vcmp.gt.f32.partialorder %v2274, 0.0
    %vm2768 = vcmp.gt.f32.partialorder %v2275, 0.0
    %vm2769 = vcmp.gt.f32.partialorder %v2276, 0.0
    %vm2770 = vcmp.gt.f32.partialorder %v2277, 0.0
    %vm2771 = vcmp.gt.f32.partialorder %v2278, 0.0
    %vm2772 = vcmp.gt.f32.partialorder %v2279, 0.0
    %vm2773 = vcmp.gt.f32.partialorder %v2280, 0.0
    %vm2774 = vcmp.gt.f32.partialorder %v2281, 0.0
    %vm2775 = vcmp.gt.f32.partialorder %v2282, 0.0
    %vm2776 = vcmp.gt.f32.partialorder %v2283, 0.0
    %vm2777 = vcmp.gt.f32.partialorder %v2284, 0.0
    %vm2778 = vcmp.gt.f32.partialorder %v2285, 0.0
    %vm2779 = vcmp.gt.f32.partialorder %v2286, 0.0
    %vm2780 = vcmp.gt.f32.partialorder %v2287, 0.0
    %vm2781 = vcmp.gt.f32.partialorder %v2288, 0.0
    %vm2782 = vcmp.gt.f32.partialorder %v2289, 0.0
    %vm2783 = vcmp.gt.f32.partialorder %v2290, 0.0
    %vm2784 = vcmp.gt.f32.partialorder %v2291, 0.0
    %vm2785 = vcmp.gt.f32.partialorder %v2292, 0.0
    %vm2786 = vcmp.gt.f32.partialorder %v2293, 0.0
    %vm2787 = vcmp.gt.f32.partialorder %v2294, 0.0
    %vm2788 = vcmp.gt.f32.partialorder %v2295, 0.0
    %vm2789 = vcmp.gt.f32.partialorder %v2296, 0.0
    %vm2790 = vcmp.gt.f32.partialorder %v2297, 0.0
    %vm2791 = vcmp.gt.f32.partialorder %v2298, 0.0
    %vm2792 = vcmp.gt.f32.partialorder %v2299, 0.0
    %vm2793 = vcmp.gt.f32.partialorder %v2300, 0.0
    %vm2794 = vcmp.gt.f32.partialorder %v2301, 0.0
    %vm2795 = vcmp.gt.f32.partialorder %v2302, 0.0
    %vm2796 = vcmp.gt.f32.partialorder %v2303, 0.0
    %vm2797 = vcmp.gt.f32.partialorder %v2304, 0.0
    %v2798 = vsel %vm2734, %v2670, 0.0
    %v2799 = vsel %vm2735, %v2671, 0.0
    %v2800 = vsel %vm2736, %v2672, 0.0
    %v2801 = vsel %vm2737, %v2673, 0.0
    %v2802 = vsel %vm2738, %v2674, 0.0
    %v2803 = vsel %vm2739, %v2675, 0.0
    %v2804 = vsel %vm2740, %v2676, 0.0
    %v2805 = vsel %vm2741, %v2677, 0.0
    %v2806 = vsel %vm2742, %v2678, 0.0
    %v2807 = vsel %vm2743, %v2679, 0.0
    %v2808 = vsel %vm2744, %v2680, 0.0
    %v2809 = vsel %vm2745, %v2681, 0.0
    %v2810 = vsel %vm2746, %v2682, 0.0
    %v2811 = vsel %vm2747, %v2683, 0.0
    %v2812 = vsel %vm2748, %v2684, 0.0
    %v2813 = vsel %vm2749, %v2685, 0.0
    %v2814 = vsel %vm2750, %v2686, 0.0
    %v2815 = vsel %vm2751, %v2687, 0.0
    %v2816 = vsel %vm2752, %v2688, 0.0
    %v2817 = vsel %vm2753, %v2689, 0.0
    %v2818 = vsel %vm2754, %v2690, 0.0
    %v2819 = vsel %vm2755, %v2691, 0.0
    %v2820 = vsel %vm2756, %v2692, 0.0
    %v2821 = vsel %vm2757, %v2693, 0.0
    %v2822 = vsel %vm2758, %v2694, 0.0
    %v2823 = vsel %vm2759, %v2695, 0.0
    %v2824 = vsel %vm2760, %v2696, 0.0
    %v2825 = vsel %vm2761, %v2697, 0.0
    %v2826 = vsel %vm2762, %v2698, 0.0
    %v2827 = vsel %vm2763, %v2699, 0.0
    %v2828 = vsel %vm2764, %v2700, 0.0
    %v2829 = vsel %vm2765, %v2701, 0.0
    %v2830 = vsel %vm2766, %v2702, 0.0
    %v2831 = vsel %vm2767, %v2703, 0.0
    %v2832 = vsel %vm2768, %v2704, 0.0
    %v2833 = vsel %vm2769, %v2705, 0.0
    %v2834 = vsel %vm2770, %v2706, 0.0
    %v2835 = vsel %vm2771, %v2707, 0.0
    %v2836 = vsel %vm2772, %v2708, 0.0
    %v2837 = vsel %vm2773, %v2709, 0.0
    %v2838 = vsel %vm2774, %v2710, 0.0
    %v2839 = vsel %vm2775, %v2711, 0.0
    %v2840 = vsel %vm2776, %v2712, 0.0
    %v2841 = vsel %vm2777, %v2713, 0.0
    %v2842 = vsel %vm2778, %v2714, 0.0
    %v2843 = vsel %vm2779, %v2715, 0.0
    %v2844 = vsel %vm2780, %v2716, 0.0
    %v2845 = vsel %vm2781, %v2717, 0.0
    %v2846 = vsel %vm2782, %v2718, 0.0
    %v2847 = vsel %vm2783, %v2719, 0.0
    %v2848 = vsel %vm2784, %v2720, 0.0
    %v2849 = vsel %vm2785, %v2721, 0.0
    %v2850 = vsel %vm2786, %v2722, 0.0
    %v2851 = vsel %vm2787, %v2723, 0.0
    %v2852 = vsel %vm2788, %v2724, 0.0
    %v2853 = vsel %vm2789, %v2725, 0.0
    %v2854 = vsel %vm2790, %v2726, 0.0
    %v2855 = vsel %vm2791, %v2727, 0.0
    %v2856 = vsel %vm2792, %v2728, 0.0
    %v2857 = vsel %vm2793, %v2729, 0.0
    %v2858 = vsel %vm2794, %v2730, 0.0
    %v2859 = vsel %vm2795, %v2731, 0.0
    %v2860 = vsel %vm2796, %v2732, 0.0
    %v2861 = vsel %vm2797, %v2733, 0.0
    %v2862 = vadd.f32 %v2798, %v2799
    %v2863 = vadd.f32 %v2862, %v2800
    %v2864 = vadd.f32 %v2863, %v2801
    %v2865 = vadd.f32 %v2864, %v2802
    %v2866 = vadd.f32 %v2865, %v2803
    %v2867 = vadd.f32 %v2866, %v2804
    %v2868 = vadd.f32 %v2867, %v2805
    %v2869 = vadd.f32 %v2868, %v2806
    %v2870 = vadd.f32 %v2869, %v2807
    %v2871 = vadd.f32 %v2870, %v2808
    %v2872 = vadd.f32 %v2871, %v2809
    %v2873 = vadd.f32 %v2872, %v2810
    %v2874 = vadd.f32 %v2873, %v2811
    %v2875 = vadd.f32 %v2874, %v2812
    %v2876 = vadd.f32 %v2875, %v2813
    %v2877 = vadd.f32 %v2876, %v2814
    %v2878 = vadd.f32 %v2877, %v2815
    %v2879 = vadd.f32 %v2878, %v2816
    %v2880 = vadd.f32 %v2879, %v2817
    %v2881 = vadd.f32 %v2880, %v2818
    %v2882 = vadd.f32 %v2881, %v2819
    %v2883 = vadd.f32 %v2882, %v2820
    %v2884 = vadd.f32 %v2883, %v2821
    %v2885 = vadd.f32 %v2884, %v2822
    %v2886 = vadd.f32 %v2885, %v2823
    %v2887 = vadd.f32 %v2886, %v2824
    %v2888 = vadd.f32 %v2887, %v2825
    %v2889 = vadd.f32 %v2888, %v2826
    %v2890 = vadd.f32 %v2889, %v2827
    %v2891 = vadd.f32 %v2890, %v2828
    %v2892 = vadd.f32 %v2891, %v2829
    %v2893 = vadd.f32 %v2892, %v2830
    %v2894 = vadd.f32 %v2893, %v2831
    %v2895 = vadd.f32 %v2894, %v2832
    %v2896 = vadd.f32 %v2895, %v2833
    %v2897 = vadd.f32 %v2896, %v2834
    %v2898 = vadd.f32 %v2897, %v2835
    %v2899 = vadd.f32 %v2898, %v2836
    %v2900 = vadd.f32 %v2899, %v2837
    %v2901 = vadd.f32 %v2900, %v2838
    %v2902 = vadd.f32 %v2901, %v2839
    %v2903 = vadd.f32 %v2902, %v2840
    %v2904 = vadd.f32 %v2903, %v2841
    %v2905 = vadd.f32 %v2904, %v2842
    %v2906 = vadd.f32 %v2905, %v2843
    %v2907 = vadd.f32 %v2906, %v2844
    %v2908 = vadd.f32 %v2907, %v2845
    %v2909 = vadd.f32 %v2908, %v2846
    %v2910 = vadd.f32 %v2909, %v2847
    %v2911 = vadd.f32 %v2910, %v2848
    %v2912 = vadd.f32 %v2911, %v2849
    %v2913 = vadd.f32 %v2912, %v2850
    %v2914 = vadd.f32 %v2913, %v2851
    %v2915 = vadd.f32 %v2914, %v2852
    %v2916 = vadd.f32 %v2915, %v2853
    %v2917 = vadd.f32 %v2916, %v2854
    %v2918 = vadd.f32 %v2917, %v2855
    %v2919 = vadd.f32 %v2918, %v2856
    %v2920 = vadd.f32 %v2919, %v2857
    %v2921 = vadd.f32 %v2920, %v2858
    %v2922 = vadd.f32 %v2921, %v2859
    %v2923 = vadd.f32 %v2922, %v2860
    %v2924 = vadd.f32 %v2923, %v2861
    %2925 = vadd.xlane.f32.xlu0 %v2924
    %v2926 = vpop.xlane.xlu0 %2925
    %v2927 = vrot.slane %v2926, 4
    %v2928 = vadd.f32 %v2926, %v2927
    %v2929 = vrot.slane %v2928, 2
    %v2930 = vadd.f32 %v2928, %v2929
    %v2931 = vrot.slane %v2930, 1
    %v2932 = vadd.f32 %v2930, %v2931
    %s2933 = vtos %v2932
    %v2934 = vadd.f32 %v2670, %v2671
    %v2935 = vadd.f32 %v2934, %v2672
    %v2936 = vadd.f32 %v2935, %v2673
    %v2937 = vadd.f32 %v2936, %v2674
    %v2938 = vadd.f32 %v2937, %v2675
    %v2939 = vadd.f32 %v2938, %v2676
    %v2940 = vadd.f32 %v2939, %v2677
    %v2941 = vadd.f32 %v2940, %v2678
    %v2942 = vadd.f32 %v2941, %v2679
    %v2943 = vadd.f32 %v2942, %v2680
    %v2944 = vadd.f32 %v2943, %v2681
    %v2945 = vadd.f32 %v2944, %v2682
    %v2946 = vadd.f32 %v2945, %v2683
    %v2947 = vadd.f32 %v2946, %v2684
    %v2948 = vadd.f32 %v2947, %v2685
    %v2949 = vadd.f32 %v2948, %v2686
    %v2950 = vadd.f32 %v2949, %v2687
    %v2951 = vadd.f32 %v2950, %v2688
    %v2952 = vadd.f32 %v2951, %v2689
    %v2953 = vadd.f32 %v2952, %v2690
    %v2954 = vadd.f32 %v2953, %v2691
    %v2955 = vadd.f32 %v2954, %v2692
    %v2956 = vadd.f32 %v2955, %v2693
    %v2957 = vadd.f32 %v2956, %v2694
    %v2958 = vadd.f32 %v2957, %v2695
    %v2959 = vadd.f32 %v2958, %v2696
    %v2960 = vadd.f32 %v2959, %v2697
    %v2961 = vadd.f32 %v2960, %v2698
    %v2962 = vadd.f32 %v2961, %v2699
    %v2963 = vadd.f32 %v2962, %v2700
    %v2964 = vadd.f32 %v2963, %v2701
    %v2965 = vadd.f32 %v2964, %v2702
    %v2966 = vadd.f32 %v2965, %v2703
    %v2967 = vadd.f32 %v2966, %v2704
    %v2968 = vadd.f32 %v2967, %v2705
    %v2969 = vadd.f32 %v2968, %v2706
    %v2970 = vadd.f32 %v2969, %v2707
    %v2971 = vadd.f32 %v2970, %v2708
    %v2972 = vadd.f32 %v2971, %v2709
    %v2973 = vadd.f32 %v2972, %v2710
    %v2974 = vadd.f32 %v2973, %v2711
    %v2975 = vadd.f32 %v2974, %v2712
    %v2976 = vadd.f32 %v2975, %v2713
    %v2977 = vadd.f32 %v2976, %v2714
    %v2978 = vadd.f32 %v2977, %v2715
    %v2979 = vadd.f32 %v2978, %v2716
    %v2980 = vadd.f32 %v2979, %v2717
    %v2981 = vadd.f32 %v2980, %v2718
    %v2982 = vadd.f32 %v2981, %v2719
    %v2983 = vadd.f32 %v2982, %v2720
    %v2984 = vadd.f32 %v2983, %v2721
    %v2985 = vadd.f32 %v2984, %v2722
    %v2986 = vadd.f32 %v2985, %v2723
    %v2987 = vadd.f32 %v2986, %v2724
    %v2988 = vadd.f32 %v2987, %v2725
    %v2989 = vadd.f32 %v2988, %v2726
    %v2990 = vadd.f32 %v2989, %v2727
    %v2991 = vadd.f32 %v2990, %v2728
    %v2992 = vadd.f32 %v2991, %v2729
    %v2993 = vadd.f32 %v2992, %v2730
    %v2994 = vadd.f32 %v2993, %v2731
    %v2995 = vadd.f32 %v2994, %v2732
    %v2996 = vadd.f32 %v2995, %v2733
    %2997 = vadd.xlane.f32.xlu0 %v2996
    %v2998 = vpop.xlane.xlu0 %2997
    %v2999 = vrot.slane %v2998, 4
    %v3000 = vadd.f32 %v2998, %v2999
    %v3001 = vrot.slane %v3000, 2
    %v3002 = vadd.f32 %v3000, %v3001
    %v3003 = vrot.slane %v3002, 1
    %v3004 = vadd.f32 %v3002, %v3003
    %s3005 = vtos %v3004
    %v3006 = vsel %vm2734, 1, 0
    %v3007 = vsel %vm2735, 1, 0
    %v3008 = vsel %vm2736, 1, 0
    %v3009 = vsel %vm2737, 1, 0
    %v3010 = vsel %vm2738, 1, 0
    %v3011 = vsel %vm2739, 1, 0
    %v3012 = vsel %vm2740, 1, 0
    %v3013 = vsel %vm2741, 1, 0
    %v3014 = vsel %vm2742, 1, 0
    %v3015 = vsel %vm2743, 1, 0
    %v3016 = vsel %vm2744, 1, 0
    %v3017 = vsel %vm2745, 1, 0
    %v3018 = vsel %vm2746, 1, 0
    %v3019 = vsel %vm2747, 1, 0
    %v3020 = vsel %vm2748, 1, 0
    %v3021 = vsel %vm2749, 1, 0
    %v3022 = vsel %vm2750, 1, 0
    %v3023 = vsel %vm2751, 1, 0
    %v3024 = vsel %vm2752, 1, 0
    %v3025 = vsel %vm2753, 1, 0
    %v3026 = vsel %vm2754, 1, 0
    %v3027 = vsel %vm2755, 1, 0
    %v3028 = vsel %vm2756, 1, 0
    %v3029 = vsel %vm2757, 1, 0
    %v3030 = vsel %vm2758, 1, 0
    %v3031 = vsel %vm2759, 1, 0
    %v3032 = vsel %vm2760, 1, 0
    %v3033 = vsel %vm2761, 1, 0
    %v3034 = vsel %vm2762, 1, 0
    %v3035 = vsel %vm2763, 1, 0
    %v3036 = vsel %vm2764, 1, 0
    %v3037 = vsel %vm2765, 1, 0
    %v3038 = vsel %vm2766, 1, 0
    %v3039 = vsel %vm2767, 1, 0
    %v3040 = vsel %vm2768, 1, 0
    %v3041 = vsel %vm2769, 1, 0
    %v3042 = vsel %vm2770, 1, 0
    %v3043 = vsel %vm2771, 1, 0
    %v3044 = vsel %vm2772, 1, 0
    %v3045 = vsel %vm2773, 1, 0
    %v3046 = vsel %vm2774, 1, 0
    %v3047 = vsel %vm2775, 1, 0
    %v3048 = vsel %vm2776, 1, 0
    %v3049 = vsel %vm2777, 1, 0
    %v3050 = vsel %vm2778, 1, 0
    %v3051 = vsel %vm2779, 1, 0
    %v3052 = vsel %vm2780, 1, 0
    %v3053 = vsel %vm2781, 1, 0
    %v3054 = vsel %vm2782, 1, 0
    %v3055 = vsel %vm2783, 1, 0
    %v3056 = vsel %vm2784, 1, 0
    %v3057 = vsel %vm2785, 1, 0
    %v3058 = vsel %vm2786, 1, 0
    %v3059 = vsel %vm2787, 1, 0
    %v3060 = vsel %vm2788, 1, 0
    %v3061 = vsel %vm2789, 1, 0
    %v3062 = vsel %vm2790, 1, 0
    %v3063 = vsel %vm2791, 1, 0
    %v3064 = vsel %vm2792, 1, 0
    %v3065 = vsel %vm2793, 1, 0
    %v3066 = vsel %vm2794, 1, 0
    %v3067 = vsel %vm2795, 1, 0
    %v3068 = vsel %vm2796, 1, 0
    %v3069 = vsel %vm2797, 1, 0
    %v3070 = vcvt.s32.f32 %v3006
    %v3071 = vcvt.s32.f32 %v3007
    %v3072 = vcvt.s32.f32 %v3008
    %v3073 = vcvt.s32.f32 %v3009
    %v3074 = vcvt.s32.f32 %v3010
    %v3075 = vcvt.s32.f32 %v3011
    %v3076 = vcvt.s32.f32 %v3012
    %v3077 = vcvt.s32.f32 %v3013
    %v3078 = vcvt.s32.f32 %v3014
    %v3079 = vcvt.s32.f32 %v3015
    %v3080 = vcvt.s32.f32 %v3016
    %v3081 = vcvt.s32.f32 %v3017
    %v3082 = vcvt.s32.f32 %v3018
    %v3083 = vcvt.s32.f32 %v3019
    %v3084 = vcvt.s32.f32 %v3020
    %v3085 = vcvt.s32.f32 %v3021
    %v3086 = vcvt.s32.f32 %v3022
    %v3087 = vcvt.s32.f32 %v3023
    %v3088 = vcvt.s32.f32 %v3024
    %v3089 = vcvt.s32.f32 %v3025
    %v3090 = vcvt.s32.f32 %v3026
    %v3091 = vcvt.s32.f32 %v3027
    %v3092 = vcvt.s32.f32 %v3028
    %v3093 = vcvt.s32.f32 %v3029
    %v3094 = vcvt.s32.f32 %v3030
    %v3095 = vcvt.s32.f32 %v3031
    %v3096 = vcvt.s32.f32 %v3032
    %v3097 = vcvt.s32.f32 %v3033
    %v3098 = vcvt.s32.f32 %v3034
    %v3099 = vcvt.s32.f32 %v3035
    %v3100 = vcvt.s32.f32 %v3036
    %v3101 = vcvt.s32.f32 %v3037
    %v3102 = vcvt.s32.f32 %v3038
    %v3103 = vcvt.s32.f32 %v3039
    %v3104 = vcvt.s32.f32 %v3040
    %v3105 = vcvt.s32.f32 %v3041
    %v3106 = vcvt.s32.f32 %v3042
    %v3107 = vcvt.s32.f32 %v3043
    %v3108 = vcvt.s32.f32 %v3044
    %v3109 = vcvt.s32.f32 %v3045
    %v3110 = vcvt.s32.f32 %v3046
    %v3111 = vcvt.s32.f32 %v3047
    %v3112 = vcvt.s32.f32 %v3048
    %v3113 = vcvt.s32.f32 %v3049
    %v3114 = vcvt.s32.f32 %v3050
    %v3115 = vcvt.s32.f32 %v3051
    %v3116 = vcvt.s32.f32 %v3052
    %v3117 = vcvt.s32.f32 %v3053
    %v3118 = vcvt.s32.f32 %v3054
    %v3119 = vcvt.s32.f32 %v3055
    %v3120 = vcvt.s32.f32 %v3056
    %v3121 = vcvt.s32.f32 %v3057
    %v3122 = vcvt.s32.f32 %v3058
    %v3123 = vcvt.s32.f32 %v3059
    %v3124 = vcvt.s32.f32 %v3060
    %v3125 = vcvt.s32.f32 %v3061
    %v3126 = vcvt.s32.f32 %v3062
    %v3127 = vcvt.s32.f32 %v3063
    %v3128 = vcvt.s32.f32 %v3064
    %v3129 = vcvt.s32.f32 %v3065
    %v3130 = vcvt.s32.f32 %v3066
    %v3131 = vcvt.s32.f32 %v3067
    %v3132 = vcvt.s32.f32 %v3068
    %v3133 = vcvt.s32.f32 %v3069
    %v3134 = vadd.f32 %v3070, %v3071
    %v3135 = vadd.f32 %v3134, %v3072
    %v3136 = vadd.f32 %v3135, %v3073
    %v3137 = vadd.f32 %v3136, %v3074
    %v3138 = vadd.f32 %v3137, %v3075
    %v3139 = vadd.f32 %v3138, %v3076
    %v3140 = vadd.f32 %v3139, %v3077
    %v3141 = vadd.f32 %v3140, %v3078
    %v3142 = vadd.f32 %v3141, %v3079
    %v3143 = vadd.f32 %v3142, %v3080
    %v3144 = vadd.f32 %v3143, %v3081
    %v3145 = vadd.f32 %v3144, %v3082
    %v3146 = vadd.f32 %v3145, %v3083
    %v3147 = vadd.f32 %v3146, %v3084
    %v3148 = vadd.f32 %v3147, %v3085
    %v3149 = vadd.f32 %v3148, %v3086
    %v3150 = vadd.f32 %v3149, %v3087
    %v3151 = vadd.f32 %v3150, %v3088
    %v3152 = vadd.f32 %v3151, %v3089
    %v3153 = vadd.f32 %v3152, %v3090
    %v3154 = vadd.f32 %v3153, %v3091
    %v3155 = vadd.f32 %v3154, %v3092
    %v3156 = vadd.f32 %v3155, %v3093
    %v3157 = vadd.f32 %v3156, %v3094
    %v3158 = vadd.f32 %v3157, %v3095
    %v3159 = vadd.f32 %v3158, %v3096
    %v3160 = vadd.f32 %v3159, %v3097
    %v3161 = vadd.f32 %v3160, %v3098
    %v3162 = vadd.f32 %v3161, %v3099
    %v3163 = vadd.f32 %v3162, %v3100
    %v3164 = vadd.f32 %v3163, %v3101
    %v3165 = vadd.f32 %v3164, %v3102
    %v3166 = vadd.f32 %v3165, %v3103
    %v3167 = vadd.f32 %v3166, %v3104
    %v3168 = vadd.f32 %v3167, %v3105
    %v3169 = vadd.f32 %v3168, %v3106
    %v3170 = vadd.f32 %v3169, %v3107
    %v3171 = vadd.f32 %v3170, %v3108
    %v3172 = vadd.f32 %v3171, %v3109
    %v3173 = vadd.f32 %v3172, %v3110
    %v3174 = vadd.f32 %v3173, %v3111
    %v3175 = vadd.f32 %v3174, %v3112
    %v3176 = vadd.f32 %v3175, %v3113
    %v3177 = vadd.f32 %v3176, %v3114
    %v3178 = vadd.f32 %v3177, %v3115
    %v3179 = vadd.f32 %v3178, %v3116
    %v3180 = vadd.f32 %v3179, %v3117
    %v3181 = vadd.f32 %v3180, %v3118
    %v3182 = vadd.f32 %v3181, %v3119
    %v3183 = vadd.f32 %v3182, %v3120
    %v3184 = vadd.f32 %v3183, %v3121
    %v3185 = vadd.f32 %v3184, %v3122
    %v3186 = vadd.f32 %v3185, %v3123
    %v3187 = vadd.f32 %v3186, %v3124
    %v3188 = vadd.f32 %v3187, %v3125
    %v3189 = vadd.f32 %v3188, %v3126
    %v3190 = vadd.f32 %v3189, %v3127
    %v3191 = vadd.f32 %v3190, %v3128
    %v3192 = vadd.f32 %v3191, %v3129
    %v3193 = vadd.f32 %v3192, %v3130
    %v3194 = vadd.f32 %v3193, %v3131
    %v3195 = vadd.f32 %v3194, %v3132
    %v3196 = vadd.f32 %v3195, %v3133
    %3197 = vadd.xlane.f32.xlu0 %v3196
    %v3198 = vpop.xlane.xlu0 %3197
    %v3199 = vrot.slane %v3198, 4
    %v3200 = vadd.f32 %v3198, %v3199
    %v3201 = vrot.slane %v3200, 2
    %v3202 = vadd.f32 %v3200, %v3201
    %v3203 = vrot.slane %v3202, 1
    %v3204 = vadd.f32 %v3202, %v3203
    %s3205 = vtos %v3204
    %vm3206 = vcmp.lt.f32.partialorder %v2241, 0.0
    %vm3207 = vcmp.lt.f32.partialorder %v2242, 0.0
    %vm3208 = vcmp.lt.f32.partialorder %v2243, 0.0
    %vm3209 = vcmp.lt.f32.partialorder %v2244, 0.0
    %vm3210 = vcmp.lt.f32.partialorder %v2245, 0.0
    %vm3211 = vcmp.lt.f32.partialorder %v2246, 0.0
    %vm3212 = vcmp.lt.f32.partialorder %v2247, 0.0
    %vm3213 = vcmp.lt.f32.partialorder %v2248, 0.0
    %vm3214 = vcmp.lt.f32.partialorder %v2249, 0.0
    %vm3215 = vcmp.lt.f32.partialorder %v2250, 0.0
    %vm3216 = vcmp.lt.f32.partialorder %v2251, 0.0
    %vm3217 = vcmp.lt.f32.partialorder %v2252, 0.0
    %vm3218 = vcmp.lt.f32.partialorder %v2253, 0.0
    %vm3219 = vcmp.lt.f32.partialorder %v2254, 0.0
    %vm3220 = vcmp.lt.f32.partialorder %v2255, 0.0
    %vm3221 = vcmp.lt.f32.partialorder %v2256, 0.0
    %vm3222 = vcmp.lt.f32.partialorder %v2257, 0.0
    %vm3223 = vcmp.lt.f32.partialorder %v2258, 0.0
    %vm3224 = vcmp.lt.f32.partialorder %v2259, 0.0
    %vm3225 = vcmp.lt.f32.partialorder %v2260, 0.0
    %vm3226 = vcmp.lt.f32.partialorder %v2261, 0.0
    %vm3227 = vcmp.lt.f32.partialorder %v2262, 0.0
    %vm3228 = vcmp.lt.f32.partialorder %v2263, 0.0
    %vm3229 = vcmp.lt.f32.partialorder %v2264, 0.0
    %vm3230 = vcmp.lt.f32.partialorder %v2265, 0.0
    %vm3231 = vcmp.lt.f32.partialorder %v2266, 0.0
    %vm3232 = vcmp.lt.f32.partialorder %v2267, 0.0
    %vm3233 = vcmp.lt.f32.partialorder %v2268, 0.0
    %vm3234 = vcmp.lt.f32.partialorder %v2269, 0.0
    %vm3235 = vcmp.lt.f32.partialorder %v2270, 0.0
    %vm3236 = vcmp.lt.f32.partialorder %v2271, 0.0
    %vm3237 = vcmp.lt.f32.partialorder %v2272, 0.0
    %vm3238 = vcmp.lt.f32.partialorder %v2273, 0.0
    %vm3239 = vcmp.lt.f32.partialorder %v2274, 0.0
    %vm3240 = vcmp.lt.f32.partialorder %v2275, 0.0
    %vm3241 = vcmp.lt.f32.partialorder %v2276, 0.0
    %vm3242 = vcmp.lt.f32.partialorder %v2277, 0.0
    %vm3243 = vcmp.lt.f32.partialorder %v2278, 0.0
    %vm3244 = vcmp.lt.f32.partialorder %v2279, 0.0
    %vm3245 = vcmp.lt.f32.partialorder %v2280, 0.0
    %vm3246 = vcmp.lt.f32.partialorder %v2281, 0.0
    %vm3247 = vcmp.lt.f32.partialorder %v2282, 0.0
    %vm3248 = vcmp.lt.f32.partialorder %v2283, 0.0
    %vm3249 = vcmp.lt.f32.partialorder %v2284, 0.0
    %vm3250 = vcmp.lt.f32.partialorder %v2285, 0.0
    %vm3251 = vcmp.lt.f32.partialorder %v2286, 0.0
    %vm3252 = vcmp.lt.f32.partialorder %v2287, 0.0
    %vm3253 = vcmp.lt.f32.partialorder %v2288, 0.0
    %vm3254 = vcmp.lt.f32.partialorder %v2289, 0.0
    %vm3255 = vcmp.lt.f32.partialorder %v2290, 0.0
    %vm3256 = vcmp.lt.f32.partialorder %v2291, 0.0
    %vm3257 = vcmp.lt.f32.partialorder %v2292, 0.0
    %vm3258 = vcmp.lt.f32.partialorder %v2293, 0.0
    %vm3259 = vcmp.lt.f32.partialorder %v2294, 0.0
    %vm3260 = vcmp.lt.f32.partialorder %v2295, 0.0
    %vm3261 = vcmp.lt.f32.partialorder %v2296, 0.0
    %vm3262 = vcmp.lt.f32.partialorder %v2297, 0.0
    %vm3263 = vcmp.lt.f32.partialorder %v2298, 0.0
    %vm3264 = vcmp.lt.f32.partialorder %v2299, 0.0
    %vm3265 = vcmp.lt.f32.partialorder %v2300, 0.0
    %vm3266 = vcmp.lt.f32.partialorder %v2301, 0.0
    %vm3267 = vcmp.lt.f32.partialorder %v2302, 0.0
    %vm3268 = vcmp.lt.f32.partialorder %v2303, 0.0
    %vm3269 = vcmp.lt.f32.partialorder %v2304, 0.0
    %v3270 = vsel %vm3206, 1, 0
    %v3271 = vsel %vm3207, 1, 0
    %v3272 = vsel %vm3208, 1, 0
    %v3273 = vsel %vm3209, 1, 0
    %v3274 = vsel %vm3210, 1, 0
    %v3275 = vsel %vm3211, 1, 0
    %v3276 = vsel %vm3212, 1, 0
    %v3277 = vsel %vm3213, 1, 0
    %v3278 = vsel %vm3214, 1, 0
    %v3279 = vsel %vm3215, 1, 0
    %v3280 = vsel %vm3216, 1, 0
    %v3281 = vsel %vm3217, 1, 0
    %v3282 = vsel %vm3218, 1, 0
    %v3283 = vsel %vm3219, 1, 0
    %v3284 = vsel %vm3220, 1, 0
    %v3285 = vsel %vm3221, 1, 0
    %v3286 = vsel %vm3222, 1, 0
    %v3287 = vsel %vm3223, 1, 0
    %v3288 = vsel %vm3224, 1, 0
    %v3289 = vsel %vm3225, 1, 0
    %v3290 = vsel %vm3226, 1, 0
    %v3291 = vsel %vm3227, 1, 0
    %v3292 = vsel %vm3228, 1, 0
    %v3293 = vsel %vm3229, 1, 0
    %v3294 = vsel %vm3230, 1, 0
    %v3295 = vsel %vm3231, 1, 0
    %v3296 = vsel %vm3232, 1, 0
    %v3297 = vsel %vm3233, 1, 0
    %v3298 = vsel %vm3234, 1, 0
    %v3299 = vsel %vm3235, 1, 0
    %v3300 = vsel %vm3236, 1, 0
    %v3301 = vsel %vm3237, 1, 0
    %v3302 = vsel %vm3238, 1, 0
    %v3303 = vsel %vm3239, 1, 0
    %v3304 = vsel %vm3240, 1, 0
    %v3305 = vsel %vm3241, 1, 0
    %v3306 = vsel %vm3242, 1, 0
    %v3307 = vsel %vm3243, 1, 0
    %v3308 = vsel %vm3244, 1, 0
    %v3309 = vsel %vm3245, 1, 0
    %v3310 = vsel %vm3246, 1, 0
    %v3311 = vsel %vm3247, 1, 0
    %v3312 = vsel %vm3248, 1, 0
    %v3313 = vsel %vm3249, 1, 0
    %v3314 = vsel %vm3250, 1, 0
    %v3315 = vsel %vm3251, 1, 0
    %v3316 = vsel %vm3252, 1, 0
    %v3317 = vsel %vm3253, 1, 0
    %v3318 = vsel %vm3254, 1, 0
    %v3319 = vsel %vm3255, 1, 0
    %v3320 = vsel %vm3256, 1, 0
    %v3321 = vsel %vm3257, 1, 0
    %v3322 = vsel %vm3258, 1, 0
    %v3323 = vsel %vm3259, 1, 0
    %v3324 = vsel %vm3260, 1, 0
    %v3325 = vsel %vm3261, 1, 0
    %v3326 = vsel %vm3262, 1, 0
    %v3327 = vsel %vm3263, 1, 0
    %v3328 = vsel %vm3264, 1, 0
    %v3329 = vsel %vm3265, 1, 0
    %v3330 = vsel %vm3266, 1, 0
    %v3331 = vsel %vm3267, 1, 0
    %v3332 = vsel %vm3268, 1, 0
    %v3333 = vsel %vm3269, 1, 0
    %v3334 = vcvt.s32.f32 %v3270
    %v3335 = vcvt.s32.f32 %v3271
    %v3336 = vcvt.s32.f32 %v3272
    %v3337 = vcvt.s32.f32 %v3273
    %v3338 = vcvt.s32.f32 %v3274
    %v3339 = vcvt.s32.f32 %v3275
    %v3340 = vcvt.s32.f32 %v3276
    %v3341 = vcvt.s32.f32 %v3277
    %v3342 = vcvt.s32.f32 %v3278
    %v3343 = vcvt.s32.f32 %v3279
    %v3344 = vcvt.s32.f32 %v3280
    %v3345 = vcvt.s32.f32 %v3281
    %v3346 = vcvt.s32.f32 %v3282
    %v3347 = vcvt.s32.f32 %v3283
    %v3348 = vcvt.s32.f32 %v3284
    %v3349 = vcvt.s32.f32 %v3285
    %v3350 = vcvt.s32.f32 %v3286
    %v3351 = vcvt.s32.f32 %v3287
    %v3352 = vcvt.s32.f32 %v3288
    %v3353 = vcvt.s32.f32 %v3289
    %v3354 = vcvt.s32.f32 %v3290
    %v3355 = vcvt.s32.f32 %v3291
    %v3356 = vcvt.s32.f32 %v3292
    %v3357 = vcvt.s32.f32 %v3293
    %v3358 = vcvt.s32.f32 %v3294
    %v3359 = vcvt.s32.f32 %v3295
    %v3360 = vcvt.s32.f32 %v3296
    %v3361 = vcvt.s32.f32 %v3297
    %v3362 = vcvt.s32.f32 %v3298
    %v3363 = vcvt.s32.f32 %v3299
    %v3364 = vcvt.s32.f32 %v3300
    %v3365 = vcvt.s32.f32 %v3301
    %v3366 = vcvt.s32.f32 %v3302
    %v3367 = vcvt.s32.f32 %v3303
    %v3368 = vcvt.s32.f32 %v3304
    %v3369 = vcvt.s32.f32 %v3305
    %v3370 = vcvt.s32.f32 %v3306
    %v3371 = vcvt.s32.f32 %v3307
    %v3372 = vcvt.s32.f32 %v3308
    %v3373 = vcvt.s32.f32 %v3309
    %v3374 = vcvt.s32.f32 %v3310
    %v3375 = vcvt.s32.f32 %v3311
    %v3376 = vcvt.s32.f32 %v3312
    %v3377 = vcvt.s32.f32 %v3313
    %v3378 = vcvt.s32.f32 %v3314
    %v3379 = vcvt.s32.f32 %v3315
    %v3380 = vcvt.s32.f32 %v3316
    %v3381 = vcvt.s32.f32 %v3317
    %v3382 = vcvt.s32.f32 %v3318
    %v3383 = vcvt.s32.f32 %v3319
    %v3384 = vcvt.s32.f32 %v3320
    %v3385 = vcvt.s32.f32 %v3321
    %v3386 = vcvt.s32.f32 %v3322
    %v3387 = vcvt.s32.f32 %v3323
    %v3388 = vcvt.s32.f32 %v3324
    %v3389 = vcvt.s32.f32 %v3325
    %v3390 = vcvt.s32.f32 %v3326
    %v3391 = vcvt.s32.f32 %v3327
    %v3392 = vcvt.s32.f32 %v3328
    %v3393 = vcvt.s32.f32 %v3329
    %v3394 = vcvt.s32.f32 %v3330
    %v3395 = vcvt.s32.f32 %v3331
    %v3396 = vcvt.s32.f32 %v3332
    %v3397 = vcvt.s32.f32 %v3333
    %v3398 = vadd.f32 %v3334, %v3335
    %v3399 = vadd.f32 %v3398, %v3336
    %v3400 = vadd.f32 %v3399, %v3337
    %v3401 = vadd.f32 %v3400, %v3338
    %v3402 = vadd.f32 %v3401, %v3339
    %v3403 = vadd.f32 %v3402, %v3340
    %v3404 = vadd.f32 %v3403, %v3341
    %v3405 = vadd.f32 %v3404, %v3342
    %v3406 = vadd.f32 %v3405, %v3343
    %v3407 = vadd.f32 %v3406, %v3344
    %v3408 = vadd.f32 %v3407, %v3345
    %v3409 = vadd.f32 %v3408, %v3346
    %v3410 = vadd.f32 %v3409, %v3347
    %v3411 = vadd.f32 %v3410, %v3348
    %v3412 = vadd.f32 %v3411, %v3349
    %v3413 = vadd.f32 %v3412, %v3350
    %v3414 = vadd.f32 %v3413, %v3351
    %v3415 = vadd.f32 %v3414, %v3352
    %v3416 = vadd.f32 %v3415, %v3353
    %v3417 = vadd.f32 %v3416, %v3354
    %v3418 = vadd.f32 %v3417, %v3355
    %v3419 = vadd.f32 %v3418, %v3356
    %v3420 = vadd.f32 %v3419, %v3357
    %v3421 = vadd.f32 %v3420, %v3358
    %v3422 = vadd.f32 %v3421, %v3359
    %v3423 = vadd.f32 %v3422, %v3360
    %v3424 = vadd.f32 %v3423, %v3361
    %v3425 = vadd.f32 %v3424, %v3362
    %v3426 = vadd.f32 %v3425, %v3363
    %v3427 = vadd.f32 %v3426, %v3364
    %v3428 = vadd.f32 %v3427, %v3365
    %v3429 = vadd.f32 %v3428, %v3366
    %v3430 = vadd.f32 %v3429, %v3367
    %v3431 = vadd.f32 %v3430, %v3368
    %v3432 = vadd.f32 %v3431, %v3369
    %v3433 = vadd.f32 %v3432, %v3370
    %v3434 = vadd.f32 %v3433, %v3371
    %v3435 = vadd.f32 %v3434, %v3372
    %v3436 = vadd.f32 %v3435, %v3373
    %v3437 = vadd.f32 %v3436, %v3374
    %v3438 = vadd.f32 %v3437, %v3375
    %v3439 = vadd.f32 %v3438, %v3376
    %v3440 = vadd.f32 %v3439, %v3377
    %v3441 = vadd.f32 %v3440, %v3378
    %v3442 = vadd.f32 %v3441, %v3379
    %v3443 = vadd.f32 %v3442, %v3380
    %v3444 = vadd.f32 %v3443, %v3381
    %v3445 = vadd.f32 %v3444, %v3382
    %v3446 = vadd.f32 %v3445, %v3383
    %v3447 = vadd.f32 %v3446, %v3384
    %v3448 = vadd.f32 %v3447, %v3385
    %v3449 = vadd.f32 %v3448, %v3386
    %v3450 = vadd.f32 %v3449, %v3387
    %v3451 = vadd.f32 %v3450, %v3388
    %v3452 = vadd.f32 %v3451, %v3389
    %v3453 = vadd.f32 %v3452, %v3390
    %v3454 = vadd.f32 %v3453, %v3391
    %v3455 = vadd.f32 %v3454, %v3392
    %v3456 = vadd.f32 %v3455, %v3393
    %v3457 = vadd.f32 %v3456, %v3394
    %v3458 = vadd.f32 %v3457, %v3395
    %v3459 = vadd.f32 %v3458, %v3396
    %v3460 = vadd.f32 %v3459, %v3397
    %3461 = vadd.xlane.f32.xlu0 %v3460
    %v3462 = vpop.xlane.xlu0 %3461
    %v3463 = vrot.slane %v3462, 4
    %v3464 = vadd.f32 %v3462, %v3463
    %v3465 = vrot.slane %v3464, 2
    %v3466 = vadd.f32 %v3464, %v3465
    %v3467 = vrot.slane %v3466, 1
    %v3468 = vadd.f32 %v3466, %v3467
    %s3469 = vtos %v3468
    %s3470 = sadd.f32 %s1754, %s2933
    %s3471 = sadd.f32 %s1755, %s3005
    %s3472 = sadd.f32 %s1756, %s3205
    %s3473 = sadd.f32 %s1757, %s3469
    %s3474 = ssub.f32 %s3471, %s3470
    %v3475 = vlaneseq
    %v3476 = vshrl.u32 %v3475, 7
    %vm3477 = vcmp.eq.s32.totalorder %v3476, 0
    %vm3478 = vcmp.eq.s32.totalorder %v3476, 1
    %vm3479 = vcmp.eq.s32.totalorder %v3476, 2
    %vm3480 = vcmp.eq.s32.totalorder %v3476, 3
    %v3481 = vstv %s3473
    %v3482 = vsel %vm3480, %v3481, 0.0
    %v3483 = vstv %s3472
    %v3484 = vsel %vm3479, %v3483, %v3482
    %v3485 = vstv %s3474
    %v3486 = vsel %vm3478, %v3485, %v3484
    %v3487 = vstv %s3470
    %v3488 = vsel %vm3477, %v3487, %v3486
    %3489 = vst [vmem:[#allocation7] sm:$0xff] %v3488
    // Predicated region
    $region18: #{tpu_custom_call.1} parent=1 // pred_check
      _
    $region19: #{tpu_custom_call.1} parent=1 // pred_check_branch
      %3491 = sbr.rel (0) target = $region21
    $region20: #{tpu_custom_call.1} parent=1 // pred_region
      %s3493 = ssub.s32 128, 128
      %3494 = vsyncadd [#allocation4], %s3493
      %s3496 = sshll.u32 [#allocation7], 4
      %s3497 = int_to_ptr.vmem [resolvable:$true] %s3496
      %3499 = dma.vmem_to_hbm [thread:$0]  %s3497, 128, %s2, [#allocation4]
    $region21: #{tpu_custom_call.1} parent=1 // pred_fallthru
      _
    // Predicated region
    $region22: #{tpu_custom_call.1} parent=1 // pred_check
      _
    $region23: #{tpu_custom_call.1} parent=1 // pred_check_branch
      %3501 = sbr.rel (0) target = $region25
    $region24: #{tpu_custom_call.1} parent=1 // pred_region
      %3502 = dma.done [#allocation4], 128
    $region25: #{tpu_custom_call.1} parent=1 // pred_fallthru
      _
    %3503 = vsyncpa [#allocation3], 1
    %3504 = vsyncpa [#allocation6], 1
    %3505 = vsyncpa [#allocation4], 1

</llo_original>
